<compile_context>
chip_gen: v7x
topology: tpu7x:2x2x1
jax: 0.10.0
libtpu: 0.0.40
codegen_flags: <defaults>
</compile_context>

<pallas_src>
import functools
import math

import jax
import jax.numpy as jnp
from jax.experimental import pallas as pl
from jax.experimental.pallas import tpu as pltpu


# ---------------------------------------------------------------------------
# Kernel 1: channel-wise mean / max pooling (streaming reduction over C).
# ---------------------------------------------------------------------------
def _pool_kernel(x_ref, o_ref, sum_sc, max_sc, *, inv_c, sub, n_groups):
    # x_ref : (TB, TC, THW)  input tile (any float dtype, upcast below)
    # o_ref : (TB, 2, THW)   pooled output tile (resident across the C axis)
    # sum_sc / max_sc : (TB, sub, THW) f32 full-sublane accumulators
    k = pl.program_id(2)
    nk = pl.num_programs(2)

    @pl.when(k == 0)
    def _():
        sum_sc[...] = jnp.zeros_like(sum_sc)
        max_sc[...] = jnp.full_like(max_sc, -jnp.inf)

    # Unconditional accumulate: fold the TC rows of this tile into the
    # `sub`-row accumulators (pure VPU adds/maxes on full vregs; the single
    # cross-sublane reduce is deferred to the epilogue).
    psum = sum_sc[...]
    pmax = max_sc[...]
    for g in range(n_groups):                       # static, TC // sub steps
        blk = x_ref[:, pl.ds(g * sub, sub), :].astype(jnp.float32)
        psum = psum + blk
        pmax = jnp.maximum(pmax, blk)
    sum_sc[...] = psum
    max_sc[...] = pmax

    @pl.when(k == nk - 1)
    def _():
        mean = jnp.sum(sum_sc[...], axis=1, keepdims=True) * inv_c  # (TB,1,THW)
        mx = jnp.max(max_sc[...], axis=1, keepdims=True)            # (TB,1,THW)
        o_ref[:, 0:1, :] = mean
        o_ref[:, 1:2, :] = mx


# ---------------------------------------------------------------------------
# Kernel 2: KxK conv (2 -> 1 channels) + sigmoid, all batches in one step.
# Padding is applied in-kernel via a zeroed VMEM scratch (no jnp.pad launch).
# ---------------------------------------------------------------------------
def _conv_kernel(w_ref, p_ref, o_ref, pad_sc, *, H, W, K, pad):
    # w_ref  : SMEM (2*K*K,) f32 taps (PyTorch OIHW order, O=1)
    # p_ref  : (B, 2, H, W) f32 pooled map
    # o_ref  : (B, H, W)    output, x.dtype
    # pad_sc : (B, 2, H+2p, W+2p) f32 scratch
    B = p_ref.shape[0]
    pad_sc[...] = jnp.zeros_like(pad_sc)
    pad_sc[:, :, pl.ds(pad, H), pl.ds(pad, W)] = p_ref[...]

    acc = jnp.zeros((B, H, W), jnp.float32)
    for c in range(2):
        base = c * K * K
        for dy in range(K):
            for dx in range(K):
                tap = w_ref[base + dy * K + dx]
                acc = acc + tap * pad_sc[:, c, pl.ds(dy, H), pl.ds(dx, W)]
    o_ref[...] = jax.nn.sigmoid(acc).astype(o_ref.dtype)


# ---------------------------------------------------------------------------
# Tile selection (dtype-aware, lane axis grown first, batch folding for small
# problems, hardened fallbacks).
# ---------------------------------------------------------------------------
_BUDGET_BYTES = 4 << 20  # per input tile; safe to double-buffer on v5e/v6e/v7x


def _largest_divisor_multiple(n, m, cap):
    """Largest d with d | n, d % m == 0, d <= cap; None if no such d."""
    best = None
    d = m
    top = min(n, cap)
    while d <= top:
        if n % d == 0:
            best = d
        d += m
    return best


def _choose_tiles(B, C, HW, itemsize, budget_bytes=_BUDGET_BYTES):
    # 1) THW (lane / innermost axis) first: as large as possible.
    min_rows = 8 if C % 8 == 0 else min(C, 8)
    lane_cap = max(budget_bytes // (min_rows * itemsize), 128)
    if HW <= lane_cap:
        THW = HW
    else:
        THW = _largest_divisor_multiple(HW, 128, lane_cap) or HW

    # 2) TC (sublane axis): largest 8-multiple divisor of C within budget.
    if C % 8 == 0:
        row_cap = max(budget_bytes // (THW * itemsize), 8)
        TC = _largest_divisor_multiple(C, 8, row_cap) or 8
    else:
        TC = C
        # Harden: if a single-step C tile blows the budget, shrink THW.
        if C * THW * itemsize > budget_bytes and HW % 128 == 0 and THW > 128:
            cap2 = max(budget_bytes // (C * itemsize), 128)
            THW = _largest_divisor_multiple(HW, 128, cap2) or THW

    n_hw = HW // THW
    n_c = C // TC

    # 3) TB (batch folding): only for small problems where per-step work is
    #    tiny; keep >= 2 parallel (b, hw) iterations when possible (v7x 2-TC).
    TB = 1
    if n_c == 1 and n_hw == 1 and B > 1:
        per_b = TC * THW * itemsize
        target = 512 * 1024
        tb = 1
        for cand in range(2, B + 1):
            if B % cand == 0 and cand * per_b <= budget_bytes and tb * per_b < target:
                tb = cand
        while tb > 1 and (B // tb) < 2:
            tb -= 1
            while tb > 1 and B % tb != 0:
                tb -= 1
        TB = tb
    return THW, TC, TB


# ---------------------------------------------------------------------------
# Wrapper
# ---------------------------------------------------------------------------
def spatial_attention(x, w):
    """x: (B, C, H, W); w: (1, 2, K, K) conv weight (no bias), K in {3, 7}.
    Returns sigmoid(conv([mean_c(x); max_c(x)])) of shape (B, 1, H, W), x.dtype."""
    B, C, H, W = x.shape
    K = w.shape[-1]
    assert w.shape == (1, 2, K, K)
    pad = K // 2
    HW = H * W
    itemsize = jnp.dtype(x.dtype).itemsize

    x_flat = x.reshape(B, C, HW)

    # Harden: huge HW with no clean 128-multiple divisor -> pad lanes.
    HW_p = HW
    if HW % 128 != 0 and HW * itemsize * min(C, 8) > _BUDGET_BYTES:
        HW_p = ((HW + 127) // 128) * 128
        x_flat = jnp.pad(x_flat, ((0, 0), (0, 0), (0, HW_p - HW)))

    THW, TC, TB = _choose_tiles(B, C, HW_p, itemsize)
    n_hw = HW_p // THW
    n_c = C // TC
    n_b = B // TB
    sub = math.gcd(TC, 8)
    n_groups = TC // sub

    # Explicit VMEM limit: double-buffered in/out + both scratch accumulators,
    # plus headroom; capped well under v7x's 64 MiB physical VMEM.
    vmem_limit = int(min(max(
        2 * TB * TC * THW * itemsize      # double-buffered input tile
        + 2 * TB * 2 * THW * 4            # double-buffered output tile
        + 2 * TB * sub * THW * 4          # sum / max scratch
        + (4 << 20),                      # headroom
        16 << 20), 56 << 20))

    # ---- Kernel 1: pooled = [mean_c(x); max_c(x)]  -> (B, 2, HW_p), lane-dense.
    pooled = pl.pallas_call(
        functools.partial(_pool_kernel, inv_c=1.0 / C, sub=sub, n_groups=n_groups),
        out_shape=jax.ShapeDtypeStruct((B, 2, HW_p), jnp.float32),
        grid_spec=pltpu.PrefetchScalarGridSpec(
            num_scalar_prefetch=0,
            grid=(n_b, n_hw, n_c),                      # reduction (C) axis last
            in_specs=[
                pl.BlockSpec((TB, TC, THW), lambda b, j, k: (b, k, j)),
            ],
            out_specs=pl.BlockSpec((TB, 2, THW), lambda b, j, k: (b, 0, j)),
            scratch_shapes=[
                pltpu.VMEM((TB, sub, THW), jnp.float32),
                pltpu.VMEM((TB, sub, THW), jnp.float32),
            ]),
        compiler_params=pltpu.CompilerParams(
            dimension_semantics=("parallel", "parallel", "arbitrary"),
            vmem_limit_bytes=vmem_limit),
    )(x_flat)

    pooled = pooled[:, :, :HW].reshape(B, 2, H, W) if HW_p != HW \
        else pooled.reshape(B, 2, H, W)

    # ---- Kernel 2: KxK conv + sigmoid, all batches in one grid step.
    Hp, Wp = H + 2 * pad, W + 2 * pad
    w_flat = w.reshape(2 * K * K).astype(jnp.float32)
    out = pl.pallas_call(
        functools.partial(_conv_kernel, H=H, W=W, K=K, pad=pad),
        out_shape=jax.ShapeDtypeStruct((B, H, W), x.dtype),
        grid_spec=pltpu.PrefetchScalarGridSpec(
            num_scalar_prefetch=0,
            grid=(1,),
            in_specs=[
                pl.BlockSpec(memory_space=pltpu.MemorySpace.SMEM),   # conv taps
                pl.BlockSpec((B, 2, H, W), lambda i: (0, 0, 0, 0)),
            ],
            out_specs=pl.BlockSpec((B, H, W), lambda i: (0, 0, 0)),
            scratch_shapes=[pltpu.VMEM((B, 2, Hp, Wp), jnp.float32)]),
        compiler_params=pltpu.CompilerParams(
            dimension_semantics=("arbitrary",)),
    )(w_flat, pooled)

    return out.reshape(B, 1, H, W)


if __name__ == "__main__":
    B, C, H, W = 2, 16, 16, 16
    K = 7                                   # kernel_size in {3, 7}

    key = jax.random.PRNGKey(0)
    kx, kw = jax.random.split(key)
    x = jax.random.normal(kx, (B, C, H, W), dtype=jnp.float32)
    w = jax.random.normal(kw, (1, 2, K, K), dtype=jnp.float32) * (2.0 / (2 * K * K)) ** 0.5

    out = jax.jit(spatial_attention)(x, w)
    out = jax.block_until_ready(out)

    # Pure-JAX reference of the forward semantics.
    avg = jnp.mean(x, axis=1, keepdims=True)
    mx = jnp.max(x, axis=1, keepdims=True)
    cat = jnp.concatenate([avg, mx], axis=1)
    pad = K // 2
    ref = jax.lax.conv_general_dilated(
        cat, w, window_strides=(1, 1),
        padding=((pad, pad), (pad, pad)),
        dimension_numbers=("NCHW", "OIHW", "NCHW"),
        precision=jax.lax.Precision.HIGHEST)
    ref = jax.nn.sigmoid(ref)

    assert out.shape == (B, 1, H, W)
    err = float(jnp.max(jnp.abs(out.astype(jnp.float32) - ref)))
    assert err < 1e-5, err
    print("KERNEL_OK")
</pallas_src>

<mosaic_0001>
module attributes {stable_mosaic.version = 11 : i64} {
  func.func @_pool_kernel(%arg0: i32, %arg1: i32, %arg2: i32, %arg3: memref<1x16x256xf32, #tpu.memory_space<vmem>>, %arg4: memref<1x2x256xf32, #tpu.memory_space<vmem>>, %arg5: memref<1x8x256xf32, #tpu.memory_space<vmem>>, %arg6: memref<1x8x256xf32, #tpu.memory_space<vmem>>) attributes {dimension_semantics = [#tpu.dimension_semantics<parallel>, #tpu.dimension_semantics<parallel>, #tpu.dimension_semantics<arbitrary>], iteration_bounds = array<i64: 2, 1, 1>, scalar_prefetch = 0 : i64, scratch_operands = 2 : i64, tpu.core_type = #tpu.core_type<tc>, window_params = [{transform_indices = @transform_0, window_bounds = array<i64: 1, 16, 256>}, {transform_indices = @transform_1, window_bounds = array<i64: 1, 2, 256>}]} {
    %c0_i32 = arith.constant 0 : i32
    %0 = arith.cmpi eq, %arg2, %c0_i32 : i32
    %1 = arith.extui %0 : i1 to i32
    %c0_i32_0 = arith.constant 0 : i32
    %2 = arith.cmpi ne, %1, %c0_i32_0 : i32
    scf.if %2 {
      %cst = arith.constant 0.000000e+00 : f32
      %16 = vector.broadcast %cst : f32 to vector<1x8x256xf32>
      %c0_19 = arith.constant 0 : index
      %c0_20 = arith.constant 0 : index
      %c0_21 = arith.constant 0 : index
      %17 = vector.load %arg5[%c0_19, %c0_20, %c0_21] : memref<1x8x256xf32, #tpu.memory_space<vmem>>, vector<1x8x256xf32>
      tpu.vector_store %arg5[%c0_19, %c0_20, %c0_21], %16 {strides = array<i32>} : memref<1x8x256xf32, #tpu.memory_space<vmem>>, vector<1x8x256xf32>,
      %cst_22 = arith.constant 0xFF800000 : f32
      %18 = vector.broadcast %cst_22 : f32 to vector<1x8x256xf32>
      %c0_23 = arith.constant 0 : index
      %c0_24 = arith.constant 0 : index
      %c0_25 = arith.constant 0 : index
      %19 = vector.load %arg6[%c0_23, %c0_24, %c0_25] : memref<1x8x256xf32, #tpu.memory_space<vmem>>, vector<1x8x256xf32>
      tpu.vector_store %arg6[%c0_23, %c0_24, %c0_25], %18 {strides = array<i32>} : memref<1x8x256xf32, #tpu.memory_space<vmem>>, vector<1x8x256xf32>,
    } else {
    }
    %c0 = arith.constant 0 : index
    %c0_1 = arith.constant 0 : index
    %c0_2 = arith.constant 0 : index
    %3 = vector.load %arg5[%c0, %c0_1, %c0_2] : memref<1x8x256xf32, #tpu.memory_space<vmem>>, vector<1x8x256xf32>
    %c0_3 = arith.constant 0 : index
    %c0_4 = arith.constant 0 : index
    %c0_5 = arith.constant 0 : index
    %4 = vector.load %arg6[%c0_3, %c0_4, %c0_5] : memref<1x8x256xf32, #tpu.memory_space<vmem>>, vector<1x8x256xf32>
    %c0_6 = arith.constant 0 : index
    %c0_7 = arith.constant 0 : index
    %c0_8 = arith.constant 0 : index
    %5 = vector.load %arg3[%c0_6, %c0_7, %c0_8] : memref<1x16x256xf32, #tpu.memory_space<vmem>>, vector<1x8x256xf32>
    %6 = arith.addf %3, %5 : vector<1x8x256xf32>
    %7 = arith.maximumf %4, %5 : vector<1x8x256xf32>
    %c0_9 = arith.constant 0 : index
    %c8 = arith.constant 8 : index
    %c0_10 = arith.constant 0 : index
    %8 = vector.load %arg3[%c0_9, %c8, %c0_10] : memref<1x16x256xf32, #tpu.memory_space<vmem>>, vector<1x8x256xf32>
    %9 = arith.addf %6, %8 : vector<1x8x256xf32>
    %10 = arith.maximumf %7, %8 : vector<1x8x256xf32>
    %c0_11 = arith.constant 0 : index
    %c0_12 = arith.constant 0 : index
    %c0_13 = arith.constant 0 : index
    %11 = vector.load %arg5[%c0_11, %c0_12, %c0_13] : memref<1x8x256xf32, #tpu.memory_space<vmem>>, vector<1x8x256xf32>
    tpu.vector_store %arg5[%c0_11, %c0_12, %c0_13], %9 {strides = array<i32>} : memref<1x8x256xf32, #tpu.memory_space<vmem>>, vector<1x8x256xf32>,
    %c0_14 = arith.constant 0 : index
    %c0_15 = arith.constant 0 : index
    %c0_16 = arith.constant 0 : index
    %12 = vector.load %arg6[%c0_14, %c0_15, %c0_16] : memref<1x8x256xf32, #tpu.memory_space<vmem>>, vector<1x8x256xf32>
    tpu.vector_store %arg6[%c0_14, %c0_15, %c0_16], %10 {strides = array<i32>} : memref<1x8x256xf32, #tpu.memory_space<vmem>>, vector<1x8x256xf32>,
    %c0_i32_17 = arith.constant 0 : i32
    %13 = arith.cmpi eq, %arg2, %c0_i32_17 : i32
    %14 = arith.extui %13 : i1 to i32
    %c0_i32_18 = arith.constant 0 : i32
    %15 = arith.cmpi ne, %14, %c0_i32_18 : i32
    scf.if %15 {
      %c0_19 = arith.constant 0 : index
      %c0_20 = arith.constant 0 : index
      %c0_21 = arith.constant 0 : index
      %16 = vector.load %arg5[%c0_19, %c0_20, %c0_21] : memref<1x8x256xf32, #tpu.memory_space<vmem>>, vector<1x8x256xf32>
      %cst = arith.constant dense<0.000000e+00> : vector<1x256xf32>
      %17 = vector.multi_reduction <add>, %16, %cst [1] : vector<1x8x256xf32> to vector<1x256xf32>
      %18 = vector.shape_cast %17 : vector<1x256xf32> to vector<1x1x256xf32>
      %cst_22 = arith.constant 6.250000e-02 : f32
      %19 = vector.broadcast %cst_22 : f32 to vector<1x1x256xf32>
      %20 = arith.mulf %18, %19 : vector<1x1x256xf32>
      %c0_23 = arith.constant 0 : index
      %c0_24 = arith.constant 0 : index
      %c0_25 = arith.constant 0 : index
      %21 = vector.load %arg6[%c0_23, %c0_24, %c0_25] : memref<1x8x256xf32, #tpu.memory_space<vmem>>, vector<1x8x256xf32>
      %cst_26 = arith.constant dense<0xFF800000> : vector<1x256xf32>
      %22 = vector.multi_reduction <maximumf>, %21, %cst_26 [1] : vector<1x8x256xf32> to vector<1x256xf32>
      %23 = vector.shape_cast %22 : vector<1x256xf32> to vector<1x1x256xf32>
      %c0_27 = arith.constant 0 : index
      %c0_28 = arith.constant 0 : index
      %c0_29 = arith.constant 0 : index
      %24 = vector.load %arg4[%c0_27, %c0_28, %c0_29] : memref<1x2x256xf32, #tpu.memory_space<vmem>>, vector<1x1x256xf32>
      tpu.vector_store %arg4[%c0_27, %c0_28, %c0_29], %20 {strides = array<i32>} : memref<1x2x256xf32, #tpu.memory_space<vmem>>, vector<1x1x256xf32>,
      %c0_30 = arith.constant 0 : index
      %c1 = arith.constant 1 : index
      %c0_31 = arith.constant 0 : index
      %25 = vector.load %arg4[%c0_30, %c1, %c0_31] : memref<1x2x256xf32, #tpu.memory_space<vmem>>, vector<1x1x256xf32>
      tpu.vector_store %arg4[%c0_30, %c1, %c0_31], %23 {strides = array<i32>} : memref<1x2x256xf32, #tpu.memory_space<vmem>>, vector<1x1x256xf32>,
    } else {
    }
    return
  }
  func.func @transform_0(%arg0: i32, %arg1: i32, %arg2: i32) -> (i32, i32, i32) {
    %c0_i32 = arith.constant 0 : i32
    return %arg0, %arg2, %arg1 : i32, i32, i32
  }
  func.func @transform_1(%arg0: i32, %arg1: i32, %arg2: i32) -> (i32, i32, i32) {
    %c0_i32 = arith.constant 0 : i32
    %c0_i32_0 = arith.constant 0 : i32
    return %arg0, %c0_i32, %arg1 : i32, i32, i32
  }
}

module attributes {stable_mosaic.version = 11 : i64} {
  func.func @_conv_kernel(%arg0: i32, %arg1: memref<98xf32, #tpu.memory_space<smem>>, %arg2: memref<2x2x16x16xf32, #tpu.memory_space<vmem>>, %arg3: memref<2x16x16xf32, #tpu.memory_space<vmem>>, %arg4: memref<2x2x22x22xf32, #tpu.memory_space<vmem>>) attributes {dimension_semantics = [#tpu.dimension_semantics<arbitrary>], iteration_bounds = array<i64: 1>, scalar_prefetch = 0 : i64, scratch_operands = 1 : i64, tpu.core_type = #tpu.core_type<tc>, window_params = [{transform_indices = @transform_0, window_bounds = array<i64: 98>}, {pipeline_mode = #tpu.pipeline_mode<synchronous>, transform_indices = @transform_1, window_bounds = array<i64: 2, 2, 16, 16>}, {pipeline_mode = #tpu.pipeline_mode<synchronous>, transform_indices = @transform_2, window_bounds = array<i64: 2, 16, 16>}]} {
    %cst = arith.constant 0.000000e+00 : f32
    %0 = vector.broadcast %cst : f32 to vector<2x2x22x22xf32>
    %c0 = arith.constant 0 : index
    %c0_0 = arith.constant 0 : index
    %c0_1 = arith.constant 0 : index
    %c0_2 = arith.constant 0 : index
    %1 = vector.load %arg4[%c0, %c0_0, %c0_1, %c0_2] : memref<2x2x22x22xf32, #tpu.memory_space<vmem>>, vector<2x2x22x22xf32>
    tpu.vector_store %arg4[%c0, %c0_0, %c0_1, %c0_2], %0 {strides = array<i32>} : memref<2x2x22x22xf32, #tpu.memory_space<vmem>>, vector<2x2x22x22xf32>,
    %c0_3 = arith.constant 0 : index
    %c0_4 = arith.constant 0 : index
    %c0_5 = arith.constant 0 : index
    %c0_6 = arith.constant 0 : index
    %2 = vector.load %arg2[%c0_3, %c0_4, %c0_5, %c0_6] : memref<2x2x16x16xf32, #tpu.memory_space<vmem>>, vector<2x2x16x16xf32>
    %c0_7 = arith.constant 0 : index
    %c0_8 = arith.constant 0 : index
    %c3 = arith.constant 3 : index
    %c3_9 = arith.constant 3 : index
    %3 = vector.load %arg4[%c0_7, %c0_8, %c3, %c3_9] : memref<2x2x22x22xf32, #tpu.memory_space<vmem>>, vector<2x2x16x16xf32>
    tpu.vector_store %arg4[%c0_7, %c0_8, %c3, %c3_9], %2 {strides = array<i32>} : memref<2x2x22x22xf32, #tpu.memory_space<vmem>>, vector<2x2x16x16xf32>,
    %cst_10 = arith.constant 0.000000e+00 : f32
    %4 = vector.broadcast %cst_10 : f32 to vector<2x16x16xf32>
    %c0_11 = arith.constant 0 : index
    %5 = memref.load %arg1[%c0_11] : memref<98xf32, #tpu.memory_space<smem>>
    %c0_12 = arith.constant 0 : index
    %c0_13 = arith.constant 0 : index
    %c0_14 = arith.constant 0 : index
    %c0_15 = arith.constant 0 : index
    %6 = vector.load %arg4[%c0_12, %c0_13, %c0_14, %c0_15] : memref<2x2x22x22xf32, #tpu.memory_space<vmem>>, vector<2x1x16x16xf32>
    %7 = vector.shape_cast %6 : vector<2x1x16x16xf32> to vector<2x16x16xf32>
    %8 = vector.broadcast %5 : f32 to vector<2x16x16xf32>
    %9 = arith.mulf %8, %7 : vector<2x16x16xf32>
    %10 = arith.addf %4, %9 : vector<2x16x16xf32>
    %c1 = arith.constant 1 : index
    %11 = memref.load %arg1[%c1] : memref<98xf32, #tpu.memory_space<smem>>
    %c0_16 = arith.constant 0 : index
    %c0_17 = arith.constant 0 : index
    %c0_18 = arith.constant 0 : index
    %c1_19 = arith.constant 1 : index
    %12 = vector.load %arg4[%c0_16, %c0_17, %c0_18, %c1_19] : memref<2x2x22x22xf32, #tpu.memory_space<vmem>>, vector<2x1x16x16xf32>
    %13 = vector.shape_cast %12 : vector<2x1x16x16xf32> to vector<2x16x16xf32>
    %14 = vector.broadcast %11 : f32 to vector<2x16x16xf32>
    %15 = arith.mulf %14, %13 : vector<2x16x16xf32>
    %16 = arith.addf %10, %15 : vector<2x16x16xf32>
    %c2 = arith.constant 2 : index
    %17 = memref.load %arg1[%c2] : memref<98xf32, #tpu.memory_space<smem>>
    %c0_20 = arith.constant 0 : index
    %c0_21 = arith.constant 0 : index
    %c0_22 = arith.constant 0 : index
    %c2_23 = arith.constant 2 : index
    %18 = vector.load %arg4[%c0_20, %c0_21, %c0_22, %c2_23] : memref<2x2x22x22xf32, #tpu.memory_space<vmem>>, vector<2x1x16x16xf32>
    %19 = vector.shape_cast %18 : vector<2x1x16x16xf32> to vector<2x16x16xf32>
    %20 = vector.broadcast %17 : f32 to vector<2x16x16xf32>
    %21 = arith.mulf %20, %19 : vector<2x16x16xf32>
    %22 = arith.addf %16, %21 : vector<2x16x16xf32>
    %c3_24 = arith.constant 3 : index
    %23 = memref.load %arg1[%c3_24] : memref<98xf32, #tpu.memory_space<smem>>
    %c0_25 = arith.constant 0 : index
    %c0_26 = arith.constant 0 : index
    %c0_27 = arith.constant 0 : index
    %c3_28 = arith.constant 3 : index
    %24 = vector.load %arg4[%c0_25, %c0_26, %c0_27, %c3_28] : memref<2x2x22x22xf32, #tpu.memory_space<vmem>>, vector<2x1x16x16xf32>
    %25 = vector.shape_cast %24 : vector<2x1x16x16xf32> to vector<2x16x16xf32>
    %26 = vector.broadcast %23 : f32 to vector<2x16x16xf32>
    %27 = arith.mulf %26, %25 : vector<2x16x16xf32>
    %28 = arith.addf %22, %27 : vector<2x16x16xf32>
    %c4 = arith.constant 4 : index
    %29 = memref.load %arg1[%c4] : memref<98xf32, #tpu.memory_space<smem>>
    %c0_29 = arith.constant 0 : index
    %c0_30 = arith.constant 0 : index
    %c0_31 = arith.constant 0 : index
    %c4_32 = arith.constant 4 : index
    %30 = vector.load %arg4[%c0_29, %c0_30, %c0_31, %c4_32] : memref<2x2x22x22xf32, #tpu.memory_space<vmem>>, vector<2x1x16x16xf32>
    %31 = vector.shape_cast %30 : vector<2x1x16x16xf32> to vector<2x16x16xf32>
    %32 = vector.broadcast %29 : f32 to vector<2x16x16xf32>
    %33 = arith.mulf %32, %31 : vector<2x16x16xf32>
    %34 = arith.addf %28, %33 : vector<2x16x16xf32>
    %c5 = arith.constant 5 : index
    %35 = memref.load %arg1[%c5] : memref<98xf32, #tpu.memory_space<smem>>
    %c0_33 = arith.constant 0 : index
    %c0_34 = arith.constant 0 : index
    %c0_35 = arith.constant 0 : index
    %c5_36 = arith.constant 5 : index
    %36 = vector.load %arg4[%c0_33, %c0_34, %c0_35, %c5_36] : memref<2x2x22x22xf32, #tpu.memory_space<vmem>>, vector<2x1x16x16xf32>
    %37 = vector.shape_cast %36 : vector<2x1x16x16xf32> to vector<2x16x16xf32>
    %38 = vector.broadcast %35 : f32 to vector<2x16x16xf32>
    %39 = arith.mulf %38, %37 : vector<2x16x16xf32>
    %40 = arith.addf %34, %39 : vector<2x16x16xf32>
    %c6 = arith.constant 6 : index
    %41 = memref.load %arg1[%c6] : memref<98xf32, #tpu.memory_space<smem>>
    %c0_37 = arith.constant 0 : index
    %c0_38 = arith.constant 0 : index
    %c0_39 = arith.constant 0 : index
    %c6_40 = arith.constant 6 : index
    %42 = vector.load %arg4[%c0_37, %c0_38, %c0_39, %c6_40] : memref<2x2x22x22xf32, #tpu.memory_space<vmem>>, vector<2x1x16x16xf32>
    %43 = vector.shape_cast %42 : vector<2x1x16x16xf32> to vector<2x16x16xf32>
    %44 = vector.broadcast %41 : f32 to vector<2x16x16xf32>
    %45 = arith.mulf %44, %43 : vector<2x16x16xf32>
    %46 = arith.addf %40, %45 : vector<2x16x16xf32>
    %c7 = arith.constant 7 : index
    %47 = memref.load %arg1[%c7] : memref<98xf32, #tpu.memory_space<smem>>
    %c0_41 = arith.constant 0 : index
    %c0_42 = arith.constant 0 : index
    %c1_43 = arith.constant 1 : index
    %c0_44 = arith.constant 0 : index
    %48 = vector.load %arg4[%c0_41, %c0_42, %c1_43, %c0_44] : memref<2x2x22x22xf32, #tpu.memory_space<vmem>>, vector<2x1x16x16xf32>
    %49 = vector.shape_cast %48 : vector<2x1x16x16xf32> to vector<2x16x16xf32>
    %50 = vector.broadcast %47 : f32 to vector<2x16x16xf32>
    %51 = arith.mulf %50, %49 : vector<2x16x16xf32>
    %52 = arith.addf %46, %51 : vector<2x16x16xf32>
    %c8 = arith.constant 8 : index
    %53 = memref.load %arg1[%c8] : memref<98xf32, #tpu.memory_space<smem>>
    %c0_45 = arith.constant 0 : index
    %c0_46 = arith.constant 0 : index
    %c1_47 = arith.constant 1 : index
    %c1_48 = arith.constant 1 : index
    %54 = vector.load %arg4[%c0_45, %c0_46, %c1_47, %c1_48] : memref<2x2x22x22xf32, #tpu.memory_space<vmem>>, vector<2x1x16x16xf32>
    %55 = vector.shape_cast %54 : vector<2x1x16x16xf32> to vector<2x16x16xf32>
    %56 = vector.broadcast %53 : f32 to vector<2x16x16xf32>
    %57 = arith.mulf %56, %55 : vector<2x16x16xf32>
    %58 = arith.addf %52, %57 : vector<2x16x16xf32>
    %c9 = arith.constant 9 : index
    %59 = memref.load %arg1[%c9] : memref<98xf32, #tpu.memory_space<smem>>
    %c0_49 = arith.constant 0 : index
    %c0_50 = arith.constant 0 : index
    %c1_51 = arith.constant 1 : index
    %c2_52 = arith.constant 2 : index
    %60 = vector.load %arg4[%c0_49, %c0_50, %c1_51, %c2_52] : memref<2x2x22x22xf32, #tpu.memory_space<vmem>>, vector<2x1x16x16xf32>
    %61 = vector.shape_cast %60 : vector<2x1x16x16xf32> to vector<2x16x16xf32>
    %62 = vector.broadcast %59 : f32 to vector<2x16x16xf32>
    %63 = arith.mulf %62, %61 : vector<2x16x16xf32>
    %64 = arith.addf %58, %63 : vector<2x16x16xf32>
    %c10 = arith.constant 10 : index
    %65 = memref.load %arg1[%c10] : memref<98xf32, #tpu.memory_space<smem>>
    %c0_53 = arith.constant 0 : index
    %c0_54 = arith.constant 0 : index
    %c1_55 = arith.constant 1 : index
    %c3_56 = arith.constant 3 : index
    %66 = vector.load %arg4[%c0_53, %c0_54, %c1_55, %c3_56] : memref<2x2x22x22xf32, #tpu.memory_space<vmem>>, vector<2x1x16x16xf32>
    %67 = vector.shape_cast %66 : vector<2x1x16x16xf32> to vector<2x16x16xf32>
    %68 = vector.broadcast %65 : f32 to vector<2x16x16xf32>
    %69 = arith.mulf %68, %67 : vector<2x16x16xf32>
    %70 = arith.addf %64, %69 : vector<2x16x16xf32>
    %c11 = arith.constant 11 : index
    %71 = memref.load %arg1[%c11] : memref<98xf32, #tpu.memory_space<smem>>
    %c0_57 = arith.constant 0 : index
    %c0_58 = arith.constant 0 : index
    %c1_59 = arith.constant 1 : index
    %c4_60 = arith.constant 4 : index
    %72 = vector.load %arg4[%c0_57, %c0_58, %c1_59, %c4_60] : memref<2x2x22x22xf32, #tpu.memory_space<vmem>>, vector<2x1x16x16xf32>
    %73 = vector.shape_cast %72 : vector<2x1x16x16xf32> to vector<2x16x16xf32>
    %74 = vector.broadcast %71 : f32 to vector<2x16x16xf32>
    %75 = arith.mulf %74, %73 : vector<2x16x16xf32>
    %76 = arith.addf %70, %75 : vector<2x16x16xf32>
    %c12 = arith.constant 12 : index
    %77 = memref.load %arg1[%c12] : memref<98xf32, #tpu.memory_space<smem>>
    %c0_61 = arith.constant 0 : index
    %c0_62 = arith.constant 0 : index
    %c1_63 = arith.constant 1 : index
    %c5_64 = arith.constant 5 : index
    %78 = vector.load %arg4[%c0_61, %c0_62, %c1_63, %c5_64] : memref<2x2x22x22xf32, #tpu.memory_space<vmem>>, vector<2x1x16x16xf32>
    %79 = vector.shape_cast %78 : vector<2x1x16x16xf32> to vector<2x16x16xf32>
    %80 = vector.broadcast %77 : f32 to vector<2x16x16xf32>
    %81 = arith.mulf %80, %79 : vector<2x16x16xf32>
    %82 = arith.addf %76, %81 : vector<2x16x16xf32>
    %c13 = arith.constant 13 : index
    %83 = memref.load %arg1[%c13] : memref<98xf32, #tpu.memory_space<smem>>
    %c0_65 = arith.constant 0 : index
    %c0_66 = arith.constant 0 : index
    %c1_67 = arith.constant 1 : index
    %c6_68 = arith.constant 6 : index
    %84 = vector.load %arg4[%c0_65, %c0_66, %c1_67, %c6_68] : memref<2x2x22x22xf32, #tpu.memory_space<vmem>>, vector<2x1x16x16xf32>
    %85 = vector.shape_cast %84 : vector<2x1x16x16xf32> to vector<2x16x16xf32>
    %86 = vector.broadcast %83 : f32 to vector<2x16x16xf32>
    %87 = arith.mulf %86, %85 : vector<2x16x16xf32>
    %88 = arith.addf %82, %87 : vector<2x16x16xf32>
    %c14 = arith.constant 14 : index
    %89 = memref.load %arg1[%c14] : memref<98xf32, #tpu.memory_space<smem>>
    %c0_69 = arith.constant 0 : index
    %c0_70 = arith.constant 0 : index
    %c2_71 = arith.constant 2 : index
    %c0_72 = arith.constant 0 : index
    %90 = vector.load %arg4[%c0_69, %c0_70, %c2_71, %c0_72] : memref<2x2x22x22xf32, #tpu.memory_space<vmem>>, vector<2x1x16x16xf32>
    %91 = vector.shape_cast %90 : vector<2x1x16x16xf32> to vector<2x16x16xf32>
    %92 = vector.broadcast %89 : f32 to vector<2x16x16xf32>
    %93 = arith.mulf %92, %91 : vector<2x16x16xf32>
    %94 = arith.addf %88, %93 : vector<2x16x16xf32>
    %c15 = arith.constant 15 : index
    %95 = memref.load %arg1[%c15] : memref<98xf32, #tpu.memory_space<smem>>
    %c0_73 = arith.constant 0 : index
    %c0_74 = arith.constant 0 : index
    %c2_75 = arith.constant 2 : index
    %c1_76 = arith.constant 1 : index
    %96 = vector.load %arg4[%c0_73, %c0_74, %c2_75, %c1_76] : memref<2x2x22x22xf32, #tpu.memory_space<vmem>>, vector<2x1x16x16xf32>
    %97 = vector.shape_cast %96 : vector<2x1x16x16xf32> to vector<2x16x16xf32>
    %98 = vector.broadcast %95 : f32 to vector<2x16x16xf32>
    %99 = arith.mulf %98, %97 : vector<2x16x16xf32>
    %100 = arith.addf %94, %99 : vector<2x16x16xf32>
    %c16 = arith.constant 16 : index
    %101 = memref.load %arg1[%c16] : memref<98xf32, #tpu.memory_space<smem>>
    %c0_77 = arith.constant 0 : index
    %c0_78 = arith.constant 0 : index
    %c2_79 = arith.constant 2 : index
    %c2_80 = arith.constant 2 : index
    %102 = vector.load %arg4[%c0_77, %c0_78, %c2_79, %c2_80] : memref<2x2x22x22xf32, #tpu.memory_space<vmem>>, vector<2x1x16x16xf32>
    %103 = vector.shape_cast %102 : vector<2x1x16x16xf32> to vector<2x16x16xf32>
    %104 = vector.broadcast %101 : f32 to vector<2x16x16xf32>
    %105 = arith.mulf %104, %103 : vector<2x16x16xf32>
    %106 = arith.addf %100, %105 : vector<2x16x16xf32>
    %c17 = arith.constant 17 : index
    %107 = memref.load %arg1[%c17] : memref<98xf32, #tpu.memory_space<smem>>
    %c0_81 = arith.constant 0 : index
    %c0_82 = arith.constant 0 : index
    %c2_83 = arith.constant 2 : index
    %c3_84 = arith.constant 3 : index
    %108 = vector.load %arg4[%c0_81, %c0_82, %c2_83, %c3_84] : memref<2x2x22x22xf32, #tpu.memory_space<vmem>>, vector<2x1x16x16xf32>
    %109 = vector.shape_cast %108 : vector<2x1x16x16xf32> to vector<2x16x16xf32>
    %110 = vector.broadcast %107 : f32 to vector<2x16x16xf32>
    %111 = arith.mulf %110, %109 : vector<2x16x16xf32>
    %112 = arith.addf %106, %111 : vector<2x16x16xf32>
    %c18 = arith.constant 18 : index
    %113 = memref.load %arg1[%c18] : memref<98xf32, #tpu.memory_space<smem>>
    %c0_85 = arith.constant 0 : index
    %c0_86 = arith.constant 0 : index
    %c2_87 = arith.constant 2 : index
    %c4_88 = arith.constant 4 : index
    %114 = vector.load %arg4[%c0_85, %c0_86, %c2_87, %c4_88] : memref<2x2x22x22xf32, #tpu.memory_space<vmem>>, vector<2x1x16x16xf32>
    %115 = vector.shape_cast %114 : vector<2x1x16x16xf32> to vector<2x16x16xf32>
    %116 = vector.broadcast %113 : f32 to vector<2x16x16xf32>
    %117 = arith.mulf %116, %115 : vector<2x16x16xf32>
    %118 = arith.addf %112, %117 : vector<2x16x16xf32>
    %c19 = arith.constant 19 : index
    %119 = memref.load %arg1[%c19] : memref<98xf32, #tpu.memory_space<smem>>
    %c0_89 = arith.constant 0 : index
    %c0_90 = arith.constant 0 : index
    %c2_91 = arith.constant 2 : index
    %c5_92 = arith.constant 5 : index
    %120 = vector.load %arg4[%c0_89, %c0_90, %c2_91, %c5_92] : memref<2x2x22x22xf32, #tpu.memory_space<vmem>>, vector<2x1x16x16xf32>
    %121 = vector.shape_cast %120 : vector<2x1x16x16xf32> to vector<2x16x16xf32>
    %122 = vector.broadcast %119 : f32 to vector<2x16x16xf32>
    %123 = arith.mulf %122, %121 : vector<2x16x16xf32>
    %124 = arith.addf %118, %123 : vector<2x16x16xf32>
    %c20 = arith.constant 20 : index
    %125 = memref.load %arg1[%c20] : memref<98xf32, #tpu.memory_space<smem>>
    %c0_93 = arith.constant 0 : index
    %c0_94 = arith.constant 0 : index
    %c2_95 = arith.constant 2 : index
    %c6_96 = arith.constant 6 : index
    %126 = vector.load %arg4[%c0_93, %c0_94, %c2_95, %c6_96] : memref<2x2x22x22xf32, #tpu.memory_space<vmem>>, vector<2x1x16x16xf32>
    %127 = vector.shape_cast %126 : vector<2x1x16x16xf32> to vector<2x16x16xf32>
    %128 = vector.broadcast %125 : f32 to vector<2x16x16xf32>
    %129 = arith.mulf %128, %127 : vector<2x16x16xf32>
    %130 = arith.addf %124, %129 : vector<2x16x16xf32>
    %c21 = arith.constant 21 : index
    %131 = memref.load %arg1[%c21] : memref<98xf32, #tpu.memory_space<smem>>
    %c0_97 = arith.constant 0 : index
    %c0_98 = arith.constant 0 : index
    %c3_99 = arith.constant 3 : index
    %c0_100 = arith.constant 0 : index
    %132 = vector.load %arg4[%c0_97, %c0_98, %c3_99, %c0_100] : memref<2x2x22x22xf32, #tpu.memory_space<vmem>>, vector<2x1x16x16xf32>
    %133 = vector.shape_cast %132 : vector<2x1x16x16xf32> to vector<2x16x16xf32>
    %134 = vector.broadcast %131 : f32 to vector<2x16x16xf32>
    %135 = arith.mulf %134, %133 : vector<2x16x16xf32>
    %136 = arith.addf %130, %135 : vector<2x16x16xf32>
    %c22 = arith.constant 22 : index
    %137 = memref.load %arg1[%c22] : memref<98xf32, #tpu.memory_space<smem>>
    %c0_101 = arith.constant 0 : index
    %c0_102 = arith.constant 0 : index
    %c3_103 = arith.constant 3 : index
    %c1_104 = arith.constant 1 : index
    %138 = vector.load %arg4[%c0_101, %c0_102, %c3_103, %c1_104] : memref<2x2x22x22xf32, #tpu.memory_space<vmem>>, vector<2x1x16x16xf32>
    %139 = vector.shape_cast %138 : vector<2x1x16x16xf32> to vector<2x16x16xf32>
    %140 = vector.broadcast %137 : f32 to vector<2x16x16xf32>
    %141 = arith.mulf %140, %139 : vector<2x16x16xf32>
    %142 = arith.addf %136, %141 : vector<2x16x16xf32>
    %c23 = arith.constant 23 : index
    %143 = memref.load %arg1[%c23] : memref<98xf32, #tpu.memory_space<smem>>
    %c0_105 = arith.constant 0 : index
    %c0_106 = arith.constant 0 : index
    %c3_107 = arith.constant 3 : index
    %c2_108 = arith.constant 2 : index
    %144 = vector.load %arg4[%c0_105, %c0_106, %c3_107, %c2_108] : memref<2x2x22x22xf32, #tpu.memory_space<vmem>>, vector<2x1x16x16xf32>
    %145 = vector.shape_cast %144 : vector<2x1x16x16xf32> to vector<2x16x16xf32>
    %146 = vector.broadcast %143 : f32 to vector<2x16x16xf32>
    %147 = arith.mulf %146, %145 : vector<2x16x16xf32>
    %148 = arith.addf %142, %147 : vector<2x16x16xf32>
    %c24 = arith.constant 24 : index
    %149 = memref.load %arg1[%c24] : memref<98xf32, #tpu.memory_space<smem>>
    %c0_109 = arith.constant 0 : index
    %c0_110 = arith.constant 0 : index
    %c3_111 = arith.constant 3 : index
    %c3_112 = arith.constant 3 : index
    %150 = vector.load %arg4[%c0_109, %c0_110, %c3_111, %c3_112] : memref<2x2x22x22xf32, #tpu.memory_space<vmem>>, vector<2x1x16x16xf32>
    %151 = vector.shape_cast %150 : vector<2x1x16x16xf32> to vector<2x16x16xf32>
    %152 = vector.broadcast %149 : f32 to vector<2x16x16xf32>
    %153 = arith.mulf %152, %151 : vector<2x16x16xf32>
    %154 = arith.addf %148, %153 : vector<2x16x16xf32>
    %c25 = arith.constant 25 : index
    %155 = memref.load %arg1[%c25] : memref<98xf32, #tpu.memory_space<smem>>
    %c0_113 = arith.constant 0 : index
    %c0_114 = arith.constant 0 : index
    %c3_115 = arith.constant 3 : index
    %c4_116 = arith.constant 4 : index
    %156 = vector.load %arg4[%c0_113, %c0_114, %c3_115, %c4_116] : memref<2x2x22x22xf32, #tpu.memory_space<vmem>>, vector<2x1x16x16xf32>
    %157 = vector.shape_cast %156 : vector<2x1x16x16xf32> to vector<2x16x16xf32>
    %158 = vector.broadcast %155 : f32 to vector<2x16x16xf32>
    %159 = arith.mulf %158, %157 : vector<2x16x16xf32>
    %160 = arith.addf %154, %159 : vector<2x16x16xf32>
    %c26 = arith.constant 26 : index
    %161 = memref.load %arg1[%c26] : memref<98xf32, #tpu.memory_space<smem>>
    %c0_117 = arith.constant 0 : index
    %c0_118 = arith.constant 0 : index
    %c3_119 = arith.constant 3 : index
    %c5_120 = arith.constant 5 : index
    %162 = vector.load %arg4[%c0_117, %c0_118, %c3_119, %c5_120] : memref<2x2x22x22xf32, #tpu.memory_space<vmem>>, vector<2x1x16x16xf32>
    %163 = vector.shape_cast %162 : vector<2x1x16x16xf32> to vector<2x16x16xf32>
    %164 = vector.broadcast %161 : f32 to vector<2x16x16xf32>
    %165 = arith.mulf %164, %163 : vector<2x16x16xf32>
    %166 = arith.addf %160, %165 : vector<2x16x16xf32>
    %c27 = arith.constant 27 : index
    %167 = memref.load %arg1[%c27] : memref<98xf32, #tpu.memory_space<smem>>
    %c0_121 = arith.constant 0 : index
    %c0_122 = arith.constant 0 : index
    %c3_123 = arith.constant 3 : index
    %c6_124 = arith.constant 6 : index
    %168 = vector.load %arg4[%c0_121, %c0_122, %c3_123, %c6_124] : memref<2x2x22x22xf32, #tpu.memory_space<vmem>>, vector<2x1x16x16xf32>
    %169 = vector.shape_cast %168 : vector<2x1x16x16xf32> to vector<2x16x16xf32>
    %170 = vector.broadcast %167 : f32 to vector<2x16x16xf32>
    %171 = arith.mulf %170, %169 : vector<2x16x16xf32>
    %172 = arith.addf %166, %171 : vector<2x16x16xf32>
    %c28 = arith.constant 28 : index
    %173 = memref.load %arg1[%c28] : memref<98xf32, #tpu.memory_space<smem>>
    %c0_125 = arith.constant 0 : index
    %c0_126 = arith.constant 0 : index
    %c4_127 = arith.constant 4 : index
    %c0_128 = arith.constant 0 : index
    %174 = vector.load %arg4[%c0_125, %c0_126, %c4_127, %c0_128] : memref<2x2x22x22xf32, #tpu.memory_space<vmem>>, vector<2x1x16x16xf32>
    %175 = vector.shape_cast %174 : vector<2x1x16x16xf32> to vector<2x16x16xf32>
    %176 = vector.broadcast %173 : f32 to vector<2x16x16xf32>
    %177 = arith.mulf %176, %175 : vector<2x16x16xf32>
    %178 = arith.addf %172, %177 : vector<2x16x16xf32>
    %c29 = arith.constant 29 : index
    %179 = memref.load %arg1[%c29] : memref<98xf32, #tpu.memory_space<smem>>
    %c0_129 = arith.constant 0 : index
    %c0_130 = arith.constant 0 : index
    %c4_131 = arith.constant 4 : index
    %c1_132 = arith.constant 1 : index
    %180 = vector.load %arg4[%c0_129, %c0_130, %c4_131, %c1_132] : memref<2x2x22x22xf32, #tpu.memory_space<vmem>>, vector<2x1x16x16xf32>
    %181 = vector.shape_cast %180 : vector<2x1x16x16xf32> to vector<2x16x16xf32>
    %182 = vector.broadcast %179 : f32 to vector<2x16x16xf32>
    %183 = arith.mulf %182, %181 : vector<2x16x16xf32>
    %184 = arith.addf %178, %183 : vector<2x16x16xf32>
    %c30 = arith.constant 30 : index
    %185 = memref.load %arg1[%c30] : memref<98xf32, #tpu.memory_space<smem>>
    %c0_133 = arith.constant 0 : index
    %c0_134 = arith.constant 0 : index
    %c4_135 = arith.constant 4 : index
    %c2_136 = arith.constant 2 : index
    %186 = vector.load %arg4[%c0_133, %c0_134, %c4_135, %c2_136] : memref<2x2x22x22xf32, #tpu.memory_space<vmem>>, vector<2x1x16x16xf32>
    %187 = vector.shape_cast %186 : vector<2x1x16x16xf32> to vector<2x16x16xf32>
    %188 = vector.broadcast %185 : f32 to vector<2x16x16xf32>
    %189 = arith.mulf %188, %187 : vector<2x16x16xf32>
    %190 = arith.addf %184, %189 : vector<2x16x16xf32>
    %c31 = arith.constant 31 : index
    %191 = memref.load %arg1[%c31] : memref<98xf32, #tpu.memory_space<smem>>
    %c0_137 = arith.constant 0 : index
    %c0_138 = arith.constant 0 : index
    %c4_139 = arith.constant 4 : index
    %c3_140 = arith.constant 3 : index
    %192 = vector.load %arg4[%c0_137, %c0_138, %c4_139, %c3_140] : memref<2x2x22x22xf32, #tpu.memory_space<vmem>>, vector<2x1x16x16xf32>
    %193 = vector.shape_cast %192 : vector<2x1x16x16xf32> to vector<2x16x16xf32>
    %194 = vector.broadcast %191 : f32 to vector<2x16x16xf32>
    %195 = arith.mulf %194, %193 : vector<2x16x16xf32>
    %196 = arith.addf %190, %195 : vector<2x16x16xf32>
    %c32 = arith.constant 32 : index
    %197 = memref.load %arg1[%c32] : memref<98xf32, #tpu.memory_space<smem>>
    %c0_141 = arith.constant 0 : index
    %c0_142 = arith.constant 0 : index
    %c4_143 = arith.constant 4 : index
    %c4_144 = arith.constant 4 : index
    %198 = vector.load %arg4[%c0_141, %c0_142, %c4_143, %c4_144] : memref<2x2x22x22xf32, #tpu.memory_space<vmem>>, vector<2x1x16x16xf32>
    %199 = vector.shape_cast %198 : vector<2x1x16x16xf32> to vector<2x16x16xf32>
    %200 = vector.broadcast %197 : f32 to vector<2x16x16xf32>
    %201 = arith.mulf %200, %199 : vector<2x16x16xf32>
    %202 = arith.addf %196, %201 : vector<2x16x16xf32>
    %c33 = arith.constant 33 : index
    %203 = memref.load %arg1[%c33] : memref<98xf32, #tpu.memory_space<smem>>
    %c0_145 = arith.constant 0 : index
    %c0_146 = arith.constant 0 : index
    %c4_147 = arith.constant 4 : index
    %c5_148 = arith.constant 5 : index
    %204 = vector.load %arg4[%c0_145, %c0_146, %c4_147, %c5_148] : memref<2x2x22x22xf32, #tpu.memory_space<vmem>>, vector<2x1x16x16xf32>
    %205 = vector.shape_cast %204 : vector<2x1x16x16xf32> to vector<2x16x16xf32>
    %206 = vector.broadcast %203 : f32 to vector<2x16x16xf32>
    %207 = arith.mulf %206, %205 : vector<2x16x16xf32>
    %208 = arith.addf %202, %207 : vector<2x16x16xf32>
    %c34 = arith.constant 34 : index
    %209 = memref.load %arg1[%c34] : memref<98xf32, #tpu.memory_space<smem>>
    %c0_149 = arith.constant 0 : index
    %c0_150 = arith.constant 0 : index
    %c4_151 = arith.constant 4 : index
    %c6_152 = arith.constant 6 : index
    %210 = vector.load %arg4[%c0_149, %c0_150, %c4_151, %c6_152] : memref<2x2x22x22xf32, #tpu.memory_space<vmem>>, vector<2x1x16x16xf32>
    %211 = vector.shape_cast %210 : vector<2x1x16x16xf32> to vector<2x16x16xf32>
    %212 = vector.broadcast %209 : f32 to vector<2x16x16xf32>
    %213 = arith.mulf %212, %211 : vector<2x16x16xf32>
    %214 = arith.addf %208, %213 : vector<2x16x16xf32>
    %c35 = arith.constant 35 : index
    %215 = memref.load %arg1[%c35] : memref<98xf32, #tpu.memory_space<smem>>
    %c0_153 = arith.constant 0 : index
    %c0_154 = arith.constant 0 : index
    %c5_155 = arith.constant 5 : index
    %c0_156 = arith.constant 0 : index
    %216 = vector.load %arg4[%c0_153, %c0_154, %c5_155, %c0_156] : memref<2x2x22x22xf32, #tpu.memory_space<vmem>>, vector<2x1x16x16xf32>
    %217 = vector.shape_cast %216 : vector<2x1x16x16xf32> to vector<2x16x16xf32>
    %218 = vector.broadcast %215 : f32 to vector<2x16x16xf32>
    %219 = arith.mulf %218, %217 : vector<2x16x16xf32>
    %220 = arith.addf %214, %219 : vector<2x16x16xf32>
    %c36 = arith.constant 36 : index
    %221 = memref.load %arg1[%c36] : memref<98xf32, #tpu.memory_space<smem>>
    %c0_157 = arith.constant 0 : index
    %c0_158 = arith.constant 0 : index
    %c5_159 = arith.constant 5 : index
    %c1_160 = arith.constant 1 : index
    %222 = vector.load %arg4[%c0_157, %c0_158, %c5_159, %c1_160] : memref<2x2x22x22xf32, #tpu.memory_space<vmem>>, vector<2x1x16x16xf32>
    %223 = vector.shape_cast %222 : vector<2x1x16x16xf32> to vector<2x16x16xf32>
    %224 = vector.broadcast %221 : f32 to vector<2x16x16xf32>
    %225 = arith.mulf %224, %223 : vector<2x16x16xf32>
    %226 = arith.addf %220, %225 : vector<2x16x16xf32>
    %c37 = arith.constant 37 : index
    %227 = memref.load %arg1[%c37] : memref<98xf32, #tpu.memory_space<smem>>
    %c0_161 = arith.constant 0 : index
    %c0_162 = arith.constant 0 : index
    %c5_163 = arith.constant 5 : index
    %c2_164 = arith.constant 2 : index
    %228 = vector.load %arg4[%c0_161, %c0_162, %c5_163, %c2_164] : memref<2x2x22x22xf32, #tpu.memory_space<vmem>>, vector<2x1x16x16xf32>
    %229 = vector.shape_cast %228 : vector<2x1x16x16xf32> to vector<2x16x16xf32>
    %230 = vector.broadcast %227 : f32 to vector<2x16x16xf32>
    %231 = arith.mulf %230, %229 : vector<2x16x16xf32>
    %232 = arith.addf %226, %231 : vector<2x16x16xf32>
    %c38 = arith.constant 38 : index
    %233 = memref.load %arg1[%c38] : memref<98xf32, #tpu.memory_space<smem>>
    %c0_165 = arith.constant 0 : index
    %c0_166 = arith.constant 0 : index
    %c5_167 = arith.constant 5 : index
    %c3_168 = arith.constant 3 : index
    %234 = vector.load %arg4[%c0_165, %c0_166, %c5_167, %c3_168] : memref<2x2x22x22xf32, #tpu.memory_space<vmem>>, vector<2x1x16x16xf32>
    %235 = vector.shape_cast %234 : vector<2x1x16x16xf32> to vector<2x16x16xf32>
    %236 = vector.broadcast %233 : f32 to vector<2x16x16xf32>
    %237 = arith.mulf %236, %235 : vector<2x16x16xf32>
    %238 = arith.addf %232, %237 : vector<2x16x16xf32>
    %c39 = arith.constant 39 : index
    %239 = memref.load %arg1[%c39] : memref<98xf32, #tpu.memory_space<smem>>
    %c0_169 = arith.constant 0 : index
    %c0_170 = arith.constant 0 : index
    %c5_171 = arith.constant 5 : index
    %c4_172 = arith.constant 4 : index
    %240 = vector.load %arg4[%c0_169, %c0_170, %c5_171, %c4_172] : memref<2x2x22x22xf32, #tpu.memory_space<vmem>>, vector<2x1x16x16xf32>
    %241 = vector.shape_cast %240 : vector<2x1x16x16xf32> to vector<2x16x16xf32>
    %242 = vector.broadcast %239 : f32 to vector<2x16x16xf32>
    %243 = arith.mulf %242, %241 : vector<2x16x16xf32>
    %244 = arith.addf %238, %243 : vector<2x16x16xf32>
    %c40 = arith.constant 40 : index
    %245 = memref.load %arg1[%c40] : memref<98xf32, #tpu.memory_space<smem>>
    %c0_173 = arith.constant 0 : index
    %c0_174 = arith.constant 0 : index
    %c5_175 = arith.constant 5 : index
    %c5_176 = arith.constant 5 : index
    %246 = vector.load %arg4[%c0_173, %c0_174, %c5_175, %c5_176] : memref<2x2x22x22xf32, #tpu.memory_space<vmem>>, vector<2x1x16x16xf32>
    %247 = vector.shape_cast %246 : vector<2x1x16x16xf32> to vector<2x16x16xf32>
    %248 = vector.broadcast %245 : f32 to vector<2x16x16xf32>
    %249 = arith.mulf %248, %247 : vector<2x16x16xf32>
    %250 = arith.addf %244, %249 : vector<2x16x16xf32>
    %c41 = arith.constant 41 : index
    %251 = memref.load %arg1[%c41] : memref<98xf32, #tpu.memory_space<smem>>
    %c0_177 = arith.constant 0 : index
    %c0_178 = arith.constant 0 : index
    %c5_179 = arith.constant 5 : index
    %c6_180 = arith.constant 6 : index
    %252 = vector.load %arg4[%c0_177, %c0_178, %c5_179, %c6_180] : memref<2x2x22x22xf32, #tpu.memory_space<vmem>>, vector<2x1x16x16xf32>
    %253 = vector.shape_cast %252 : vector<2x1x16x16xf32> to vector<2x16x16xf32>
    %254 = vector.broadcast %251 : f32 to vector<2x16x16xf32>
    %255 = arith.mulf %254, %253 : vector<2x16x16xf32>
    %256 = arith.addf %250, %255 : vector<2x16x16xf32>
    %c42 = arith.constant 42 : index
    %257 = memref.load %arg1[%c42] : memref<98xf32, #tpu.memory_space<smem>>
    %c0_181 = arith.constant 0 : index
    %c0_182 = arith.constant 0 : index
    %c6_183 = arith.constant 6 : index
    %c0_184 = arith.constant 0 : index
    %258 = vector.load %arg4[%c0_181, %c0_182, %c6_183, %c0_184] : memref<2x2x22x22xf32, #tpu.memory_space<vmem>>, vector<2x1x16x16xf32>
    %259 = vector.shape_cast %258 : vector<2x1x16x16xf32> to vector<2x16x16xf32>
    %260 = vector.broadcast %257 : f32 to vector<2x16x16xf32>
    %261 = arith.mulf %260, %259 : vector<2x16x16xf32>
    %262 = arith.addf %256, %261 : vector<2x16x16xf32>
    %c43 = arith.constant 43 : index
    %263 = memref.load %arg1[%c43] : memref<98xf32, #tpu.memory_space<smem>>
    %c0_185 = arith.constant 0 : index
    %c0_186 = arith.constant 0 : index
    %c6_187 = arith.constant 6 : index
    %c1_188 = arith.constant 1 : index
    %264 = vector.load %arg4[%c0_185, %c0_186, %c6_187, %c1_188] : memref<2x2x22x22xf32, #tpu.memory_space<vmem>>, vector<2x1x16x16xf32>
    %265 = vector.shape_cast %264 : vector<2x1x16x16xf32> to vector<2x16x16xf32>
    %266 = vector.broadcast %263 : f32 to vector<2x16x16xf32>
    %267 = arith.mulf %266, %265 : vector<2x16x16xf32>
    %268 = arith.addf %262, %267 : vector<2x16x16xf32>
    %c44 = arith.constant 44 : index
    %269 = memref.load %arg1[%c44] : memref<98xf32, #tpu.memory_space<smem>>
    %c0_189 = arith.constant 0 : index
    %c0_190 = arith.constant 0 : index
    %c6_191 = arith.constant 6 : index
    %c2_192 = arith.constant 2 : index
    %270 = vector.load %arg4[%c0_189, %c0_190, %c6_191, %c2_192] : memref<2x2x22x22xf32, #tpu.memory_space<vmem>>, vector<2x1x16x16xf32>
    %271 = vector.shape_cast %270 : vector<2x1x16x16xf32> to vector<2x16x16xf32>
    %272 = vector.broadcast %269 : f32 to vector<2x16x16xf32>
    %273 = arith.mulf %272, %271 : vector<2x16x16xf32>
    %274 = arith.addf %268, %273 : vector<2x16x16xf32>
    %c45 = arith.constant 45 : index
    %275 = memref.load %arg1[%c45] : memref<98xf32, #tpu.memory_space<smem>>
    %c0_193 = arith.constant 0 : index
    %c0_194 = arith.constant 0 : index
    %c6_195 = arith.constant 6 : index
    %c3_196 = arith.constant 3 : index
    %276 = vector.load %arg4[%c0_193, %c0_194, %c6_195, %c3_196] : memref<2x2x22x22xf32, #tpu.memory_space<vmem>>, vector<2x1x16x16xf32>
    %277 = vector.shape_cast %276 : vector<2x1x16x16xf32> to vector<2x16x16xf32>
    %278 = vector.broadcast %275 : f32 to vector<2x16x16xf32>
    %279 = arith.mulf %278, %277 : vector<2x16x16xf32>
    %280 = arith.addf %274, %279 : vector<2x16x16xf32>
    %c46 = arith.constant 46 : index
    %281 = memref.load %arg1[%c46] : memref<98xf32, #tpu.memory_space<smem>>
    %c0_197 = arith.constant 0 : index
    %c0_198 = arith.constant 0 : index
    %c6_199 = arith.constant 6 : index
    %c4_200 = arith.constant 4 : index
    %282 = vector.load %arg4[%c0_197, %c0_198, %c6_199, %c4_200] : memref<2x2x22x22xf32, #tpu.memory_space<vmem>>, vector<2x1x16x16xf32>
    %283 = vector.shape_cast %282 : vector<2x1x16x16xf32> to vector<2x16x16xf32>
    %284 = vector.broadcast %281 : f32 to vector<2x16x16xf32>
    %285 = arith.mulf %284, %283 : vector<2x16x16xf32>
    %286 = arith.addf %280, %285 : vector<2x16x16xf32>
    %c47 = arith.constant 47 : index
    %287 = memref.load %arg1[%c47] : memref<98xf32, #tpu.memory_space<smem>>
    %c0_201 = arith.constant 0 : index
    %c0_202 = arith.constant 0 : index
    %c6_203 = arith.constant 6 : index
    %c5_204 = arith.constant 5 : index
    %288 = vector.load %arg4[%c0_201, %c0_202, %c6_203, %c5_204] : memref<2x2x22x22xf32, #tpu.memory_space<vmem>>, vector<2x1x16x16xf32>
    %289 = vector.shape_cast %288 : vector<2x1x16x16xf32> to vector<2x16x16xf32>
    %290 = vector.broadcast %287 : f32 to vector<2x16x16xf32>
    %291 = arith.mulf %290, %289 : vector<2x16x16xf32>
    %292 = arith.addf %286, %291 : vector<2x16x16xf32>
    %c48 = arith.constant 48 : index
    %293 = memref.load %arg1[%c48] : memref<98xf32, #tpu.memory_space<smem>>
    %c0_205 = arith.constant 0 : index
    %c0_206 = arith.constant 0 : index
    %c6_207 = arith.constant 6 : index
    %c6_208 = arith.constant 6 : index
    %294 = vector.load %arg4[%c0_205, %c0_206, %c6_207, %c6_208] : memref<2x2x22x22xf32, #tpu.memory_space<vmem>>, vector<2x1x16x16xf32>
    %295 = vector.shape_cast %294 : vector<2x1x16x16xf32> to vector<2x16x16xf32>
    %296 = vector.broadcast %293 : f32 to vector<2x16x16xf32>
    %297 = arith.mulf %296, %295 : vector<2x16x16xf32>
    %298 = arith.addf %292, %297 : vector<2x16x16xf32>
    %c49 = arith.constant 49 : index
    %299 = memref.load %arg1[%c49] : memref<98xf32, #tpu.memory_space<smem>>
    %c0_209 = arith.constant 0 : index
    %c1_210 = arith.constant 1 : index
    %c0_211 = arith.constant 0 : index
    %c0_212 = arith.constant 0 : index
    %300 = vector.load %arg4[%c0_209, %c1_210, %c0_211, %c0_212] : memref<2x2x22x22xf32, #tpu.memory_space<vmem>>, vector<2x1x16x16xf32>
    %301 = vector.shape_cast %300 : vector<2x1x16x16xf32> to vector<2x16x16xf32>
    %302 = vector.broadcast %299 : f32 to vector<2x16x16xf32>
    %303 = arith.mulf %302, %301 : vector<2x16x16xf32>
    %304 = arith.addf %298, %303 : vector<2x16x16xf32>
    %c50 = arith.constant 50 : index
    %305 = memref.load %arg1[%c50] : memref<98xf32, #tpu.memory_space<smem>>
    %c0_213 = arith.constant 0 : index
    %c1_214 = arith.constant 1 : index
    %c0_215 = arith.constant 0 : index
    %c1_216 = arith.constant 1 : index
    %306 = vector.load %arg4[%c0_213, %c1_214, %c0_215, %c1_216] : memref<2x2x22x22xf32, #tpu.memory_space<vmem>>, vector<2x1x16x16xf32>
    %307 = vector.shape_cast %306 : vector<2x1x16x16xf32> to vector<2x16x16xf32>
    %308 = vector.broadcast %305 : f32 to vector<2x16x16xf32>
    %309 = arith.mulf %308, %307 : vector<2x16x16xf32>
    %310 = arith.addf %304, %309 : vector<2x16x16xf32>
    %c51 = arith.constant 51 : index
    %311 = memref.load %arg1[%c51] : memref<98xf32, #tpu.memory_space<smem>>
    %c0_217 = arith.constant 0 : index
    %c1_218 = arith.constant 1 : index
    %c0_219 = arith.constant 0 : index
    %c2_220 = arith.constant 2 : index
    %312 = vector.load %arg4[%c0_217, %c1_218, %c0_219, %c2_220] : memref<2x2x22x22xf32, #tpu.memory_space<vmem>>, vector<2x1x16x16xf32>
    %313 = vector.shape_cast %312 : vector<2x1x16x16xf32> to vector<2x16x16xf32>
    %314 = vector.broadcast %311 : f32 to vector<2x16x16xf32>
    %315 = arith.mulf %314, %313 : vector<2x16x16xf32>
    %316 = arith.addf %310, %315 : vector<2x16x16xf32>
    %c52 = arith.constant 52 : index
    %317 = memref.load %arg1[%c52] : memref<98xf32, #tpu.memory_space<smem>>
    %c0_221 = arith.constant 0 : index
    %c1_222 = arith.constant 1 : index
    %c0_223 = arith.constant 0 : index
    %c3_224 = arith.constant 3 : index
    %318 = vector.load %arg4[%c0_221, %c1_222, %c0_223, %c3_224] : memref<2x2x22x22xf32, #tpu.memory_space<vmem>>, vector<2x1x16x16xf32>
    %319 = vector.shape_cast %318 : vector<2x1x16x16xf32> to vector<2x16x16xf32>
    %320 = vector.broadcast %317 : f32 to vector<2x16x16xf32>
    %321 = arith.mulf %320, %319 : vector<2x16x16xf32>
    %322 = arith.addf %316, %321 : vector<2x16x16xf32>
    %c53 = arith.constant 53 : index
    %323 = memref.load %arg1[%c53] : memref<98xf32, #tpu.memory_space<smem>>
    %c0_225 = arith.constant 0 : index
    %c1_226 = arith.constant 1 : index
    %c0_227 = arith.constant 0 : index
    %c4_228 = arith.constant 4 : index
    %324 = vector.load %arg4[%c0_225, %c1_226, %c0_227, %c4_228] : memref<2x2x22x22xf32, #tpu.memory_space<vmem>>, vector<2x1x16x16xf32>
    %325 = vector.shape_cast %324 : vector<2x1x16x16xf32> to vector<2x16x16xf32>
    %326 = vector.broadcast %323 : f32 to vector<2x16x16xf32>
    %327 = arith.mulf %326, %325 : vector<2x16x16xf32>
    %328 = arith.addf %322, %327 : vector<2x16x16xf32>
    %c54 = arith.constant 54 : index
    %329 = memref.load %arg1[%c54] : memref<98xf32, #tpu.memory_space<smem>>
    %c0_229 = arith.constant 0 : index
    %c1_230 = arith.constant 1 : index
    %c0_231 = arith.constant 0 : index
    %c5_232 = arith.constant 5 : index
    %330 = vector.load %arg4[%c0_229, %c1_230, %c0_231, %c5_232] : memref<2x2x22x22xf32, #tpu.memory_space<vmem>>, vector<2x1x16x16xf32>
    %331 = vector.shape_cast %330 : vector<2x1x16x16xf32> to vector<2x16x16xf32>
    %332 = vector.broadcast %329 : f32 to vector<2x16x16xf32>
    %333 = arith.mulf %332, %331 : vector<2x16x16xf32>
    %334 = arith.addf %328, %333 : vector<2x16x16xf32>
    %c55 = arith.constant 55 : index
    %335 = memref.load %arg1[%c55] : memref<98xf32, #tpu.memory_space<smem>>
    %c0_233 = arith.constant 0 : index
    %c1_234 = arith.constant 1 : index
    %c0_235 = arith.constant 0 : index
    %c6_236 = arith.constant 6 : index
    %336 = vector.load %arg4[%c0_233, %c1_234, %c0_235, %c6_236] : memref<2x2x22x22xf32, #tpu.memory_space<vmem>>, vector<2x1x16x16xf32>
    %337 = vector.shape_cast %336 : vector<2x1x16x16xf32> to vector<2x16x16xf32>
    %338 = vector.broadcast %335 : f32 to vector<2x16x16xf32>
    %339 = arith.mulf %338, %337 : vector<2x16x16xf32>
    %340 = arith.addf %334, %339 : vector<2x16x16xf32>
    %c56 = arith.constant 56 : index
    %341 = memref.load %arg1[%c56] : memref<98xf32, #tpu.memory_space<smem>>
    %c0_237 = arith.constant 0 : index
    %c1_238 = arith.constant 1 : index
    %c1_239 = arith.constant 1 : index
    %c0_240 = arith.constant 0 : index
    %342 = vector.load %arg4[%c0_237, %c1_238, %c1_239, %c0_240] : memref<2x2x22x22xf32, #tpu.memory_space<vmem>>, vector<2x1x16x16xf32>
    %343 = vector.shape_cast %342 : vector<2x1x16x16xf32> to vector<2x16x16xf32>
    %344 = vector.broadcast %341 : f32 to vector<2x16x16xf32>
    %345 = arith.mulf %344, %343 : vector<2x16x16xf32>
    %346 = arith.addf %340, %345 : vector<2x16x16xf32>
    %c57 = arith.constant 57 : index
    %347 = memref.load %arg1[%c57] : memref<98xf32, #tpu.memory_space<smem>>
    %c0_241 = arith.constant 0 : index
    %c1_242 = arith.constant 1 : index
    %c1_243 = arith.constant 1 : index
    %c1_244 = arith.constant 1 : index
    %348 = vector.load %arg4[%c0_241, %c1_242, %c1_243, %c1_244] : memref<2x2x22x22xf32, #tpu.memory_space<vmem>>, vector<2x1x16x16xf32>
    %349 = vector.shape_cast %348 : vector<2x1x16x16xf32> to vector<2x16x16xf32>
    %350 = vector.broadcast %347 : f32 to vector<2x16x16xf32>
    %351 = arith.mulf %350, %349 : vector<2x16x16xf32>
    %352 = arith.addf %346, %351 : vector<2x16x16xf32>
    %c58 = arith.constant 58 : index
    %353 = memref.load %arg1[%c58] : memref<98xf32, #tpu.memory_space<smem>>
    %c0_245 = arith.constant 0 : index
    %c1_246 = arith.constant 1 : index
    %c1_247 = arith.constant 1 : index
    %c2_248 = arith.constant 2 : index
    %354 = vector.load %arg4[%c0_245, %c1_246, %c1_247, %c2_248] : memref<2x2x22x22xf32, #tpu.memory_space<vmem>>, vector<2x1x16x16xf32>
    %355 = vector.shape_cast %354 : vector<2x1x16x16xf32> to vector<2x16x16xf32>
    %356 = vector.broadcast %353 : f32 to vector<2x16x16xf32>
    %357 = arith.mulf %356, %355 : vector<2x16x16xf32>
    %358 = arith.addf %352, %357 : vector<2x16x16xf32>
    %c59 = arith.constant 59 : index
    %359 = memref.load %arg1[%c59] : memref<98xf32, #tpu.memory_space<smem>>
    %c0_249 = arith.constant 0 : index
    %c1_250 = arith.constant 1 : index
    %c1_251 = arith.constant 1 : index
    %c3_252 = arith.constant 3 : index
    %360 = vector.load %arg4[%c0_249, %c1_250, %c1_251, %c3_252] : memref<2x2x22x22xf32, #tpu.memory_space<vmem>>, vector<2x1x16x16xf32>
    %361 = vector.shape_cast %360 : vector<2x1x16x16xf32> to vector<2x16x16xf32>
    %362 = vector.broadcast %359 : f32 to vector<2x16x16xf32>
    %363 = arith.mulf %362, %361 : vector<2x16x16xf32>
    %364 = arith.addf %358, %363 : vector<2x16x16xf32>
    %c60 = arith.constant 60 : index
    %365 = memref.load %arg1[%c60] : memref<98xf32, #tpu.memory_space<smem>>
    %c0_253 = arith.constant 0 : index
    %c1_254 = arith.constant 1 : index
    %c1_255 = arith.constant 1 : index
    %c4_256 = arith.constant 4 : index
    %366 = vector.load %arg4[%c0_253, %c1_254, %c1_255, %c4_256] : memref<2x2x22x22xf32, #tpu.memory_space<vmem>>, vector<2x1x16x16xf32>
    %367 = vector.shape_cast %366 : vector<2x1x16x16xf32> to vector<2x16x16xf32>
    %368 = vector.broadcast %365 : f32 to vector<2x16x16xf32>
    %369 = arith.mulf %368, %367 : vector<2x16x16xf32>
    %370 = arith.addf %364, %369 : vector<2x16x16xf32>
    %c61 = arith.constant 61 : index
    %371 = memref.load %arg1[%c61] : memref<98xf32, #tpu.memory_space<smem>>
    %c0_257 = arith.constant 0 : index
    %c1_258 = arith.constant 1 : index
    %c1_259 = arith.constant 1 : index
    %c5_260 = arith.constant 5 : index
    %372 = vector.load %arg4[%c0_257, %c1_258, %c1_259, %c5_260] : memref<2x2x22x22xf32, #tpu.memory_space<vmem>>, vector<2x1x16x16xf32>
    %373 = vector.shape_cast %372 : vector<2x1x16x16xf32> to vector<2x16x16xf32>
    %374 = vector.broadcast %371 : f32 to vector<2x16x16xf32>
    %375 = arith.mulf %374, %373 : vector<2x16x16xf32>
    %376 = arith.addf %370, %375 : vector<2x16x16xf32>
    %c62 = arith.constant 62 : index
    %377 = memref.load %arg1[%c62] : memref<98xf32, #tpu.memory_space<smem>>
    %c0_261 = arith.constant 0 : index
    %c1_262 = arith.constant 1 : index
    %c1_263 = arith.constant 1 : index
    %c6_264 = arith.constant 6 : index
    %378 = vector.load %arg4[%c0_261, %c1_262, %c1_263, %c6_264] : memref<2x2x22x22xf32, #tpu.memory_space<vmem>>, vector<2x1x16x16xf32>
    %379 = vector.shape_cast %378 : vector<2x1x16x16xf32> to vector<2x16x16xf32>
    %380 = vector.broadcast %377 : f32 to vector<2x16x16xf32>
    %381 = arith.mulf %380, %379 : vector<2x16x16xf32>
    %382 = arith.addf %376, %381 : vector<2x16x16xf32>
    %c63 = arith.constant 63 : index
    %383 = memref.load %arg1[%c63] : memref<98xf32, #tpu.memory_space<smem>>
    %c0_265 = arith.constant 0 : index
    %c1_266 = arith.constant 1 : index
    %c2_267 = arith.constant 2 : index
    %c0_268 = arith.constant 0 : index
    %384 = vector.load %arg4[%c0_265, %c1_266, %c2_267, %c0_268] : memref<2x2x22x22xf32, #tpu.memory_space<vmem>>, vector<2x1x16x16xf32>
    %385 = vector.shape_cast %384 : vector<2x1x16x16xf32> to vector<2x16x16xf32>
    %386 = vector.broadcast %383 : f32 to vector<2x16x16xf32>
    %387 = arith.mulf %386, %385 : vector<2x16x16xf32>
    %388 = arith.addf %382, %387 : vector<2x16x16xf32>
    %c64 = arith.constant 64 : index
    %389 = memref.load %arg1[%c64] : memref<98xf32, #tpu.memory_space<smem>>
    %c0_269 = arith.constant 0 : index
    %c1_270 = arith.constant 1 : index
    %c2_271 = arith.constant 2 : index
    %c1_272 = arith.constant 1 : index
    %390 = vector.load %arg4[%c0_269, %c1_270, %c2_271, %c1_272] : memref<2x2x22x22xf32, #tpu.memory_space<vmem>>, vector<2x1x16x16xf32>
    %391 = vector.shape_cast %390 : vector<2x1x16x16xf32> to vector<2x16x16xf32>
    %392 = vector.broadcast %389 : f32 to vector<2x16x16xf32>
    %393 = arith.mulf %392, %391 : vector<2x16x16xf32>
    %394 = arith.addf %388, %393 : vector<2x16x16xf32>
    %c65 = arith.constant 65 : index
    %395 = memref.load %arg1[%c65] : memref<98xf32, #tpu.memory_space<smem>>
    %c0_273 = arith.constant 0 : index
    %c1_274 = arith.constant 1 : index
    %c2_275 = arith.constant 2 : index
    %c2_276 = arith.constant 2 : index
    %396 = vector.load %arg4[%c0_273, %c1_274, %c2_275, %c2_276] : memref<2x2x22x22xf32, #tpu.memory_space<vmem>>, vector<2x1x16x16xf32>
    %397 = vector.shape_cast %396 : vector<2x1x16x16xf32> to vector<2x16x16xf32>
    %398 = vector.broadcast %395 : f32 to vector<2x16x16xf32>
    %399 = arith.mulf %398, %397 : vector<2x16x16xf32>
    %400 = arith.addf %394, %399 : vector<2x16x16xf32>
    %c66 = arith.constant 66 : index
    %401 = memref.load %arg1[%c66] : memref<98xf32, #tpu.memory_space<smem>>
    %c0_277 = arith.constant 0 : index
    %c1_278 = arith.constant 1 : index
    %c2_279 = arith.constant 2 : index
    %c3_280 = arith.constant 3 : index
    %402 = vector.load %arg4[%c0_277, %c1_278, %c2_279, %c3_280] : memref<2x2x22x22xf32, #tpu.memory_space<vmem>>, vector<2x1x16x16xf32>
    %403 = vector.shape_cast %402 : vector<2x1x16x16xf32> to vector<2x16x16xf32>
    %404 = vector.broadcast %401 : f32 to vector<2x16x16xf32>
    %405 = arith.mulf %404, %403 : vector<2x16x16xf32>
    %406 = arith.addf %400, %405 : vector<2x16x16xf32>
    %c67 = arith.constant 67 : index
    %407 = memref.load %arg1[%c67] : memref<98xf32, #tpu.memory_space<smem>>
    %c0_281 = arith.constant 0 : index
    %c1_282 = arith.constant 1 : index
    %c2_283 = arith.constant 2 : index
    %c4_284 = arith.constant 4 : index
    %408 = vector.load %arg4[%c0_281, %c1_282, %c2_283, %c4_284] : memref<2x2x22x22xf32, #tpu.memory_space<vmem>>, vector<2x1x16x16xf32>
    %409 = vector.shape_cast %408 : vector<2x1x16x16xf32> to vector<2x16x16xf32>
    %410 = vector.broadcast %407 : f32 to vector<2x16x16xf32>
    %411 = arith.mulf %410, %409 : vector<2x16x16xf32>
    %412 = arith.addf %406, %411 : vector<2x16x16xf32>
    %c68 = arith.constant 68 : index
    %413 = memref.load %arg1[%c68] : memref<98xf32, #tpu.memory_space<smem>>
    %c0_285 = arith.constant 0 : index
    %c1_286 = arith.constant 1 : index
    %c2_287 = arith.constant 2 : index
    %c5_288 = arith.constant 5 : index
    %414 = vector.load %arg4[%c0_285, %c1_286, %c2_287, %c5_288] : memref<2x2x22x22xf32, #tpu.memory_space<vmem>>, vector<2x1x16x16xf32>
    %415 = vector.shape_cast %414 : vector<2x1x16x16xf32> to vector<2x16x16xf32>
    %416 = vector.broadcast %413 : f32 to vector<2x16x16xf32>
    %417 = arith.mulf %416, %415 : vector<2x16x16xf32>
    %418 = arith.addf %412, %417 : vector<2x16x16xf32>
    %c69 = arith.constant 69 : index
    %419 = memref.load %arg1[%c69] : memref<98xf32, #tpu.memory_space<smem>>
    %c0_289 = arith.constant 0 : index
    %c1_290 = arith.constant 1 : index
    %c2_291 = arith.constant 2 : index
    %c6_292 = arith.constant 6 : index
    %420 = vector.load %arg4[%c0_289, %c1_290, %c2_291, %c6_292] : memref<2x2x22x22xf32, #tpu.memory_space<vmem>>, vector<2x1x16x16xf32>
    %421 = vector.shape_cast %420 : vector<2x1x16x16xf32> to vector<2x16x16xf32>
    %422 = vector.broadcast %419 : f32 to vector<2x16x16xf32>
    %423 = arith.mulf %422, %421 : vector<2x16x16xf32>
    %424 = arith.addf %418, %423 : vector<2x16x16xf32>
    %c70 = arith.constant 70 : index
    %425 = memref.load %arg1[%c70] : memref<98xf32, #tpu.memory_space<smem>>
    %c0_293 = arith.constant 0 : index
    %c1_294 = arith.constant 1 : index
    %c3_295 = arith.constant 3 : index
    %c0_296 = arith.constant 0 : index
    %426 = vector.load %arg4[%c0_293, %c1_294, %c3_295, %c0_296] : memref<2x2x22x22xf32, #tpu.memory_space<vmem>>, vector<2x1x16x16xf32>
    %427 = vector.shape_cast %426 : vector<2x1x16x16xf32> to vector<2x16x16xf32>
    %428 = vector.broadcast %425 : f32 to vector<2x16x16xf32>
    %429 = arith.mulf %428, %427 : vector<2x16x16xf32>
    %430 = arith.addf %424, %429 : vector<2x16x16xf32>
    %c71 = arith.constant 71 : index
    %431 = memref.load %arg1[%c71] : memref<98xf32, #tpu.memory_space<smem>>
    %c0_297 = arith.constant 0 : index
    %c1_298 = arith.constant 1 : index
    %c3_299 = arith.constant 3 : index
    %c1_300 = arith.constant 1 : index
    %432 = vector.load %arg4[%c0_297, %c1_298, %c3_299, %c1_300] : memref<2x2x22x22xf32, #tpu.memory_space<vmem>>, vector<2x1x16x16xf32>
    %433 = vector.shape_cast %432 : vector<2x1x16x16xf32> to vector<2x16x16xf32>
    %434 = vector.broadcast %431 : f32 to vector<2x16x16xf32>
    %435 = arith.mulf %434, %433 : vector<2x16x16xf32>
    %436 = arith.addf %430, %435 : vector<2x16x16xf32>
    %c72 = arith.constant 72 : index
    %437 = memref.load %arg1[%c72] : memref<98xf32, #tpu.memory_space<smem>>
    %c0_301 = arith.constant 0 : index
    %c1_302 = arith.constant 1 : index
    %c3_303 = arith.constant 3 : index
    %c2_304 = arith.constant 2 : index
    %438 = vector.load %arg4[%c0_301, %c1_302, %c3_303, %c2_304] : memref<2x2x22x22xf32, #tpu.memory_space<vmem>>, vector<2x1x16x16xf32>
    %439 = vector.shape_cast %438 : vector<2x1x16x16xf32> to vector<2x16x16xf32>
    %440 = vector.broadcast %437 : f32 to vector<2x16x16xf32>
    %441 = arith.mulf %440, %439 : vector<2x16x16xf32>
    %442 = arith.addf %436, %441 : vector<2x16x16xf32>
    %c73 = arith.constant 73 : index
    %443 = memref.load %arg1[%c73] : memref<98xf32, #tpu.memory_space<smem>>
    %c0_305 = arith.constant 0 : index
    %c1_306 = arith.constant 1 : index
    %c3_307 = arith.constant 3 : index
    %c3_308 = arith.constant 3 : index
    %444 = vector.load %arg4[%c0_305, %c1_306, %c3_307, %c3_308] : memref<2x2x22x22xf32, #tpu.memory_space<vmem>>, vector<2x1x16x16xf32>
    %445 = vector.shape_cast %444 : vector<2x1x16x16xf32> to vector<2x16x16xf32>
    %446 = vector.broadcast %443 : f32 to vector<2x16x16xf32>
    %447 = arith.mulf %446, %445 : vector<2x16x16xf32>
    %448 = arith.addf %442, %447 : vector<2x16x16xf32>
    %c74 = arith.constant 74 : index
    %449 = memref.load %arg1[%c74] : memref<98xf32, #tpu.memory_space<smem>>
    %c0_309 = arith.constant 0 : index
    %c1_310 = arith.constant 1 : index
    %c3_311 = arith.constant 3 : index
    %c4_312 = arith.constant 4 : index
    %450 = vector.load %arg4[%c0_309, %c1_310, %c3_311, %c4_312] : memref<2x2x22x22xf32, #tpu.memory_space<vmem>>, vector<2x1x16x16xf32>
    %451 = vector.shape_cast %450 : vector<2x1x16x16xf32> to vector<2x16x16xf32>
    %452 = vector.broadcast %449 : f32 to vector<2x16x16xf32>
    %453 = arith.mulf %452, %451 : vector<2x16x16xf32>
    %454 = arith.addf %448, %453 : vector<2x16x16xf32>
    %c75 = arith.constant 75 : index
    %455 = memref.load %arg1[%c75] : memref<98xf32, #tpu.memory_space<smem>>
    %c0_313 = arith.constant 0 : index
    %c1_314 = arith.constant 1 : index
    %c3_315 = arith.constant 3 : index
    %c5_316 = arith.constant 5 : index
    %456 = vector.load %arg4[%c0_313, %c1_314, %c3_315, %c5_316] : memref<2x2x22x22xf32, #tpu.memory_space<vmem>>, vector<2x1x16x16xf32>
    %457 = vector.shape_cast %456 : vector<2x1x16x16xf32> to vector<2x16x16xf32>
    %458 = vector.broadcast %455 : f32 to vector<2x16x16xf32>
    %459 = arith.mulf %458, %457 : vector<2x16x16xf32>
    %460 = arith.addf %454, %459 : vector<2x16x16xf32>
    %c76 = arith.constant 76 : index
    %461 = memref.load %arg1[%c76] : memref<98xf32, #tpu.memory_space<smem>>
    %c0_317 = arith.constant 0 : index
    %c1_318 = arith.constant 1 : index
    %c3_319 = arith.constant 3 : index
    %c6_320 = arith.constant 6 : index
    %462 = vector.load %arg4[%c0_317, %c1_318, %c3_319, %c6_320] : memref<2x2x22x22xf32, #tpu.memory_space<vmem>>, vector<2x1x16x16xf32>
    %463 = vector.shape_cast %462 : vector<2x1x16x16xf32> to vector<2x16x16xf32>
    %464 = vector.broadcast %461 : f32 to vector<2x16x16xf32>
    %465 = arith.mulf %464, %463 : vector<2x16x16xf32>
    %466 = arith.addf %460, %465 : vector<2x16x16xf32>
    %c77 = arith.constant 77 : index
    %467 = memref.load %arg1[%c77] : memref<98xf32, #tpu.memory_space<smem>>
    %c0_321 = arith.constant 0 : index
    %c1_322 = arith.constant 1 : index
    %c4_323 = arith.constant 4 : index
    %c0_324 = arith.constant 0 : index
    %468 = vector.load %arg4[%c0_321, %c1_322, %c4_323, %c0_324] : memref<2x2x22x22xf32, #tpu.memory_space<vmem>>, vector<2x1x16x16xf32>
    %469 = vector.shape_cast %468 : vector<2x1x16x16xf32> to vector<2x16x16xf32>
    %470 = vector.broadcast %467 : f32 to vector<2x16x16xf32>
    %471 = arith.mulf %470, %469 : vector<2x16x16xf32>
    %472 = arith.addf %466, %471 : vector<2x16x16xf32>
    %c78 = arith.constant 78 : index
    %473 = memref.load %arg1[%c78] : memref<98xf32, #tpu.memory_space<smem>>
    %c0_325 = arith.constant 0 : index
    %c1_326 = arith.constant 1 : index
    %c4_327 = arith.constant 4 : index
    %c1_328 = arith.constant 1 : index
    %474 = vector.load %arg4[%c0_325, %c1_326, %c4_327, %c1_328] : memref<2x2x22x22xf32, #tpu.memory_space<vmem>>, vector<2x1x16x16xf32>
    %475 = vector.shape_cast %474 : vector<2x1x16x16xf32> to vector<2x16x16xf32>
    %476 = vector.broadcast %473 : f32 to vector<2x16x16xf32>
    %477 = arith.mulf %476, %475 : vector<2x16x16xf32>
    %478 = arith.addf %472, %477 : vector<2x16x16xf32>
    %c79 = arith.constant 79 : index
    %479 = memref.load %arg1[%c79] : memref<98xf32, #tpu.memory_space<smem>>
    %c0_329 = arith.constant 0 : index
    %c1_330 = arith.constant 1 : index
    %c4_331 = arith.constant 4 : index
    %c2_332 = arith.constant 2 : index
    %480 = vector.load %arg4[%c0_329, %c1_330, %c4_331, %c2_332] : memref<2x2x22x22xf32, #tpu.memory_space<vmem>>, vector<2x1x16x16xf32>
    %481 = vector.shape_cast %480 : vector<2x1x16x16xf32> to vector<2x16x16xf32>
    %482 = vector.broadcast %479 : f32 to vector<2x16x16xf32>
    %483 = arith.mulf %482, %481 : vector<2x16x16xf32>
    %484 = arith.addf %478, %483 : vector<2x16x16xf32>
    %c80 = arith.constant 80 : index
    %485 = memref.load %arg1[%c80] : memref<98xf32, #tpu.memory_space<smem>>
    %c0_333 = arith.constant 0 : index
    %c1_334 = arith.constant 1 : index
    %c4_335 = arith.constant 4 : index
    %c3_336 = arith.constant 3 : index
    %486 = vector.load %arg4[%c0_333, %c1_334, %c4_335, %c3_336] : memref<2x2x22x22xf32, #tpu.memory_space<vmem>>, vector<2x1x16x16xf32>
    %487 = vector.shape_cast %486 : vector<2x1x16x16xf32> to vector<2x16x16xf32>
    %488 = vector.broadcast %485 : f32 to vector<2x16x16xf32>
    %489 = arith.mulf %488, %487 : vector<2x16x16xf32>
    %490 = arith.addf %484, %489 : vector<2x16x16xf32>
    %c81 = arith.constant 81 : index
    %491 = memref.load %arg1[%c81] : memref<98xf32, #tpu.memory_space<smem>>
    %c0_337 = arith.constant 0 : index
    %c1_338 = arith.constant 1 : index
    %c4_339 = arith.constant 4 : index
    %c4_340 = arith.constant 4 : index
    %492 = vector.load %arg4[%c0_337, %c1_338, %c4_339, %c4_340] : memref<2x2x22x22xf32, #tpu.memory_space<vmem>>, vector<2x1x16x16xf32>
    %493 = vector.shape_cast %492 : vector<2x1x16x16xf32> to vector<2x16x16xf32>
    %494 = vector.broadcast %491 : f32 to vector<2x16x16xf32>
    %495 = arith.mulf %494, %493 : vector<2x16x16xf32>
    %496 = arith.addf %490, %495 : vector<2x16x16xf32>
    %c82 = arith.constant 82 : index
    %497 = memref.load %arg1[%c82] : memref<98xf32, #tpu.memory_space<smem>>
    %c0_341 = arith.constant 0 : index
    %c1_342 = arith.constant 1 : index
    %c4_343 = arith.constant 4 : index
    %c5_344 = arith.constant 5 : index
    %498 = vector.load %arg4[%c0_341, %c1_342, %c4_343, %c5_344] : memref<2x2x22x22xf32, #tpu.memory_space<vmem>>, vector<2x1x16x16xf32>
    %499 = vector.shape_cast %498 : vector<2x1x16x16xf32> to vector<2x16x16xf32>
    %500 = vector.broadcast %497 : f32 to vector<2x16x16xf32>
    %501 = arith.mulf %500, %499 : vector<2x16x16xf32>
    %502 = arith.addf %496, %501 : vector<2x16x16xf32>
    %c83 = arith.constant 83 : index
    %503 = memref.load %arg1[%c83] : memref<98xf32, #tpu.memory_space<smem>>
    %c0_345 = arith.constant 0 : index
    %c1_346 = arith.constant 1 : index
    %c4_347 = arith.constant 4 : index
    %c6_348 = arith.constant 6 : index
    %504 = vector.load %arg4[%c0_345, %c1_346, %c4_347, %c6_348] : memref<2x2x22x22xf32, #tpu.memory_space<vmem>>, vector<2x1x16x16xf32>
    %505 = vector.shape_cast %504 : vector<2x1x16x16xf32> to vector<2x16x16xf32>
    %506 = vector.broadcast %503 : f32 to vector<2x16x16xf32>
    %507 = arith.mulf %506, %505 : vector<2x16x16xf32>
    %508 = arith.addf %502, %507 : vector<2x16x16xf32>
    %c84 = arith.constant 84 : index
    %509 = memref.load %arg1[%c84] : memref<98xf32, #tpu.memory_space<smem>>
    %c0_349 = arith.constant 0 : index
    %c1_350 = arith.constant 1 : index
    %c5_351 = arith.constant 5 : index
    %c0_352 = arith.constant 0 : index
    %510 = vector.load %arg4[%c0_349, %c1_350, %c5_351, %c0_352] : memref<2x2x22x22xf32, #tpu.memory_space<vmem>>, vector<2x1x16x16xf32>
    %511 = vector.shape_cast %510 : vector<2x1x16x16xf32> to vector<2x16x16xf32>
    %512 = vector.broadcast %509 : f32 to vector<2x16x16xf32>
    %513 = arith.mulf %512, %511 : vector<2x16x16xf32>
    %514 = arith.addf %508, %513 : vector<2x16x16xf32>
    %c85 = arith.constant 85 : index
    %515 = memref.load %arg1[%c85] : memref<98xf32, #tpu.memory_space<smem>>
    %c0_353 = arith.constant 0 : index
    %c1_354 = arith.constant 1 : index
    %c5_355 = arith.constant 5 : index
    %c1_356 = arith.constant 1 : index
    %516 = vector.load %arg4[%c0_353, %c1_354, %c5_355, %c1_356] : memref<2x2x22x22xf32, #tpu.memory_space<vmem>>, vector<2x1x16x16xf32>
    %517 = vector.shape_cast %516 : vector<2x1x16x16xf32> to vector<2x16x16xf32>
    %518 = vector.broadcast %515 : f32 to vector<2x16x16xf32>
    %519 = arith.mulf %518, %517 : vector<2x16x16xf32>
    %520 = arith.addf %514, %519 : vector<2x16x16xf32>
    %c86 = arith.constant 86 : index
    %521 = memref.load %arg1[%c86] : memref<98xf32, #tpu.memory_space<smem>>
    %c0_357 = arith.constant 0 : index
    %c1_358 = arith.constant 1 : index
    %c5_359 = arith.constant 5 : index
    %c2_360 = arith.constant 2 : index
    %522 = vector.load %arg4[%c0_357, %c1_358, %c5_359, %c2_360] : memref<2x2x22x22xf32, #tpu.memory_space<vmem>>, vector<2x1x16x16xf32>
    %523 = vector.shape_cast %522 : vector<2x1x16x16xf32> to vector<2x16x16xf32>
    %524 = vector.broadcast %521 : f32 to vector<2x16x16xf32>
    %525 = arith.mulf %524, %523 : vector<2x16x16xf32>
    %526 = arith.addf %520, %525 : vector<2x16x16xf32>
    %c87 = arith.constant 87 : index
    %527 = memref.load %arg1[%c87] : memref<98xf32, #tpu.memory_space<smem>>
    %c0_361 = arith.constant 0 : index
    %c1_362 = arith.constant 1 : index
    %c5_363 = arith.constant 5 : index
    %c3_364 = arith.constant 3 : index
    %528 = vector.load %arg4[%c0_361, %c1_362, %c5_363, %c3_364] : memref<2x2x22x22xf32, #tpu.memory_space<vmem>>, vector<2x1x16x16xf32>
    %529 = vector.shape_cast %528 : vector<2x1x16x16xf32> to vector<2x16x16xf32>
    %530 = vector.broadcast %527 : f32 to vector<2x16x16xf32>
    %531 = arith.mulf %530, %529 : vector<2x16x16xf32>
    %532 = arith.addf %526, %531 : vector<2x16x16xf32>
    %c88 = arith.constant 88 : index
    %533 = memref.load %arg1[%c88] : memref<98xf32, #tpu.memory_space<smem>>
    %c0_365 = arith.constant 0 : index
    %c1_366 = arith.constant 1 : index
    %c5_367 = arith.constant 5 : index
    %c4_368 = arith.constant 4 : index
    %534 = vector.load %arg4[%c0_365, %c1_366, %c5_367, %c4_368] : memref<2x2x22x22xf32, #tpu.memory_space<vmem>>, vector<2x1x16x16xf32>
    %535 = vector.shape_cast %534 : vector<2x1x16x16xf32> to vector<2x16x16xf32>
    %536 = vector.broadcast %533 : f32 to vector<2x16x16xf32>
    %537 = arith.mulf %536, %535 : vector<2x16x16xf32>
    %538 = arith.addf %532, %537 : vector<2x16x16xf32>
    %c89 = arith.constant 89 : index
    %539 = memref.load %arg1[%c89] : memref<98xf32, #tpu.memory_space<smem>>
    %c0_369 = arith.constant 0 : index
    %c1_370 = arith.constant 1 : index
    %c5_371 = arith.constant 5 : index
    %c5_372 = arith.constant 5 : index
    %540 = vector.load %arg4[%c0_369, %c1_370, %c5_371, %c5_372] : memref<2x2x22x22xf32, #tpu.memory_space<vmem>>, vector<2x1x16x16xf32>
    %541 = vector.shape_cast %540 : vector<2x1x16x16xf32> to vector<2x16x16xf32>
    %542 = vector.broadcast %539 : f32 to vector<2x16x16xf32>
    %543 = arith.mulf %542, %541 : vector<2x16x16xf32>
    %544 = arith.addf %538, %543 : vector<2x16x16xf32>
    %c90 = arith.constant 90 : index
    %545 = memref.load %arg1[%c90] : memref<98xf32, #tpu.memory_space<smem>>
    %c0_373 = arith.constant 0 : index
    %c1_374 = arith.constant 1 : index
    %c5_375 = arith.constant 5 : index
    %c6_376 = arith.constant 6 : index
    %546 = vector.load %arg4[%c0_373, %c1_374, %c5_375, %c6_376] : memref<2x2x22x22xf32, #tpu.memory_space<vmem>>, vector<2x1x16x16xf32>
    %547 = vector.shape_cast %546 : vector<2x1x16x16xf32> to vector<2x16x16xf32>
    %548 = vector.broadcast %545 : f32 to vector<2x16x16xf32>
    %549 = arith.mulf %548, %547 : vector<2x16x16xf32>
    %550 = arith.addf %544, %549 : vector<2x16x16xf32>
    %c91 = arith.constant 91 : index
    %551 = memref.load %arg1[%c91] : memref<98xf32, #tpu.memory_space<smem>>
    %c0_377 = arith.constant 0 : index
    %c1_378 = arith.constant 1 : index
    %c6_379 = arith.constant 6 : index
    %c0_380 = arith.constant 0 : index
    %552 = vector.load %arg4[%c0_377, %c1_378, %c6_379, %c0_380] : memref<2x2x22x22xf32, #tpu.memory_space<vmem>>, vector<2x1x16x16xf32>
    %553 = vector.shape_cast %552 : vector<2x1x16x16xf32> to vector<2x16x16xf32>
    %554 = vector.broadcast %551 : f32 to vector<2x16x16xf32>
    %555 = arith.mulf %554, %553 : vector<2x16x16xf32>
    %556 = arith.addf %550, %555 : vector<2x16x16xf32>
    %c92 = arith.constant 92 : index
    %557 = memref.load %arg1[%c92] : memref<98xf32, #tpu.memory_space<smem>>
    %c0_381 = arith.constant 0 : index
    %c1_382 = arith.constant 1 : index
    %c6_383 = arith.constant 6 : index
    %c1_384 = arith.constant 1 : index
    %558 = vector.load %arg4[%c0_381, %c1_382, %c6_383, %c1_384] : memref<2x2x22x22xf32, #tpu.memory_space<vmem>>, vector<2x1x16x16xf32>
    %559 = vector.shape_cast %558 : vector<2x1x16x16xf32> to vector<2x16x16xf32>
    %560 = vector.broadcast %557 : f32 to vector<2x16x16xf32>
    %561 = arith.mulf %560, %559 : vector<2x16x16xf32>
    %562 = arith.addf %556, %561 : vector<2x16x16xf32>
    %c93 = arith.constant 93 : index
    %563 = memref.load %arg1[%c93] : memref<98xf32, #tpu.memory_space<smem>>
    %c0_385 = arith.constant 0 : index
    %c1_386 = arith.constant 1 : index
    %c6_387 = arith.constant 6 : index
    %c2_388 = arith.constant 2 : index
    %564 = vector.load %arg4[%c0_385, %c1_386, %c6_387, %c2_388] : memref<2x2x22x22xf32, #tpu.memory_space<vmem>>, vector<2x1x16x16xf32>
    %565 = vector.shape_cast %564 : vector<2x1x16x16xf32> to vector<2x16x16xf32>
    %566 = vector.broadcast %563 : f32 to vector<2x16x16xf32>
    %567 = arith.mulf %566, %565 : vector<2x16x16xf32>
    %568 = arith.addf %562, %567 : vector<2x16x16xf32>
    %c94 = arith.constant 94 : index
    %569 = memref.load %arg1[%c94] : memref<98xf32, #tpu.memory_space<smem>>
    %c0_389 = arith.constant 0 : index
    %c1_390 = arith.constant 1 : index
    %c6_391 = arith.constant 6 : index
    %c3_392 = arith.constant 3 : index
    %570 = vector.load %arg4[%c0_389, %c1_390, %c6_391, %c3_392] : memref<2x2x22x22xf32, #tpu.memory_space<vmem>>, vector<2x1x16x16xf32>
    %571 = vector.shape_cast %570 : vector<2x1x16x16xf32> to vector<2x16x16xf32>
    %572 = vector.broadcast %569 : f32 to vector<2x16x16xf32>
    %573 = arith.mulf %572, %571 : vector<2x16x16xf32>
    %574 = arith.addf %568, %573 : vector<2x16x16xf32>
    %c95 = arith.constant 95 : index
    %575 = memref.load %arg1[%c95] : memref<98xf32, #tpu.memory_space<smem>>
    %c0_393 = arith.constant 0 : index
    %c1_394 = arith.constant 1 : index
    %c6_395 = arith.constant 6 : index
    %c4_396 = arith.constant 4 : index
    %576 = vector.load %arg4[%c0_393, %c1_394, %c6_395, %c4_396] : memref<2x2x22x22xf32, #tpu.memory_space<vmem>>, vector<2x1x16x16xf32>
    %577 = vector.shape_cast %576 : vector<2x1x16x16xf32> to vector<2x16x16xf32>
    %578 = vector.broadcast %575 : f32 to vector<2x16x16xf32>
    %579 = arith.mulf %578, %577 : vector<2x16x16xf32>
    %580 = arith.addf %574, %579 : vector<2x16x16xf32>
    %c96 = arith.constant 96 : index
    %581 = memref.load %arg1[%c96] : memref<98xf32, #tpu.memory_space<smem>>
    %c0_397 = arith.constant 0 : index
    %c1_398 = arith.constant 1 : index
    %c6_399 = arith.constant 6 : index
    %c5_400 = arith.constant 5 : index
    %582 = vector.load %arg4[%c0_397, %c1_398, %c6_399, %c5_400] : memref<2x2x22x22xf32, #tpu.memory_space<vmem>>, vector<2x1x16x16xf32>
    %583 = vector.shape_cast %582 : vector<2x1x16x16xf32> to vector<2x16x16xf32>
    %584 = vector.broadcast %581 : f32 to vector<2x16x16xf32>
    %585 = arith.mulf %584, %583 : vector<2x16x16xf32>
    %586 = arith.addf %580, %585 : vector<2x16x16xf32>
    %c97 = arith.constant 97 : index
    %587 = memref.load %arg1[%c97] : memref<98xf32, #tpu.memory_space<smem>>
    %c0_401 = arith.constant 0 : index
    %c1_402 = arith.constant 1 : index
    %c6_403 = arith.constant 6 : index
    %c6_404 = arith.constant 6 : index
    %588 = vector.load %arg4[%c0_401, %c1_402, %c6_403, %c6_404] : memref<2x2x22x22xf32, #tpu.memory_space<vmem>>, vector<2x1x16x16xf32>
    %589 = vector.shape_cast %588 : vector<2x1x16x16xf32> to vector<2x16x16xf32>
    %590 = vector.broadcast %587 : f32 to vector<2x16x16xf32>
    %591 = arith.mulf %590, %589 : vector<2x16x16xf32>
    %592 = arith.addf %586, %591 : vector<2x16x16xf32>
    %593 = arith.negf %592 : vector<2x16x16xf32>
    %594 = math.exp %593 : vector<2x16x16xf32>
    %cst_405 = arith.constant 1.000000e+00 : f32
    %595 = vector.broadcast %cst_405 : f32 to vector<2x16x16xf32>
    %596 = arith.addf %595, %594 : vector<2x16x16xf32>
    %597 = arith.divf %595, %596 : vector<2x16x16xf32>
    %c0_406 = arith.constant 0 : index
    %c0_407 = arith.constant 0 : index
    %c0_408 = arith.constant 0 : index
    %598 = vector.load %arg3[%c0_406, %c0_407, %c0_408] : memref<2x16x16xf32, #tpu.memory_space<vmem>>, vector<2x16x16xf32>
    tpu.vector_store %arg3[%c0_406, %c0_407, %c0_408], %597 {strides = array<i32>} : memref<2x16x16xf32, #tpu.memory_space<vmem>>, vector<2x16x16xf32>,
    return
  }
  func.func @transform_0(%arg0: i32) -> i32 {
    %c0_i32 = arith.constant 0 : i32
    %c0_i32_0 = arith.constant 0 : i32
    return %c0_i32 : i32
  }
  func.func @transform_1(%arg0: i32) -> (i32, i32, i32, i32) {
    %c0_i32 = arith.constant 0 : i32
    %c0_i32_0 = arith.constant 0 : i32
    %c0_i32_1 = arith.constant 0 : i32
    %c0_i32_2 = arith.constant 0 : i32
    %c0_i32_3 = arith.constant 0 : i32
    return %c0_i32, %c0_i32_0, %c0_i32_1, %c0_i32_2 : i32, i32, i32, i32
  }
  func.func @transform_2(%arg0: i32) -> (i32, i32, i32) {
    %c0_i32 = arith.constant 0 : i32
    %c0_i32_0 = arith.constant 0 : i32
    %c0_i32_1 = arith.constant 0 : i32
    %c0_i32_2 = arith.constant 0 : i32
    return %c0_i32, %c0_i32_0, %c0_i32_1 : i32, i32, i32
  }
}

</mosaic_0001>

<llo_original>
// kernel: spatial_attention.2
$region0: #{spatial_attention.2}
  #allocation0 [shape = 'u32[]', space=smem, size = 0x4, offset = 0x4, fixed_abs, tag = 'smem constant byte address 0x4 - core index']
  #allocation1 [shape = 'u32[144,128]{1,0:T(1,128)}', space=vmem, size = 0x12000, scoped, tag = 'internal scratch']
  #allocation2 [shape = 'f32[1,8,256]{2,1,0:T(8,128)}', space=vmem, size = 0x2000, scoped, tag = 'scratch operand']
  #allocation3 [shape = 'f32[1,8,256]{2,1,0:T(8,128)}', space=vmem, size = 0x2000, scoped, tag = 'scratch operand']
  %s0 = inlined_call_operand.vmem [shape: f32[2,16,256], index: 0, kind: input, shape index: {}]
  %s1 = inlined_call_operand.vmem [shape: f32[2,2,256], index: 1, kind: output, shape index: {}]
  %s2 = sld [smem:[#allocation0]]
  $region45: #{spatial_attention.2} parent=0
    _
  %s4 = ssub.s32 1, %s2
  %s5 = scalar_select 0, %s4, %s2
  loop: start=0, step=1, limit=4
  $region2: #{spatial_attention.2} parent=0 // loop_pre_header
    _
  $region3: #{spatial_attention.2} parent=0 // loop_header
    %s7 = sphi 0, %s11
    %p8 = scmp.ge.s32.totalorder %s7, 4
    %s14 = sphi 0, %s33
    %s15 = sphi 0, %s29
    %s16 = sphi 0, %s25
    %s17 = sphi 0, %s14
    %s18 = sphi 0, %s15
    %s19 = sphi 0, %s16
    %s20 = sphi 0, %s17
    %s21 = sphi 0, %s18
    %s22 = sphi 0, %s19
    %s40 = sphi 0, %s42
    %s43 = sphi 0, %s40
    %s44 = sphi 0, %s43
    %s60 = sphi 0, %s44
    %s68 = sphi 0, %s70
    %s71 = sphi 0, %s68
    %s72 = sphi 0, %s71
    %s88 = sphi 0, %s72
  $region4: #{spatial_attention.2} parent=0 // loop_header_branch
    %10 = sbr.rel (%p8) target = $region8
  $region5: #{spatial_attention.2} parent=0 // loop_body
    %s12 = ssub.s32 %s7, 1
    %s13 = ssub.s32 %s7, 2
    %s23 = sadd.s32 1, %s16
    %p24 = scmp.ge.s32.totalorder %s23, 1
    %s25 = scalar_select %p24, 0, %s23
    %s26 = sadd.s32 1, %s15
    %s27 = scalar_select %p24, %s26, %s15
    %p28 = scmp.ge.s32.totalorder %s27, 1
    %s29 = scalar_select %p28, 0, %s27
    %s30 = sadd.s32 1, %s14
    %s31 = scalar_select %p28, %s30, %s14
    %p32 = scmp.ge.s32.totalorder %s31, 2
    %s33 = scalar_select %p32, 0, %s31
    %s34 = ssub.s32 %s14, %s33
    %s35 = ssub.s32 %s16, %s25
    %s36 = sor.u32 %s34, %s35
    %s37 = ssub.s32 %s15, %s29
    %s38 = sor.u32 %s36, %s37
    %p39 = scmp.eq.s32.totalorder %s38, 0
    %s41 = sadd.s32 %s40, 1
    %s42 = scalar_select %p39, %s40, %s41
    %p45 = pneg %p39
    %p46 = scmp.eq.s32.totalorder %s7, 1
    %p47 = por %p45, %p46
    %p48 = scmp.ne.s32.totalorder %s40, %s43
    %p49 = scmp.eq.s32.totalorder %s7, 0
    %p50 = por %p48, %p49
    %p51 = scmp.ne.s32.totalorder %s40, %s43
    %p52 = scmp.eq.s32.totalorder %s12, 1
    %p53 = por %p51, %p52
    %p54 = scmp.ne.s32.totalorder %s43, %s44
    %p55 = scmp.eq.s32.totalorder %s12, 0
    %p56 = por %p54, %p55
    %p57 = scmp.ne.s32.totalorder %s43, %s44
    %p58 = scmp.eq.s32.totalorder %s13, 1
    %p59 = por %p57, %p58
    %p61 = scmp.ne.s32.totalorder %s44, %s60
    %p62 = scmp.eq.s32.totalorder %s13, 0
    %p63 = por %p61, %p62
    %s64 = ssub.s32 %s14, %s33
    %s65 = ssub.s32 %s15, %s29
    %s66 = sor.u32 %s64, %s65
    %p67 = scmp.eq.s32.totalorder %s66, 0
    %s69 = sadd.s32 %s68, 1
    %s70 = scalar_select %p67, %s68, %s69
    %p73 = pneg %p67
    %p74 = scmp.eq.s32.totalorder %s7, 1
    %p75 = por %p73, %p74
    %p76 = scmp.ne.s32.totalorder %s68, %s71
    %p77 = scmp.eq.s32.totalorder %s7, 0
    %p78 = por %p76, %p77
    %p79 = scmp.ne.s32.totalorder %s68, %s71
    %p80 = scmp.eq.s32.totalorder %s12, 1
    %p81 = por %p79, %p80
    %p82 = scmp.ne.s32.totalorder %s71, %s72
    %p83 = scmp.eq.s32.totalorder %s12, 0
    %p84 = por %p82, %p83
    %p85 = scmp.ne.s32.totalorder %s71, %s72
    %p86 = scmp.eq.s32.totalorder %s13, 1
    %p87 = por %p85, %p86
    %p89 = scmp.ne.s32.totalorder %s72, %s88
    %p90 = scmp.eq.s32.totalorder %s13, 0
    %p91 = por %p89, %p90
    %p92 = scmp.le.s32.totalorder 1, %s7
    %p93 = scmp.lt.s32.totalorder %s7, 3
    %p94 = pnand %p92, %p93
    %p95 = pneg %p94
    // Predicated region
    $region9: #{spatial_attention.2} parent=5 // pred_check
      _
    $region10: #{spatial_attention.2} parent=5 // pred_check_branch
      %97 = sbr.rel (%p94) target = $region12
    $region11: #{spatial_attention.2} parent=5 // pred_region
      %s98 = ssub.s32 %s7, 1
    $region12: #{spatial_attention.2} parent=5 // pred_fallthru
      _
    %p99 = scmp.lt.s32.totalorder %s7, 2
    // Predicated region
    $region13: #{spatial_attention.2} parent=5 // pred_check
      %p100 = pneg %p99
    $region14: #{spatial_attention.2} parent=5 // pred_check_branch
      %102 = sbr.rel (%p100) target = $region16
    $region15: #{spatial_attention.2} parent=5 // pred_region
      // Predicated region
      $region17: #{spatial_attention.2} parent=15 // pred_check
        %p103 = pneg %p50
      $region18: #{spatial_attention.2} parent=15 // pred_check_branch
        %105 = sbr.rel (%p103) target = $region20
      $region19: #{spatial_attention.2} parent=15 // pred_region
        %s106 = smul.u32 2, %s16
        %s107 = smul.u32 2, %s15
        %p108 = scmp.lt.s32.totalorder %s14, 1
        %s109 = scalar_select %p108, %s14, 1
        %p110 = scmp.lt.s32.totalorder %s106, 1
        %s111 = scalar_select %p110, %s106, 1
        %p112 = scmp.lt.s32.totalorder %s107, 1
        %s113 = scalar_select %p112, %s107, 1
        %s114 = smul.addr %s111, 2
        %s115 = sadd.s32 %s113, %s114
        %s116 = smul.addr %s109, 4
        %s117 = sadd.s32 %s115, %s116
        %s118 = smul.addr %s117, 8
        %s119 = scalar_lea.vmem %s0, %s118
        %s120 = smul.u32 2, %s16
        %s121 = smul.u32 2, %s15
      $region20: #{spatial_attention.2} parent=15 // pred_fallthru
        _
    $region16: #{spatial_attention.2} parent=5 // pred_fallthru
      _
    %p122 = scmp.le.s32.totalorder 1, %s7
    %p123 = scmp.lt.s32.totalorder %s7, 3
    %p124 = pnand %p122, %p123
    %p125 = pneg %p124
    // Predicated region
    $region21: #{spatial_attention.2} parent=5 // pred_check
      _
    $region22: #{spatial_attention.2} parent=5 // pred_check_branch
      %127 = sbr.rel (%p124) target = $region24
    $region23: #{spatial_attention.2} parent=5 // pred_region
      %s128 = ssub.s32 %s7, 1
      %s129 = smul.u32 2, %s19
      %s130 = smul.u32 2, %s18
      %p131 = scmp.lt.s32.totalorder %s17, 1
      %s132 = scalar_select %p131, %s17, 1
      %p133 = scmp.lt.s32.totalorder %s129, 1
      %s134 = scalar_select %p133, %s129, 1
      %p135 = scmp.lt.s32.totalorder %s130, 1
      %s136 = scalar_select %p135, %s130, 1
      %s137 = smul.addr %s134, 2
      %s138 = sadd.s32 %s136, %s137
      %s139 = smul.addr %s132, 4
      %s140 = sadd.s32 %s138, %s139
      %s141 = smul.addr %s140, 8
      %s142 = scalar_lea.vmem %s0, %s141
      %p143 = pneg %p56
      %p144 = pneg %p53
      %p145 = pneg %p84
      %p146 = pneg %p81
      %s147 = smul.u32 2, %s18
      %p148 = scmp.lt.s32.totalorder %s17, 1
      %s149 = scalar_select %p148, %s17, 1
      %p150 = scmp.lt.s32.totalorder %s147, 1
      %s151 = scalar_select %p150, %s147, 1
      %s152 = smul.addr %s149, 2
      %s153 = sadd.s32 %s151, %s152
      %s154 = smul.addr %s153, 2
      %s155 = scalar_lea.vmem %s1, %s154
      %s156 = smul.u32 2, %s19
      %s157 = smul.u32 2, %s18
      %p158 = scmp.lt.s32.totalorder %s17, 1
      %s159 = scalar_select %p158, %s17, 1
      %p160 = scmp.lt.s32.totalorder %s156, 1
      %s161 = scalar_select %p160, %s156, 1
      %p162 = scmp.lt.s32.totalorder %s157, 1
      %s163 = scalar_select %p162, %s157, 1
      %s164 = smul.addr %s161, 2
      %s165 = sadd.s32 %s163, %s164
      %s166 = smul.addr %s159, 4
      %s167 = sadd.s32 %s165, %s166
      %s168 = smul.addr %s167, 8
      %s169 = scalar_lea.vmem %s0, %s168
      %s170 = smul.u32 2, %s19
      %s171 = smul.u32 2, %s18
      %s172 = smul.u32 2, %s18
      %p173 = scmp.lt.s32.totalorder %s17, 1
      %s174 = scalar_select %p173, %s17, 1
      %p175 = scmp.lt.s32.totalorder %s172, 1
      %s176 = scalar_select %p175, %s172, 1
      %s177 = smul.addr %s174, 2
      %s178 = sadd.s32 %s176, %s177
      %s179 = smul.addr %s178, 2
      %s180 = scalar_lea.vmem %s1, %s179
      %s181 = smul.u32 2, %s18
      %p182 = scmp.eq.s32.totalorder %s19, 0
      // Predicated region
      $region25: #{spatial_attention.2} parent=23 // pred_check
        %p183 = pneg %p182
      $region26: #{spatial_attention.2} parent=23 // pred_check_branch
        %185 = sbr.rel (%p183) target = $region28
      $region27: #{spatial_attention.2} parent=23 // pred_region
        %186 = vst [vmem:[#allocation2] sm:$0xff] 0.0
        %187 = vst [vmem:[#allocation2 + $0x8] sm:$0xff] 0.0
        %188 = vst [vmem:[#allocation3] sm:$0xff] -inf
        %189 = vst [vmem:[#allocation3 + $0x8] sm:$0xff] -inf
      $region28: #{spatial_attention.2} parent=23 // pred_fallthru
        _
      %v190 = vld [vmem:[#allocation2] sm:$0xff]
      %v191 = vld [vmem:[#allocation2 + $0x8] sm:$0xff]
      %v192 = vld [vmem:[#allocation3] sm:$0xff]
      %v193 = vld [vmem:[#allocation3 + $0x8] sm:$0xff]
      %v194 = vld [vmem:[%s169] sm:$0xff]
      %v195 = vld [vmem:[%s169 + $0x8] sm:$0xff]
      %v196 = vadd.f32 %v190, %v194
      %v197 = vadd.f32 %v191, %v195
      %v198 = vmax.f32 %v192, %v194
      %v199 = vmax.f32 %v193, %v195
      %v200 = vld [vmem:[%s169 + $0x10] sm:$0xff]
      %v201 = vld [vmem:[%s169 + $0x18] sm:$0xff]
      %v202 = vadd.f32 %v196, %v200
      %v203 = vadd.f32 %v197, %v201
      %v204 = vmax.f32 %v198, %v200
      %v205 = vmax.f32 %v199, %v201
      %206 = vst [vmem:[#allocation2] sm:$0xff] %v202
      %207 = vst [vmem:[#allocation2 + $0x8] sm:$0xff] %v203
      %208 = vst [vmem:[#allocation3] sm:$0xff] %v204
      %209 = vst [vmem:[#allocation3 + $0x8] sm:$0xff] %v205
      // Predicated region
      $region29: #{spatial_attention.2} parent=23 // pred_check
        %p210 = pneg %p182
      $region30: #{spatial_attention.2} parent=23 // pred_check_branch
        %212 = sbr.rel (%p210) target = $region32
      $region31: #{spatial_attention.2} parent=23 // pred_region
        %v213 = vld [vmem:[#allocation2] sm:$0xff]
        %v214 = vld [vmem:[#allocation2 + $0x8] sm:$0xff]
        %v215 = vrot.slane %v213, 4
        %v216 = vadd.f32 %v213, %v215
        %v217 = vrot.slane %v216, 2
        %v218 = vadd.f32 %v216, %v217
        %v219 = vrot.slane %v218, 1
        %v220 = vadd.f32 %v218, %v219
        %v221 = vrot.slane %v214, 4
        %v222 = vadd.f32 %v214, %v221
        %v223 = vrot.slane %v222, 2
        %v224 = vadd.f32 %v222, %v223
        %v225 = vrot.slane %v224, 1
        %v226 = vadd.f32 %v224, %v225
        %v227 = vmul.f32 %v220, 0.0625
        %v228 = vmul.f32 %v226, 0.0625
        %v229 = vld [vmem:[#allocation3] sm:$0xff]
        %v230 = vld [vmem:[#allocation3 + $0x8] sm:$0xff]
        %v231 = vrot.slane %v229, 4
        %v232 = vmax.f32 %v229, %v231
        %v233 = vrot.slane %v232, 2
        %v234 = vmax.f32 %v232, %v233
        %v235 = vrot.slane %v234, 1
        %v236 = vmax.f32 %v234, %v235
        %v237 = vrot.slane %v230, 4
        %v238 = vmax.f32 %v230, %v237
        %v239 = vrot.slane %v238, 2
        %v240 = vmax.f32 %v238, %v239
        %v241 = vrot.slane %v240, 1
        %v242 = vmax.f32 %v240, %v241
        %v245 = vcombine.low %v227, %v228
        %v247 = vunpack.c.l.s4 1966171168
        %v248 = vunpack.c.0.s8 %v247
        %v249 = vlaneseq
        %v250 = vshrl.u32 %v249, 7
        %v251 = vsub.s32 %v248, %v250
        %v252 = vrot.slane %v245, %v251
        %v254 = vunpack.c.l.s4 1966171168
        %v255 = vunpack.c.0.s8 %v254
        %v256 = vlaneseq
        %v257 = vshrl.u32 %v256, 7
        %v258 = vsub.s32 %v255, %v257
        %v259 = vrot.slane %v252, %v258
        %v261 = vlaneseq
        %vm262 = vcmp.ge.s32.totalorder %v261, 0
        %vm263 = vcmp.lt.s32.totalorder %v261, 256
        %vm264 = vmand %vm262, %vm263
        %265 = vst.msk [vmem:[%s180] ss:$2 sm:$0x3] %vm264, %v259
        %v268 = vcombine.low %v236, %v242
        %v270 = vunpack.c.l.s4 1966171168
        %v271 = vunpack.c.0.s8 %v270
        %v272 = vlaneseq
        %v273 = vshrl.u32 %v272, 7
        %v274 = vsub.s32 %v271, %v273
        %v275 = vrot.slane %v268, %v274
        %v277 = vunpack.c.l.s4 1966171168
        %v278 = vunpack.c.0.s8 %v277
        %v279 = vlaneseq
        %v280 = vshrl.u32 %v279, 7
        %v281 = vsub.s32 %v278, %v280
        %v282 = vrot.slane %v275, %v281
        %s284 = scalar_lea.vmem %s180, 1
        %285 = vst.msk [vmem:[%s284] ss:$2 sm:$0x3] %vm264, %v282
      $region32: #{spatial_attention.2} parent=23 // pred_fallthru
        _
      %s286 = smul.u32 2, %s18
      %p287 = scmp.lt.s32.totalorder %s17, 1
      %s288 = scalar_select %p287, %s17, 1
      %p289 = scmp.lt.s32.totalorder %s286, 1
      %s290 = scalar_select %p289, %s286, 1
      %s291 = smul.addr %s288, 2
      %s292 = sadd.s32 %s290, %s291
      %s293 = smul.addr %s292, 2
      %s294 = scalar_lea.vmem %s1, %s293
      // Predicated region
      $region33: #{spatial_attention.2} parent=23 // pred_check
        %p295 = pneg %p81
      $region34: #{spatial_attention.2} parent=23 // pred_check_branch
        %297 = sbr.rel (%p295) target = $region36
      $region35: #{spatial_attention.2} parent=23 // pred_region
        %s298 = smul.u32 2, %s18
      $region36: #{spatial_attention.2} parent=23 // pred_fallthru
        _
    $region24: #{spatial_attention.2} parent=5 // pred_fallthru
      _
    %p299 = scmp.le.s32.totalorder 2, %s7
    // Predicated region
    $region37: #{spatial_attention.2} parent=5 // pred_check
      %p300 = pneg %p299
    $region38: #{spatial_attention.2} parent=5 // pred_check_branch
      %302 = sbr.rel (%p300) target = $region40
    $region39: #{spatial_attention.2} parent=5 // pred_region
      %s303 = ssub.s32 %s7, 2
      // Predicated region
      $region41: #{spatial_attention.2} parent=39 // pred_check
        %p304 = pneg %p87
      $region42: #{spatial_attention.2} parent=39 // pred_check_branch
        %306 = sbr.rel (%p304) target = $region44
      $region43: #{spatial_attention.2} parent=39 // pred_region
        %s307 = smul.u32 2, %s21
        %p308 = scmp.lt.s32.totalorder %s20, 1
        %s309 = scalar_select %p308, %s20, 1
        %p310 = scmp.lt.s32.totalorder %s307, 1
        %s311 = scalar_select %p310, %s307, 1
        %s312 = smul.addr %s309, 2
        %s313 = sadd.s32 %s311, %s312
        %s314 = smul.addr %s313, 2
        %s315 = scalar_lea.vmem %s1, %s314
      $region44: #{spatial_attention.2} parent=39 // pred_fallthru
        _
    $region40: #{spatial_attention.2} parent=5 // pred_fallthru
      _
  $region6: #{spatial_attention.2} parent=0 // loop_footer
    %s11 = sadd.s32 1, %s7
  $region7: #{spatial_attention.2} parent=0 // loop_footer_branch
    %6 = sbr.rel target = $region3
  $region8: #{spatial_attention.2} parent=0 // loop_exit
    _

// kernel: spatial_attention.3
$region0: #{spatial_attention.3}
  #allocation0 [shape = 'u32[]', space=smem, size = 0x4, offset = 0x4, fixed_abs, tag = 'smem constant byte address 0x4 - core index']
  #allocation1 [shape = 'u32[144,128]{1,0:T(1,128)}', space=vmem, size = 0x12000, scoped, tag = 'internal scratch']
  #allocation2 [shape = 'f32[2,2,22,22]{3,2,1,0:T(8,128)}', space=vmem, size = 0xc000, scoped, tag = 'scratch operand']
  %s0 = inlined_call_operand.vmem [shape: f32[98], index: 0, kind: input, shape index: {}]
  %s1 = inlined_call_operand.vmem [shape: f32[2,2,16,16], index: 1, kind: input, shape index: {}]
  %s2 = inlined_call_operand.hbm [shape: f32[2,16,16], index: 2, kind: output, shape index: {}]
  %s3 = sld [smem:[#allocation0]]
  $region22: #{spatial_attention.3} parent=0
    _
  %s5 = ssub.s32 1, %s3
  %s6 = scalar_select 0, %s5, %s3
  $region1: #{spatial_attention.3} parent=0
    #allocation3 [shape = 'u8[512]{0}', space=smem, size = 0x200, scoped, tag = 'input window, operand 0, single buffered']
    #allocation4 [shape = 's32[1]{0}', space=sflag, size = 0x4, scoped, tag = 'scoped memory for spatial_attention.3']
    #allocation5 [shape = 's32[1]{0}', space=sflag, size = 0x4, scoped, tag = 'scoped memory for spatial_attention.3']
    #allocation6 [shape = 'u8[16384]{0}', space=vmem, size = 0x4000, scoped, tag = 'output window, operand 0, single buffered']
    %7 = vsyncpa [#allocation5], 0
    %8 = vsyncpa [#allocation4], 0
    // Predicated region
    $region2: #{spatial_attention.3} parent=1 // pred_check
      _
    $region3: #{spatial_attention.3} parent=1 // pred_check_branch
      %10 = sbr.rel (0) target = $region5
    $region4: #{spatial_attention.3} parent=1 // pred_region
      %s12 = ssub.s32 16, 16
      %13 = vsyncadd [#allocation5], %s12
      %s15 = sshll.u32 %s0, 4
      %s16 = int_to_ptr.vmem [resolvable:$true] %s15
      %18 = dma.vmem_to_smem %s16, 16, [#allocation3], [#allocation5]
    $region5: #{spatial_attention.3} parent=1 // pred_fallthru
      _
    // Predicated region
    $region6: #{spatial_attention.3} parent=1 // pred_check
      _
    $region7: #{spatial_attention.3} parent=1 // pred_check_branch
      %20 = sbr.rel (0) target = $region9
    $region8: #{spatial_attention.3} parent=1 // pred_region
      _
    $region9: #{spatial_attention.3} parent=1 // pred_fallthru
      _
    // Predicated region
    $region10: #{spatial_attention.3} parent=1 // pred_check
      _
    $region11: #{spatial_attention.3} parent=1 // pred_check_branch
      %22 = sbr.rel (0) target = $region13
    $region12: #{spatial_attention.3} parent=1 // pred_region
      %23 = dma.done [#allocation5], 16
    $region13: #{spatial_attention.3} parent=1 // pred_fallthru
      _
    %24 = sfence
    %vm25 = vcmask 179200
    %26 = vst.msk [vmem:[#allocation2] sm:$0xff] %vm25, 0.0
    %27 = vst.msk [vmem:[#allocation2 + $0x8] sm:$0xff] %vm25, 0.0
    %vm28 = vcmask 177152
    %29 = vst.msk [vmem:[#allocation2 + $0x10] sm:$0x3f] %vm28, 0.0
    %30 = vst.msk [vmem:[#allocation2 + $0x18] sm:$0xff] %vm25, 0.0
    %31 = vst.msk [vmem:[#allocation2 + $0x20] sm:$0xff] %vm25, 0.0
    %32 = vst.msk [vmem:[#allocation2 + $0x28] sm:$0x3f] %vm28, 0.0
    %33 = vst.msk [vmem:[#allocation2 + $0x30] sm:$0xff] %vm25, 0.0
    %34 = vst.msk [vmem:[#allocation2 + $0x38] sm:$0xff] %vm25, 0.0
    %35 = vst.msk [vmem:[#allocation2 + $0x40] sm:$0x3f] %vm28, 0.0
    %36 = vst.msk [vmem:[#allocation2 + $0x48] sm:$0xff] %vm25, 0.0
    %37 = vst.msk [vmem:[#allocation2 + $0x50] sm:$0xff] %vm25, 0.0
    %38 = vst.msk [vmem:[#allocation2 + $0x58] sm:$0x3f] %vm28, 0.0
    %v39 = vld [vmem:[%s1] sm:$0xff]
    %v40 = vld [vmem:[%s1 + $0x8] sm:$0xff]
    %v41 = vld [vmem:[%s1 + $0x10] sm:$0xff]
    %v42 = vld [vmem:[%s1 + $0x18] sm:$0xff]
    %v43 = vld [vmem:[%s1 + $0x20] sm:$0xff]
    %v44 = vld [vmem:[%s1 + $0x28] sm:$0xff]
    %v45 = vld [vmem:[%s1 + $0x30] sm:$0xff]
    %v46 = vld [vmem:[%s1 + $0x38] sm:$0xff]
    %55 = vrot.lane.b32.xlu0 %v39, 3
    %v56 = vpop.permute.xlu0 %55
    %57 = vrot.lane.b32.xlu0 %v40, 3
    %v58 = vpop.permute.xlu0 %57
    %59 = vrot.lane.b32.xlu0 %v41, 3
    %v60 = vpop.permute.xlu0 %59
    %61 = vrot.lane.b32.xlu0 %v42, 3
    %v62 = vpop.permute.xlu0 %61
    %63 = vrot.lane.b32.xlu0 %v43, 3
    %v64 = vpop.permute.xlu0 %63
    %65 = vrot.lane.b32.xlu0 %v44, 3
    %v66 = vpop.permute.xlu0 %65
    %67 = vrot.lane.b32.xlu0 %v45, 3
    %v68 = vpop.permute.xlu0 %67
    %69 = vrot.lane.b32.xlu0 %v46, 3
    %v70 = vpop.permute.xlu0 %69
    %vm79 = vcmask 154648
    %80 = vst.msk [vmem:[#allocation2 + $0x3] sm:$0xff] %vm79, %v56
    %81 = vst.msk [vmem:[#allocation2 + $0xb] sm:$0xff] %vm79, %v58
    %82 = vst.msk [vmem:[#allocation2 + $0x1b] sm:$0xff] %vm79, %v60
    %83 = vst.msk [vmem:[#allocation2 + $0x23] sm:$0xff] %vm79, %v62
    %84 = vst.msk [vmem:[#allocation2 + $0x33] sm:$0xff] %vm79, %v64
    %85 = vst.msk [vmem:[#allocation2 + $0x3b] sm:$0xff] %vm79, %v66
    %86 = vst.msk [vmem:[#allocation2 + $0x4b] sm:$0xff] %vm79, %v68
    %87 = vst.msk [vmem:[#allocation2 + $0x53] sm:$0xff] %vm79, %v70
    %s88 = sld [smem:[#allocation3]]
    %v89 = vld [vmem:[#allocation2] sm:$0xff]
    %v90 = vld [vmem:[#allocation2 + $0x8] sm:$0xff]
    %v91 = vld [vmem:[#allocation2 + $0x30] sm:$0xff]
    %v92 = vld [vmem:[#allocation2 + $0x38] sm:$0xff]
    %v93 = vstv %s88
    %v94 = vmul.f32 %v93, %v89
    %v95 = vmul.f32 %v93, %v90
    %v96 = vmul.f32 %v93, %v91
    %v97 = vmul.f32 %v93, %v92
    %v98 = vadd.f32 %v94, 0.0
    %v99 = vadd.f32 %v95, 0.0
    %v100 = vadd.f32 %v96, 0.0
    %v101 = vadd.f32 %v97, 0.0
    %s102 = sld [smem:[#allocation3 + $0x1]]
    %v103 = vstv %s102
    %v104 = vmul.f32 %v103, %v89
    %v105 = vmul.f32 %v103, %v90
    %v106 = vmul.f32 %v103, %v91
    %v107 = vmul.f32 %v103, %v92
    %112 = vrot.lane.b32.xlu0 %v104, 127
    %v113 = vpop.permute.xlu0 %112
    %114 = vrot.lane.b32.xlu0 %v105, 127
    %v115 = vpop.permute.xlu0 %114
    %116 = vrot.lane.b32.xlu0 %v106, 127
    %v117 = vpop.permute.xlu0 %116
    %118 = vrot.lane.b32.xlu0 %v107, 127
    %v119 = vpop.permute.xlu0 %118
    %v124 = vadd.f32 %v98, %v113
    %v125 = vadd.f32 %v99, %v115
    %v126 = vadd.f32 %v100, %v117
    %v127 = vadd.f32 %v101, %v119
    %s128 = sld [smem:[#allocation3 + $0x2]]
    %v129 = vstv %s128
    %v130 = vmul.f32 %v129, %v89
    %v131 = vmul.f32 %v129, %v90
    %v132 = vmul.f32 %v129, %v91
    %v133 = vmul.f32 %v129, %v92
    %138 = vrot.lane.b32.xlu0 %v130, 126
    %v139 = vpop.permute.xlu0 %138
    %140 = vrot.lane.b32.xlu0 %v131, 126
    %v141 = vpop.permute.xlu0 %140
    %142 = vrot.lane.b32.xlu0 %v132, 126
    %v143 = vpop.permute.xlu0 %142
    %144 = vrot.lane.b32.xlu0 %v133, 126
    %v145 = vpop.permute.xlu0 %144
    %v150 = vadd.f32 %v124, %v139
    %v151 = vadd.f32 %v125, %v141
    %v152 = vadd.f32 %v126, %v143
    %v153 = vadd.f32 %v127, %v145
    %s154 = sld [smem:[#allocation3 + $0x3]]
    %v155 = vstv %s154
    %v156 = vmul.f32 %v155, %v89
    %v157 = vmul.f32 %v155, %v90
    %v158 = vmul.f32 %v155, %v91
    %v159 = vmul.f32 %v155, %v92
    %164 = vrot.lane.b32.xlu0 %v156, 125
    %v165 = vpop.permute.xlu0 %164
    %166 = vrot.lane.b32.xlu0 %v157, 125
    %v167 = vpop.permute.xlu0 %166
    %168 = vrot.lane.b32.xlu0 %v158, 125
    %v169 = vpop.permute.xlu0 %168
    %170 = vrot.lane.b32.xlu0 %v159, 125
    %v171 = vpop.permute.xlu0 %170
    %v176 = vadd.f32 %v150, %v165
    %v177 = vadd.f32 %v151, %v167
    %v178 = vadd.f32 %v152, %v169
    %v179 = vadd.f32 %v153, %v171
    %s180 = sld [smem:[#allocation3 + $0x4]]
    %v181 = vstv %s180
    %v182 = vmul.f32 %v181, %v89
    %v183 = vmul.f32 %v181, %v90
    %v184 = vmul.f32 %v181, %v91
    %v185 = vmul.f32 %v181, %v92
    %190 = vrot.lane.b32.xlu0 %v182, 124
    %v191 = vpop.permute.xlu0 %190
    %192 = vrot.lane.b32.xlu0 %v183, 124
    %v193 = vpop.permute.xlu0 %192
    %194 = vrot.lane.b32.xlu0 %v184, 124
    %v195 = vpop.permute.xlu0 %194
    %196 = vrot.lane.b32.xlu0 %v185, 124
    %v197 = vpop.permute.xlu0 %196
    %v202 = vadd.f32 %v176, %v191
    %v203 = vadd.f32 %v177, %v193
    %v204 = vadd.f32 %v178, %v195
    %v205 = vadd.f32 %v179, %v197
    %s206 = sld [smem:[#allocation3 + $0x5]]
    %v207 = vstv %s206
    %v208 = vmul.f32 %v207, %v89
    %v209 = vmul.f32 %v207, %v90
    %v210 = vmul.f32 %v207, %v91
    %v211 = vmul.f32 %v207, %v92
    %216 = vrot.lane.b32.xlu0 %v208, 123
    %v217 = vpop.permute.xlu0 %216
    %218 = vrot.lane.b32.xlu0 %v209, 123
    %v219 = vpop.permute.xlu0 %218
    %220 = vrot.lane.b32.xlu0 %v210, 123
    %v221 = vpop.permute.xlu0 %220
    %222 = vrot.lane.b32.xlu0 %v211, 123
    %v223 = vpop.permute.xlu0 %222
    %v228 = vadd.f32 %v202, %v217
    %v229 = vadd.f32 %v203, %v219
    %v230 = vadd.f32 %v204, %v221
    %v231 = vadd.f32 %v205, %v223
    %s232 = sld [smem:[#allocation3 + $0x6]]
    %v233 = vstv %s232
    %v234 = vmul.f32 %v233, %v89
    %v235 = vmul.f32 %v233, %v90
    %v236 = vmul.f32 %v233, %v91
    %v237 = vmul.f32 %v233, %v92
    %242 = vrot.lane.b32.xlu0 %v234, 122
    %v243 = vpop.permute.xlu0 %242
    %244 = vrot.lane.b32.xlu0 %v235, 122
    %v245 = vpop.permute.xlu0 %244
    %246 = vrot.lane.b32.xlu0 %v236, 122
    %v247 = vpop.permute.xlu0 %246
    %248 = vrot.lane.b32.xlu0 %v237, 122
    %v249 = vpop.permute.xlu0 %248
    %v254 = vadd.f32 %v228, %v243
    %v255 = vadd.f32 %v229, %v245
    %v256 = vadd.f32 %v230, %v247
    %v257 = vadd.f32 %v231, %v249
    %s258 = sld [smem:[#allocation3 + $0x7]]
    %v259 = vld [vmem:[#allocation2 + $0x1] sm:$0xff]
    %v260 = vld [vmem:[#allocation2 + $0x9] sm:$0xff]
    %v261 = vld [vmem:[#allocation2 + $0x31] sm:$0xff]
    %v262 = vld [vmem:[#allocation2 + $0x39] sm:$0xff]
    %v263 = vstv %s258
    %v264 = vmul.f32 %v263, %v259
    %v265 = vmul.f32 %v263, %v260
    %v266 = vmul.f32 %v263, %v261
    %v267 = vmul.f32 %v263, %v262
    %v268 = vadd.f32 %v254, %v264
    %v269 = vadd.f32 %v255, %v265
    %v270 = vadd.f32 %v256, %v266
    %v271 = vadd.f32 %v257, %v267
    %s272 = sld [smem:[#allocation3 + $0x8]]
    %v273 = vstv %s272
    %v274 = vmul.f32 %v273, %v259
    %v275 = vmul.f32 %v273, %v260
    %v276 = vmul.f32 %v273, %v261
    %v277 = vmul.f32 %v273, %v262
    %282 = vrot.lane.b32.xlu0 %v274, 127
    %v283 = vpop.permute.xlu0 %282
    %284 = vrot.lane.b32.xlu0 %v275, 127
    %v285 = vpop.permute.xlu0 %284
    %286 = vrot.lane.b32.xlu0 %v276, 127
    %v287 = vpop.permute.xlu0 %286
    %288 = vrot.lane.b32.xlu0 %v277, 127
    %v289 = vpop.permute.xlu0 %288
    %v294 = vadd.f32 %v268, %v283
    %v295 = vadd.f32 %v269, %v285
    %v296 = vadd.f32 %v270, %v287
    %v297 = vadd.f32 %v271, %v289
    %s298 = sld [smem:[#allocation3 + $0x9]]
    %v299 = vstv %s298
    %v300 = vmul.f32 %v299, %v259
    %v301 = vmul.f32 %v299, %v260
    %v302 = vmul.f32 %v299, %v261
    %v303 = vmul.f32 %v299, %v262
    %308 = vrot.lane.b32.xlu0 %v300, 126
    %v309 = vpop.permute.xlu0 %308
    %310 = vrot.lane.b32.xlu0 %v301, 126
    %v311 = vpop.permute.xlu0 %310
    %312 = vrot.lane.b32.xlu0 %v302, 126
    %v313 = vpop.permute.xlu0 %312
    %314 = vrot.lane.b32.xlu0 %v303, 126
    %v315 = vpop.permute.xlu0 %314
    %v320 = vadd.f32 %v294, %v309
    %v321 = vadd.f32 %v295, %v311
    %v322 = vadd.f32 %v296, %v313
    %v323 = vadd.f32 %v297, %v315
    %s324 = sld [smem:[#allocation3 + $0xa]]
    %v325 = vstv %s324
    %v326 = vmul.f32 %v325, %v259
    %v327 = vmul.f32 %v325, %v260
    %v328 = vmul.f32 %v325, %v261
    %v329 = vmul.f32 %v325, %v262
    %334 = vrot.lane.b32.xlu0 %v326, 125
    %v335 = vpop.permute.xlu0 %334
    %336 = vrot.lane.b32.xlu0 %v327, 125
    %v337 = vpop.permute.xlu0 %336
    %338 = vrot.lane.b32.xlu0 %v328, 125
    %v339 = vpop.permute.xlu0 %338
    %340 = vrot.lane.b32.xlu0 %v329, 125
    %v341 = vpop.permute.xlu0 %340
    %v346 = vadd.f32 %v320, %v335
    %v347 = vadd.f32 %v321, %v337
    %v348 = vadd.f32 %v322, %v339
    %v349 = vadd.f32 %v323, %v341
    %s350 = sld [smem:[#allocation3 + $0xb]]
    %v351 = vstv %s350
    %v352 = vmul.f32 %v351, %v259
    %v353 = vmul.f32 %v351, %v260
    %v354 = vmul.f32 %v351, %v261
    %v355 = vmul.f32 %v351, %v262
    %360 = vrot.lane.b32.xlu0 %v352, 124
    %v361 = vpop.permute.xlu0 %360
    %362 = vrot.lane.b32.xlu0 %v353, 124
    %v363 = vpop.permute.xlu0 %362
    %364 = vrot.lane.b32.xlu0 %v354, 124
    %v365 = vpop.permute.xlu0 %364
    %366 = vrot.lane.b32.xlu0 %v355, 124
    %v367 = vpop.permute.xlu0 %366
    %v372 = vadd.f32 %v346, %v361
    %v373 = vadd.f32 %v347, %v363
    %v374 = vadd.f32 %v348, %v365
    %v375 = vadd.f32 %v349, %v367
    %s376 = sld [smem:[#allocation3 + $0xc]]
    %v377 = vstv %s376
    %v378 = vmul.f32 %v377, %v259
    %v379 = vmul.f32 %v377, %v260
    %v380 = vmul.f32 %v377, %v261
    %v381 = vmul.f32 %v377, %v262
    %386 = vrot.lane.b32.xlu0 %v378, 123
    %v387 = vpop.permute.xlu0 %386
    %388 = vrot.lane.b32.xlu0 %v379, 123
    %v389 = vpop.permute.xlu0 %388
    %390 = vrot.lane.b32.xlu0 %v380, 123
    %v391 = vpop.permute.xlu0 %390
    %392 = vrot.lane.b32.xlu0 %v381, 123
    %v393 = vpop.permute.xlu0 %392
    %v398 = vadd.f32 %v372, %v387
    %v399 = vadd.f32 %v373, %v389
    %v400 = vadd.f32 %v374, %v391
    %v401 = vadd.f32 %v375, %v393
    %s402 = sld [smem:[#allocation3 + $0xd]]
    %v403 = vstv %s402
    %v404 = vmul.f32 %v403, %v259
    %v405 = vmul.f32 %v403, %v260
    %v406 = vmul.f32 %v403, %v261
    %v407 = vmul.f32 %v403, %v262
    %412 = vrot.lane.b32.xlu0 %v404, 122
    %v413 = vpop.permute.xlu0 %412
    %414 = vrot.lane.b32.xlu0 %v405, 122
    %v415 = vpop.permute.xlu0 %414
    %416 = vrot.lane.b32.xlu0 %v406, 122
    %v417 = vpop.permute.xlu0 %416
    %418 = vrot.lane.b32.xlu0 %v407, 122
    %v419 = vpop.permute.xlu0 %418
    %v424 = vadd.f32 %v398, %v413
    %v425 = vadd.f32 %v399, %v415
    %v426 = vadd.f32 %v400, %v417
    %v427 = vadd.f32 %v401, %v419
    %s428 = sld [smem:[#allocation3 + $0xe]]
    %v429 = vld [vmem:[#allocation2 + $0x2] sm:$0xff]
    %v430 = vld [vmem:[#allocation2 + $0xa] sm:$0xff]
    %v431 = vld [vmem:[#allocation2 + $0x32] sm:$0xff]
    %v432 = vld [vmem:[#allocation2 + $0x3a] sm:$0xff]
    %v433 = vstv %s428
    %v434 = vmul.f32 %v433, %v429
    %v435 = vmul.f32 %v433, %v430
    %v436 = vmul.f32 %v433, %v431
    %v437 = vmul.f32 %v433, %v432
    %v438 = vadd.f32 %v424, %v434
    %v439 = vadd.f32 %v425, %v435
    %v440 = vadd.f32 %v426, %v436
    %v441 = vadd.f32 %v427, %v437
    %s442 = sld [smem:[#allocation3 + $0xf]]
    %v443 = vstv %s442
    %v444 = vmul.f32 %v443, %v429
    %v445 = vmul.f32 %v443, %v430
    %v446 = vmul.f32 %v443, %v431
    %v447 = vmul.f32 %v443, %v432
    %452 = vrot.lane.b32.xlu0 %v444, 127
    %v453 = vpop.permute.xlu0 %452
    %454 = vrot.lane.b32.xlu0 %v445, 127
    %v455 = vpop.permute.xlu0 %454
    %456 = vrot.lane.b32.xlu0 %v446, 127
    %v457 = vpop.permute.xlu0 %456
    %458 = vrot.lane.b32.xlu0 %v447, 127
    %v459 = vpop.permute.xlu0 %458
    %v464 = vadd.f32 %v438, %v453
    %v465 = vadd.f32 %v439, %v455
    %v466 = vadd.f32 %v440, %v457
    %v467 = vadd.f32 %v441, %v459
    %s468 = sld [smem:[#allocation3 + $0x10]]
    %v469 = vstv %s468
    %v470 = vmul.f32 %v469, %v429
    %v471 = vmul.f32 %v469, %v430
    %v472 = vmul.f32 %v469, %v431
    %v473 = vmul.f32 %v469, %v432
    %478 = vrot.lane.b32.xlu0 %v470, 126
    %v479 = vpop.permute.xlu0 %478
    %480 = vrot.lane.b32.xlu0 %v471, 126
    %v481 = vpop.permute.xlu0 %480
    %482 = vrot.lane.b32.xlu0 %v472, 126
    %v483 = vpop.permute.xlu0 %482
    %484 = vrot.lane.b32.xlu0 %v473, 126
    %v485 = vpop.permute.xlu0 %484
    %v490 = vadd.f32 %v464, %v479
    %v491 = vadd.f32 %v465, %v481
    %v492 = vadd.f32 %v466, %v483
    %v493 = vadd.f32 %v467, %v485
    %s494 = sld [smem:[#allocation3 + $0x11]]
    %v495 = vstv %s494
    %v496 = vmul.f32 %v495, %v429
    %v497 = vmul.f32 %v495, %v430
    %v498 = vmul.f32 %v495, %v431
    %v499 = vmul.f32 %v495, %v432
    %504 = vrot.lane.b32.xlu0 %v496, 125
    %v505 = vpop.permute.xlu0 %504
    %506 = vrot.lane.b32.xlu0 %v497, 125
    %v507 = vpop.permute.xlu0 %506
    %508 = vrot.lane.b32.xlu0 %v498, 125
    %v509 = vpop.permute.xlu0 %508
    %510 = vrot.lane.b32.xlu0 %v499, 125
    %v511 = vpop.permute.xlu0 %510
    %v516 = vadd.f32 %v490, %v505
    %v517 = vadd.f32 %v491, %v507
    %v518 = vadd.f32 %v492, %v509
    %v519 = vadd.f32 %v493, %v511
    %s520 = sld [smem:[#allocation3 + $0x12]]
    %v521 = vstv %s520
    %v522 = vmul.f32 %v521, %v429
    %v523 = vmul.f32 %v521, %v430
    %v524 = vmul.f32 %v521, %v431
    %v525 = vmul.f32 %v521, %v432
    %530 = vrot.lane.b32.xlu0 %v522, 124
    %v531 = vpop.permute.xlu0 %530
    %532 = vrot.lane.b32.xlu0 %v523, 124
    %v533 = vpop.permute.xlu0 %532
    %534 = vrot.lane.b32.xlu0 %v524, 124
    %v535 = vpop.permute.xlu0 %534
    %536 = vrot.lane.b32.xlu0 %v525, 124
    %v537 = vpop.permute.xlu0 %536
    %v542 = vadd.f32 %v516, %v531
    %v543 = vadd.f32 %v517, %v533
    %v544 = vadd.f32 %v518, %v535
    %v545 = vadd.f32 %v519, %v537
    %s546 = sld [smem:[#allocation3 + $0x13]]
    %v547 = vstv %s546
    %v548 = vmul.f32 %v547, %v429
    %v549 = vmul.f32 %v547, %v430
    %v550 = vmul.f32 %v547, %v431
    %v551 = vmul.f32 %v547, %v432
    %556 = vrot.lane.b32.xlu0 %v548, 123
    %v557 = vpop.permute.xlu0 %556
    %558 = vrot.lane.b32.xlu0 %v549, 123
    %v559 = vpop.permute.xlu0 %558
    %560 = vrot.lane.b32.xlu0 %v550, 123
    %v561 = vpop.permute.xlu0 %560
    %562 = vrot.lane.b32.xlu0 %v551, 123
    %v563 = vpop.permute.xlu0 %562
    %v568 = vadd.f32 %v542, %v557
    %v569 = vadd.f32 %v543, %v559
    %v570 = vadd.f32 %v544, %v561
    %v571 = vadd.f32 %v545, %v563
    %s572 = sld [smem:[#allocation3 + $0x14]]
    %v573 = vstv %s572
    %v574 = vmul.f32 %v573, %v429
    %v575 = vmul.f32 %v573, %v430
    %v576 = vmul.f32 %v573, %v431
    %v577 = vmul.f32 %v573, %v432
    %582 = vrot.lane.b32.xlu0 %v574, 122
    %v583 = vpop.permute.xlu0 %582
    %584 = vrot.lane.b32.xlu0 %v575, 122
    %v585 = vpop.permute.xlu0 %584
    %586 = vrot.lane.b32.xlu0 %v576, 122
    %v587 = vpop.permute.xlu0 %586
    %588 = vrot.lane.b32.xlu0 %v577, 122
    %v589 = vpop.permute.xlu0 %588
    %v594 = vadd.f32 %v568, %v583
    %v595 = vadd.f32 %v569, %v585
    %v596 = vadd.f32 %v570, %v587
    %v597 = vadd.f32 %v571, %v589
    %s598 = sld [smem:[#allocation3 + $0x15]]
    %v599 = vld [vmem:[#allocation2 + $0x3] sm:$0xff]
    %v600 = vld [vmem:[#allocation2 + $0xb] sm:$0xff]
    %v601 = vld [vmem:[#allocation2 + $0x33] sm:$0xff]
    %v602 = vld [vmem:[#allocation2 + $0x3b] sm:$0xff]
    %v603 = vstv %s598
    %v604 = vmul.f32 %v603, %v599
    %v605 = vmul.f32 %v603, %v600
    %v606 = vmul.f32 %v603, %v601
    %v607 = vmul.f32 %v603, %v602
    %v608 = vadd.f32 %v594, %v604
    %v609 = vadd.f32 %v595, %v605
    %v610 = vadd.f32 %v596, %v606
    %v611 = vadd.f32 %v597, %v607
    %s612 = sld [smem:[#allocation3 + $0x16]]
    %v613 = vstv %s612
    %v614 = vmul.f32 %v613, %v599
    %v615 = vmul.f32 %v613, %v600
    %v616 = vmul.f32 %v613, %v601
    %v617 = vmul.f32 %v613, %v602
    %622 = vrot.lane.b32.xlu0 %v614, 127
    %v623 = vpop.permute.xlu0 %622
    %624 = vrot.lane.b32.xlu0 %v615, 127
    %v625 = vpop.permute.xlu0 %624
    %626 = vrot.lane.b32.xlu0 %v616, 127
    %v627 = vpop.permute.xlu0 %626
    %628 = vrot.lane.b32.xlu0 %v617, 127
    %v629 = vpop.permute.xlu0 %628
    %v634 = vadd.f32 %v608, %v623
    %v635 = vadd.f32 %v609, %v625
    %v636 = vadd.f32 %v610, %v627
    %v637 = vadd.f32 %v611, %v629
    %s638 = sld [smem:[#allocation3 + $0x17]]
    %v639 = vstv %s638
    %v640 = vmul.f32 %v639, %v599
    %v641 = vmul.f32 %v639, %v600
    %v642 = vmul.f32 %v639, %v601
    %v643 = vmul.f32 %v639, %v602
    %648 = vrot.lane.b32.xlu0 %v640, 126
    %v649 = vpop.permute.xlu0 %648
    %650 = vrot.lane.b32.xlu0 %v641, 126
    %v651 = vpop.permute.xlu0 %650
    %652 = vrot.lane.b32.xlu0 %v642, 126
    %v653 = vpop.permute.xlu0 %652
    %654 = vrot.lane.b32.xlu0 %v643, 126
    %v655 = vpop.permute.xlu0 %654
    %v660 = vadd.f32 %v634, %v649
    %v661 = vadd.f32 %v635, %v651
    %v662 = vadd.f32 %v636, %v653
    %v663 = vadd.f32 %v637, %v655
    %s664 = sld [smem:[#allocation3 + $0x18]]
    %v665 = vstv %s664
    %v666 = vmul.f32 %v665, %v599
    %v667 = vmul.f32 %v665, %v600
    %v668 = vmul.f32 %v665, %v601
    %v669 = vmul.f32 %v665, %v602
    %674 = vrot.lane.b32.xlu0 %v666, 125
    %v675 = vpop.permute.xlu0 %674
    %676 = vrot.lane.b32.xlu0 %v667, 125
    %v677 = vpop.permute.xlu0 %676
    %678 = vrot.lane.b32.xlu0 %v668, 125
    %v679 = vpop.permute.xlu0 %678
    %680 = vrot.lane.b32.xlu0 %v669, 125
    %v681 = vpop.permute.xlu0 %680
    %v686 = vadd.f32 %v660, %v675
    %v687 = vadd.f32 %v661, %v677
    %v688 = vadd.f32 %v662, %v679
    %v689 = vadd.f32 %v663, %v681
    %s690 = sld [smem:[#allocation3 + $0x19]]
    %v691 = vstv %s690
    %v692 = vmul.f32 %v691, %v599
    %v693 = vmul.f32 %v691, %v600
    %v694 = vmul.f32 %v691, %v601
    %v695 = vmul.f32 %v691, %v602
    %700 = vrot.lane.b32.xlu0 %v692, 124
    %v701 = vpop.permute.xlu0 %700
    %702 = vrot.lane.b32.xlu0 %v693, 124
    %v703 = vpop.permute.xlu0 %702
    %704 = vrot.lane.b32.xlu0 %v694, 124
    %v705 = vpop.permute.xlu0 %704
    %706 = vrot.lane.b32.xlu0 %v695, 124
    %v707 = vpop.permute.xlu0 %706
    %v712 = vadd.f32 %v686, %v701
    %v713 = vadd.f32 %v687, %v703
    %v714 = vadd.f32 %v688, %v705
    %v715 = vadd.f32 %v689, %v707
    %s716 = sld [smem:[#allocation3 + $0x1a]]
    %v717 = vstv %s716
    %v718 = vmul.f32 %v717, %v599
    %v719 = vmul.f32 %v717, %v600
    %v720 = vmul.f32 %v717, %v601
    %v721 = vmul.f32 %v717, %v602
    %726 = vrot.lane.b32.xlu0 %v718, 123
    %v727 = vpop.permute.xlu0 %726
    %728 = vrot.lane.b32.xlu0 %v719, 123
    %v729 = vpop.permute.xlu0 %728
    %730 = vrot.lane.b32.xlu0 %v720, 123
    %v731 = vpop.permute.xlu0 %730
    %732 = vrot.lane.b32.xlu0 %v721, 123
    %v733 = vpop.permute.xlu0 %732
    %v738 = vadd.f32 %v712, %v727
    %v739 = vadd.f32 %v713, %v729
    %v740 = vadd.f32 %v714, %v731
    %v741 = vadd.f32 %v715, %v733
    %s742 = sld [smem:[#allocation3 + $0x1b]]
    %v743 = vstv %s742
    %v744 = vmul.f32 %v743, %v599
    %v745 = vmul.f32 %v743, %v600
    %v746 = vmul.f32 %v743, %v601
    %v747 = vmul.f32 %v743, %v602
    %752 = vrot.lane.b32.xlu0 %v744, 122
    %v753 = vpop.permute.xlu0 %752
    %754 = vrot.lane.b32.xlu0 %v745, 122
    %v755 = vpop.permute.xlu0 %754
    %756 = vrot.lane.b32.xlu0 %v746, 122
    %v757 = vpop.permute.xlu0 %756
    %758 = vrot.lane.b32.xlu0 %v747, 122
    %v759 = vpop.permute.xlu0 %758
    %v764 = vadd.f32 %v738, %v753
    %v765 = vadd.f32 %v739, %v755
    %v766 = vadd.f32 %v740, %v757
    %v767 = vadd.f32 %v741, %v759
    %s768 = sld [smem:[#allocation3 + $0x1c]]
    %v769 = vld [vmem:[#allocation2 + $0x4] sm:$0xff]
    %v770 = vld [vmem:[#allocation2 + $0xc] sm:$0xff]
    %v771 = vld [vmem:[#allocation2 + $0x34] sm:$0xff]
    %v772 = vld [vmem:[#allocation2 + $0x3c] sm:$0xff]
    %v773 = vstv %s768
    %v774 = vmul.f32 %v773, %v769
    %v775 = vmul.f32 %v773, %v770
    %v776 = vmul.f32 %v773, %v771
    %v777 = vmul.f32 %v773, %v772
    %v778 = vadd.f32 %v764, %v774
    %v779 = vadd.f32 %v765, %v775
    %v780 = vadd.f32 %v766, %v776
    %v781 = vadd.f32 %v767, %v777
    %s782 = sld [smem:[#allocation3 + $0x1d]]
    %v783 = vstv %s782
    %v784 = vmul.f32 %v783, %v769
    %v785 = vmul.f32 %v783, %v770
    %v786 = vmul.f32 %v783, %v771
    %v787 = vmul.f32 %v783, %v772
    %792 = vrot.lane.b32.xlu0 %v784, 127
    %v793 = vpop.permute.xlu0 %792
    %794 = vrot.lane.b32.xlu0 %v785, 127
    %v795 = vpop.permute.xlu0 %794
    %796 = vrot.lane.b32.xlu0 %v786, 127
    %v797 = vpop.permute.xlu0 %796
    %798 = vrot.lane.b32.xlu0 %v787, 127
    %v799 = vpop.permute.xlu0 %798
    %v804 = vadd.f32 %v778, %v793
    %v805 = vadd.f32 %v779, %v795
    %v806 = vadd.f32 %v780, %v797
    %v807 = vadd.f32 %v781, %v799
    %s808 = sld [smem:[#allocation3 + $0x1e]]
    %v809 = vstv %s808
    %v810 = vmul.f32 %v809, %v769
    %v811 = vmul.f32 %v809, %v770
    %v812 = vmul.f32 %v809, %v771
    %v813 = vmul.f32 %v809, %v772
    %818 = vrot.lane.b32.xlu0 %v810, 126
    %v819 = vpop.permute.xlu0 %818
    %820 = vrot.lane.b32.xlu0 %v811, 126
    %v821 = vpop.permute.xlu0 %820
    %822 = vrot.lane.b32.xlu0 %v812, 126
    %v823 = vpop.permute.xlu0 %822
    %824 = vrot.lane.b32.xlu0 %v813, 126
    %v825 = vpop.permute.xlu0 %824
    %v830 = vadd.f32 %v804, %v819
    %v831 = vadd.f32 %v805, %v821
    %v832 = vadd.f32 %v806, %v823
    %v833 = vadd.f32 %v807, %v825
    %s834 = sld [smem:[#allocation3 + $0x1f]]
    %v835 = vstv %s834
    %v836 = vmul.f32 %v835, %v769
    %v837 = vmul.f32 %v835, %v770
    %v838 = vmul.f32 %v835, %v771
    %v839 = vmul.f32 %v835, %v772
    %844 = vrot.lane.b32.xlu0 %v836, 125
    %v845 = vpop.permute.xlu0 %844
    %846 = vrot.lane.b32.xlu0 %v837, 125
    %v847 = vpop.permute.xlu0 %846
    %848 = vrot.lane.b32.xlu0 %v838, 125
    %v849 = vpop.permute.xlu0 %848
    %850 = vrot.lane.b32.xlu0 %v839, 125
    %v851 = vpop.permute.xlu0 %850
    %v856 = vadd.f32 %v830, %v845
    %v857 = vadd.f32 %v831, %v847
    %v858 = vadd.f32 %v832, %v849
    %v859 = vadd.f32 %v833, %v851
    %s860 = sld [smem:[#allocation3 + $0x20]]
    %v861 = vstv %s860
    %v862 = vmul.f32 %v861, %v769
    %v863 = vmul.f32 %v861, %v770
    %v864 = vmul.f32 %v861, %v771
    %v865 = vmul.f32 %v861, %v772
    %870 = vrot.lane.b32.xlu0 %v862, 124
    %v871 = vpop.permute.xlu0 %870
    %872 = vrot.lane.b32.xlu0 %v863, 124
    %v873 = vpop.permute.xlu0 %872
    %874 = vrot.lane.b32.xlu0 %v864, 124
    %v875 = vpop.permute.xlu0 %874
    %876 = vrot.lane.b32.xlu0 %v865, 124
    %v877 = vpop.permute.xlu0 %876
    %v882 = vadd.f32 %v856, %v871
    %v883 = vadd.f32 %v857, %v873
    %v884 = vadd.f32 %v858, %v875
    %v885 = vadd.f32 %v859, %v877
    %s886 = sld [smem:[#allocation3 + $0x21]]
    %v887 = vstv %s886
    %v888 = vmul.f32 %v887, %v769
    %v889 = vmul.f32 %v887, %v770
    %v890 = vmul.f32 %v887, %v771
    %v891 = vmul.f32 %v887, %v772
    %896 = vrot.lane.b32.xlu0 %v888, 123
    %v897 = vpop.permute.xlu0 %896
    %898 = vrot.lane.b32.xlu0 %v889, 123
    %v899 = vpop.permute.xlu0 %898
    %900 = vrot.lane.b32.xlu0 %v890, 123
    %v901 = vpop.permute.xlu0 %900
    %902 = vrot.lane.b32.xlu0 %v891, 123
    %v903 = vpop.permute.xlu0 %902
    %v908 = vadd.f32 %v882, %v897
    %v909 = vadd.f32 %v883, %v899
    %v910 = vadd.f32 %v884, %v901
    %v911 = vadd.f32 %v885, %v903
    %s912 = sld [smem:[#allocation3 + $0x22]]
    %v913 = vstv %s912
    %v914 = vmul.f32 %v913, %v769
    %v915 = vmul.f32 %v913, %v770
    %v916 = vmul.f32 %v913, %v771
    %v917 = vmul.f32 %v913, %v772
    %922 = vrot.lane.b32.xlu0 %v914, 122
    %v923 = vpop.permute.xlu0 %922
    %924 = vrot.lane.b32.xlu0 %v915, 122
    %v925 = vpop.permute.xlu0 %924
    %926 = vrot.lane.b32.xlu0 %v916, 122
    %v927 = vpop.permute.xlu0 %926
    %928 = vrot.lane.b32.xlu0 %v917, 122
    %v929 = vpop.permute.xlu0 %928
    %v934 = vadd.f32 %v908, %v923
    %v935 = vadd.f32 %v909, %v925
    %v936 = vadd.f32 %v910, %v927
    %v937 = vadd.f32 %v911, %v929
    %s938 = sld [smem:[#allocation3 + $0x23]]
    %v939 = vld [vmem:[#allocation2 + $0x5] sm:$0xff]
    %v940 = vld [vmem:[#allocation2 + $0xd] sm:$0xff]
    %v941 = vld [vmem:[#allocation2 + $0x35] sm:$0xff]
    %v942 = vld [vmem:[#allocation2 + $0x3d] sm:$0xff]
    %v943 = vstv %s938
    %v944 = vmul.f32 %v943, %v939
    %v945 = vmul.f32 %v943, %v940
    %v946 = vmul.f32 %v943, %v941
    %v947 = vmul.f32 %v943, %v942
    %v948 = vadd.f32 %v934, %v944
    %v949 = vadd.f32 %v935, %v945
    %v950 = vadd.f32 %v936, %v946
    %v951 = vadd.f32 %v937, %v947
    %s952 = sld [smem:[#allocation3 + $0x24]]
    %v953 = vstv %s952
    %v954 = vmul.f32 %v953, %v939
    %v955 = vmul.f32 %v953, %v940
    %v956 = vmul.f32 %v953, %v941
    %v957 = vmul.f32 %v953, %v942
    %962 = vrot.lane.b32.xlu0 %v954, 127
    %v963 = vpop.permute.xlu0 %962
    %964 = vrot.lane.b32.xlu0 %v955, 127
    %v965 = vpop.permute.xlu0 %964
    %966 = vrot.lane.b32.xlu0 %v956, 127
    %v967 = vpop.permute.xlu0 %966
    %968 = vrot.lane.b32.xlu0 %v957, 127
    %v969 = vpop.permute.xlu0 %968
    %v974 = vadd.f32 %v948, %v963
    %v975 = vadd.f32 %v949, %v965
    %v976 = vadd.f32 %v950, %v967
    %v977 = vadd.f32 %v951, %v969
    %s978 = sld [smem:[#allocation3 + $0x25]]
    %v979 = vstv %s978
    %v980 = vmul.f32 %v979, %v939
    %v981 = vmul.f32 %v979, %v940
    %v982 = vmul.f32 %v979, %v941
    %v983 = vmul.f32 %v979, %v942
    %988 = vrot.lane.b32.xlu0 %v980, 126
    %v989 = vpop.permute.xlu0 %988
    %990 = vrot.lane.b32.xlu0 %v981, 126
    %v991 = vpop.permute.xlu0 %990
    %992 = vrot.lane.b32.xlu0 %v982, 126
    %v993 = vpop.permute.xlu0 %992
    %994 = vrot.lane.b32.xlu0 %v983, 126
    %v995 = vpop.permute.xlu0 %994
    %v1000 = vadd.f32 %v974, %v989
    %v1001 = vadd.f32 %v975, %v991
    %v1002 = vadd.f32 %v976, %v993
    %v1003 = vadd.f32 %v977, %v995
    %s1004 = sld [smem:[#allocation3 + $0x26]]
    %v1005 = vstv %s1004
    %v1006 = vmul.f32 %v1005, %v939
    %v1007 = vmul.f32 %v1005, %v940
    %v1008 = vmul.f32 %v1005, %v941
    %v1009 = vmul.f32 %v1005, %v942
    %1014 = vrot.lane.b32.xlu0 %v1006, 125
    %v1015 = vpop.permute.xlu0 %1014
    %1016 = vrot.lane.b32.xlu0 %v1007, 125
    %v1017 = vpop.permute.xlu0 %1016
    %1018 = vrot.lane.b32.xlu0 %v1008, 125
    %v1019 = vpop.permute.xlu0 %1018
    %1020 = vrot.lane.b32.xlu0 %v1009, 125
    %v1021 = vpop.permute.xlu0 %1020
    %v1026 = vadd.f32 %v1000, %v1015
    %v1027 = vadd.f32 %v1001, %v1017
    %v1028 = vadd.f32 %v1002, %v1019
    %v1029 = vadd.f32 %v1003, %v1021
    %s1030 = sld [smem:[#allocation3 + $0x27]]
    %v1031 = vstv %s1030
    %v1032 = vmul.f32 %v1031, %v939
    %v1033 = vmul.f32 %v1031, %v940
    %v1034 = vmul.f32 %v1031, %v941
    %v1035 = vmul.f32 %v1031, %v942
    %1040 = vrot.lane.b32.xlu0 %v1032, 124
    %v1041 = vpop.permute.xlu0 %1040
    %1042 = vrot.lane.b32.xlu0 %v1033, 124
    %v1043 = vpop.permute.xlu0 %1042
    %1044 = vrot.lane.b32.xlu0 %v1034, 124
    %v1045 = vpop.permute.xlu0 %1044
    %1046 = vrot.lane.b32.xlu0 %v1035, 124
    %v1047 = vpop.permute.xlu0 %1046
    %v1052 = vadd.f32 %v1026, %v1041
    %v1053 = vadd.f32 %v1027, %v1043
    %v1054 = vadd.f32 %v1028, %v1045
    %v1055 = vadd.f32 %v1029, %v1047
    %s1056 = sld [smem:[#allocation3 + $0x28]]
    %v1057 = vstv %s1056
    %v1058 = vmul.f32 %v1057, %v939
    %v1059 = vmul.f32 %v1057, %v940
    %v1060 = vmul.f32 %v1057, %v941
    %v1061 = vmul.f32 %v1057, %v942
    %1066 = vrot.lane.b32.xlu0 %v1058, 123
    %v1067 = vpop.permute.xlu0 %1066
    %1068 = vrot.lane.b32.xlu0 %v1059, 123
    %v1069 = vpop.permute.xlu0 %1068
    %1070 = vrot.lane.b32.xlu0 %v1060, 123
    %v1071 = vpop.permute.xlu0 %1070
    %1072 = vrot.lane.b32.xlu0 %v1061, 123
    %v1073 = vpop.permute.xlu0 %1072
    %v1078 = vadd.f32 %v1052, %v1067
    %v1079 = vadd.f32 %v1053, %v1069
    %v1080 = vadd.f32 %v1054, %v1071
    %v1081 = vadd.f32 %v1055, %v1073
    %s1082 = sld [smem:[#allocation3 + $0x29]]
    %v1083 = vstv %s1082
    %v1084 = vmul.f32 %v1083, %v939
    %v1085 = vmul.f32 %v1083, %v940
    %v1086 = vmul.f32 %v1083, %v941
    %v1087 = vmul.f32 %v1083, %v942
    %1092 = vrot.lane.b32.xlu0 %v1084, 122
    %v1093 = vpop.permute.xlu0 %1092
    %1094 = vrot.lane.b32.xlu0 %v1085, 122
    %v1095 = vpop.permute.xlu0 %1094
    %1096 = vrot.lane.b32.xlu0 %v1086, 122
    %v1097 = vpop.permute.xlu0 %1096
    %1098 = vrot.lane.b32.xlu0 %v1087, 122
    %v1099 = vpop.permute.xlu0 %1098
    %v1104 = vadd.f32 %v1078, %v1093
    %v1105 = vadd.f32 %v1079, %v1095
    %v1106 = vadd.f32 %v1080, %v1097
    %v1107 = vadd.f32 %v1081, %v1099
    %s1108 = sld [smem:[#allocation3 + $0x2a]]
    %v1109 = vld [vmem:[#allocation2 + $0x6] sm:$0xff]
    %v1110 = vld [vmem:[#allocation2 + $0xe] sm:$0xff]
    %v1111 = vld [vmem:[#allocation2 + $0x36] sm:$0xff]
    %v1112 = vld [vmem:[#allocation2 + $0x3e] sm:$0xff]
    %v1113 = vstv %s1108
    %v1114 = vmul.f32 %v1113, %v1109
    %v1115 = vmul.f32 %v1113, %v1110
    %v1116 = vmul.f32 %v1113, %v1111
    %v1117 = vmul.f32 %v1113, %v1112
    %v1118 = vadd.f32 %v1104, %v1114
    %v1119 = vadd.f32 %v1105, %v1115
    %v1120 = vadd.f32 %v1106, %v1116
    %v1121 = vadd.f32 %v1107, %v1117
    %s1122 = sld [smem:[#allocation3 + $0x2b]]
    %v1123 = vstv %s1122
    %v1124 = vmul.f32 %v1123, %v1109
    %v1125 = vmul.f32 %v1123, %v1110
    %v1126 = vmul.f32 %v1123, %v1111
    %v1127 = vmul.f32 %v1123, %v1112
    %1132 = vrot.lane.b32.xlu0 %v1124, 127
    %v1133 = vpop.permute.xlu0 %1132
    %1134 = vrot.lane.b32.xlu0 %v1125, 127
    %v1135 = vpop.permute.xlu0 %1134
    %1136 = vrot.lane.b32.xlu0 %v1126, 127
    %v1137 = vpop.permute.xlu0 %1136
    %1138 = vrot.lane.b32.xlu0 %v1127, 127
    %v1139 = vpop.permute.xlu0 %1138
    %v1144 = vadd.f32 %v1118, %v1133
    %v1145 = vadd.f32 %v1119, %v1135
    %v1146 = vadd.f32 %v1120, %v1137
    %v1147 = vadd.f32 %v1121, %v1139
    %s1148 = sld [smem:[#allocation3 + $0x2c]]
    %v1149 = vstv %s1148
    %v1150 = vmul.f32 %v1149, %v1109
    %v1151 = vmul.f32 %v1149, %v1110
    %v1152 = vmul.f32 %v1149, %v1111
    %v1153 = vmul.f32 %v1149, %v1112
    %1158 = vrot.lane.b32.xlu0 %v1150, 126
    %v1159 = vpop.permute.xlu0 %1158
    %1160 = vrot.lane.b32.xlu0 %v1151, 126
    %v1161 = vpop.permute.xlu0 %1160
    %1162 = vrot.lane.b32.xlu0 %v1152, 126
    %v1163 = vpop.permute.xlu0 %1162
    %1164 = vrot.lane.b32.xlu0 %v1153, 126
    %v1165 = vpop.permute.xlu0 %1164
    %v1170 = vadd.f32 %v1144, %v1159
    %v1171 = vadd.f32 %v1145, %v1161
    %v1172 = vadd.f32 %v1146, %v1163
    %v1173 = vadd.f32 %v1147, %v1165
    %s1174 = sld [smem:[#allocation3 + $0x2d]]
    %v1175 = vstv %s1174
    %v1176 = vmul.f32 %v1175, %v1109
    %v1177 = vmul.f32 %v1175, %v1110
    %v1178 = vmul.f32 %v1175, %v1111
    %v1179 = vmul.f32 %v1175, %v1112
    %1184 = vrot.lane.b32.xlu0 %v1176, 125
    %v1185 = vpop.permute.xlu0 %1184
    %1186 = vrot.lane.b32.xlu0 %v1177, 125
    %v1187 = vpop.permute.xlu0 %1186
    %1188 = vrot.lane.b32.xlu0 %v1178, 125
    %v1189 = vpop.permute.xlu0 %1188
    %1190 = vrot.lane.b32.xlu0 %v1179, 125
    %v1191 = vpop.permute.xlu0 %1190
    %v1196 = vadd.f32 %v1170, %v1185
    %v1197 = vadd.f32 %v1171, %v1187
    %v1198 = vadd.f32 %v1172, %v1189
    %v1199 = vadd.f32 %v1173, %v1191
    %s1200 = sld [smem:[#allocation3 + $0x2e]]
    %v1201 = vstv %s1200
    %v1202 = vmul.f32 %v1201, %v1109
    %v1203 = vmul.f32 %v1201, %v1110
    %v1204 = vmul.f32 %v1201, %v1111
    %v1205 = vmul.f32 %v1201, %v1112
    %1210 = vrot.lane.b32.xlu0 %v1202, 124
    %v1211 = vpop.permute.xlu0 %1210
    %1212 = vrot.lane.b32.xlu0 %v1203, 124
    %v1213 = vpop.permute.xlu0 %1212
    %1214 = vrot.lane.b32.xlu0 %v1204, 124
    %v1215 = vpop.permute.xlu0 %1214
    %1216 = vrot.lane.b32.xlu0 %v1205, 124
    %v1217 = vpop.permute.xlu0 %1216
    %v1222 = vadd.f32 %v1196, %v1211
    %v1223 = vadd.f32 %v1197, %v1213
    %v1224 = vadd.f32 %v1198, %v1215
    %v1225 = vadd.f32 %v1199, %v1217
    %s1226 = sld [smem:[#allocation3 + $0x2f]]
    %v1227 = vstv %s1226
    %v1228 = vmul.f32 %v1227, %v1109
    %v1229 = vmul.f32 %v1227, %v1110
    %v1230 = vmul.f32 %v1227, %v1111
    %v1231 = vmul.f32 %v1227, %v1112
    %1236 = vrot.lane.b32.xlu0 %v1228, 123
    %v1237 = vpop.permute.xlu0 %1236
    %1238 = vrot.lane.b32.xlu0 %v1229, 123
    %v1239 = vpop.permute.xlu0 %1238
    %1240 = vrot.lane.b32.xlu0 %v1230, 123
    %v1241 = vpop.permute.xlu0 %1240
    %1242 = vrot.lane.b32.xlu0 %v1231, 123
    %v1243 = vpop.permute.xlu0 %1242
    %v1248 = vadd.f32 %v1222, %v1237
    %v1249 = vadd.f32 %v1223, %v1239
    %v1250 = vadd.f32 %v1224, %v1241
    %v1251 = vadd.f32 %v1225, %v1243
    %s1252 = sld [smem:[#allocation3 + $0x30]]
    %v1253 = vstv %s1252
    %v1254 = vmul.f32 %v1253, %v1109
    %v1255 = vmul.f32 %v1253, %v1110
    %v1256 = vmul.f32 %v1253, %v1111
    %v1257 = vmul.f32 %v1253, %v1112
    %1262 = vrot.lane.b32.xlu0 %v1254, 122
    %v1263 = vpop.permute.xlu0 %1262
    %1264 = vrot.lane.b32.xlu0 %v1255, 122
    %v1265 = vpop.permute.xlu0 %1264
    %1266 = vrot.lane.b32.xlu0 %v1256, 122
    %v1267 = vpop.permute.xlu0 %1266
    %1268 = vrot.lane.b32.xlu0 %v1257, 122
    %v1269 = vpop.permute.xlu0 %1268
    %v1274 = vadd.f32 %v1248, %v1263
    %v1275 = vadd.f32 %v1249, %v1265
    %v1276 = vadd.f32 %v1250, %v1267
    %v1277 = vadd.f32 %v1251, %v1269
    %s1278 = sld [smem:[#allocation3 + $0x31]]
    %s1279 = scalar_lea.vmem [#allocation2], 24
    %v1280 = vld [vmem:[%s1279] sm:$0xff]
    %v1281 = vld [vmem:[%s1279 + $0x8] sm:$0xff]
    %v1282 = vld [vmem:[%s1279 + $0x30] sm:$0xff]
    %v1283 = vld [vmem:[%s1279 + $0x38] sm:$0xff]
    %v1284 = vstv %s1278
    %v1285 = vmul.f32 %v1284, %v1280
    %v1286 = vmul.f32 %v1284, %v1281
    %v1287 = vmul.f32 %v1284, %v1282
    %v1288 = vmul.f32 %v1284, %v1283
    %v1289 = vadd.f32 %v1274, %v1285
    %v1290 = vadd.f32 %v1275, %v1286
    %v1291 = vadd.f32 %v1276, %v1287
    %v1292 = vadd.f32 %v1277, %v1288
    %s1293 = sld [smem:[#allocation3 + $0x32]]
    %v1294 = vstv %s1293
    %v1295 = vmul.f32 %v1294, %v1280
    %v1296 = vmul.f32 %v1294, %v1281
    %v1297 = vmul.f32 %v1294, %v1282
    %v1298 = vmul.f32 %v1294, %v1283
    %1303 = vrot.lane.b32.xlu0 %v1295, 127
    %v1304 = vpop.permute.xlu0 %1303
    %1305 = vrot.lane.b32.xlu0 %v1296, 127
    %v1306 = vpop.permute.xlu0 %1305
    %1307 = vrot.lane.b32.xlu0 %v1297, 127
    %v1308 = vpop.permute.xlu0 %1307
    %1309 = vrot.lane.b32.xlu0 %v1298, 127
    %v1310 = vpop.permute.xlu0 %1309
    %v1315 = vadd.f32 %v1289, %v1304
    %v1316 = vadd.f32 %v1290, %v1306
    %v1317 = vadd.f32 %v1291, %v1308
    %v1318 = vadd.f32 %v1292, %v1310
    %s1319 = sld [smem:[#allocation3 + $0x33]]
    %v1320 = vstv %s1319
    %v1321 = vmul.f32 %v1320, %v1280
    %v1322 = vmul.f32 %v1320, %v1281
    %v1323 = vmul.f32 %v1320, %v1282
    %v1324 = vmul.f32 %v1320, %v1283
    %1329 = vrot.lane.b32.xlu0 %v1321, 126
    %v1330 = vpop.permute.xlu0 %1329
    %1331 = vrot.lane.b32.xlu0 %v1322, 126
    %v1332 = vpop.permute.xlu0 %1331
    %1333 = vrot.lane.b32.xlu0 %v1323, 126
    %v1334 = vpop.permute.xlu0 %1333
    %1335 = vrot.lane.b32.xlu0 %v1324, 126
    %v1336 = vpop.permute.xlu0 %1335
    %v1341 = vadd.f32 %v1315, %v1330
    %v1342 = vadd.f32 %v1316, %v1332
    %v1343 = vadd.f32 %v1317, %v1334
    %v1344 = vadd.f32 %v1318, %v1336
    %s1345 = sld [smem:[#allocation3 + $0x34]]
    %v1346 = vstv %s1345
    %v1347 = vmul.f32 %v1346, %v1280
    %v1348 = vmul.f32 %v1346, %v1281
    %v1349 = vmul.f32 %v1346, %v1282
    %v1350 = vmul.f32 %v1346, %v1283
    %1355 = vrot.lane.b32.xlu0 %v1347, 125
    %v1356 = vpop.permute.xlu0 %1355
    %1357 = vrot.lane.b32.xlu0 %v1348, 125
    %v1358 = vpop.permute.xlu0 %1357
    %1359 = vrot.lane.b32.xlu0 %v1349, 125
    %v1360 = vpop.permute.xlu0 %1359
    %1361 = vrot.lane.b32.xlu0 %v1350, 125
    %v1362 = vpop.permute.xlu0 %1361
    %v1367 = vadd.f32 %v1341, %v1356
    %v1368 = vadd.f32 %v1342, %v1358
    %v1369 = vadd.f32 %v1343, %v1360
    %v1370 = vadd.f32 %v1344, %v1362
    %s1371 = sld [smem:[#allocation3 + $0x35]]
    %v1372 = vstv %s1371
    %v1373 = vmul.f32 %v1372, %v1280
    %v1374 = vmul.f32 %v1372, %v1281
    %v1375 = vmul.f32 %v1372, %v1282
    %v1376 = vmul.f32 %v1372, %v1283
    %1381 = vrot.lane.b32.xlu0 %v1373, 124
    %v1382 = vpop.permute.xlu0 %1381
    %1383 = vrot.lane.b32.xlu0 %v1374, 124
    %v1384 = vpop.permute.xlu0 %1383
    %1385 = vrot.lane.b32.xlu0 %v1375, 124
    %v1386 = vpop.permute.xlu0 %1385
    %1387 = vrot.lane.b32.xlu0 %v1376, 124
    %v1388 = vpop.permute.xlu0 %1387
    %v1393 = vadd.f32 %v1367, %v1382
    %v1394 = vadd.f32 %v1368, %v1384
    %v1395 = vadd.f32 %v1369, %v1386
    %v1396 = vadd.f32 %v1370, %v1388
    %s1397 = sld [smem:[#allocation3 + $0x36]]
    %v1398 = vstv %s1397
    %v1399 = vmul.f32 %v1398, %v1280
    %v1400 = vmul.f32 %v1398, %v1281
    %v1401 = vmul.f32 %v1398, %v1282
    %v1402 = vmul.f32 %v1398, %v1283
    %1407 = vrot.lane.b32.xlu0 %v1399, 123
    %v1408 = vpop.permute.xlu0 %1407
    %1409 = vrot.lane.b32.xlu0 %v1400, 123
    %v1410 = vpop.permute.xlu0 %1409
    %1411 = vrot.lane.b32.xlu0 %v1401, 123
    %v1412 = vpop.permute.xlu0 %1411
    %1413 = vrot.lane.b32.xlu0 %v1402, 123
    %v1414 = vpop.permute.xlu0 %1413
    %v1419 = vadd.f32 %v1393, %v1408
    %v1420 = vadd.f32 %v1394, %v1410
    %v1421 = vadd.f32 %v1395, %v1412
    %v1422 = vadd.f32 %v1396, %v1414
    %s1423 = sld [smem:[#allocation3 + $0x37]]
    %v1424 = vstv %s1423
    %v1425 = vmul.f32 %v1424, %v1280
    %v1426 = vmul.f32 %v1424, %v1281
    %v1427 = vmul.f32 %v1424, %v1282
    %v1428 = vmul.f32 %v1424, %v1283
    %1433 = vrot.lane.b32.xlu0 %v1425, 122
    %v1434 = vpop.permute.xlu0 %1433
    %1435 = vrot.lane.b32.xlu0 %v1426, 122
    %v1436 = vpop.permute.xlu0 %1435
    %1437 = vrot.lane.b32.xlu0 %v1427, 122
    %v1438 = vpop.permute.xlu0 %1437
    %1439 = vrot.lane.b32.xlu0 %v1428, 122
    %v1440 = vpop.permute.xlu0 %1439
    %v1445 = vadd.f32 %v1419, %v1434
    %v1446 = vadd.f32 %v1420, %v1436
    %v1447 = vadd.f32 %v1421, %v1438
    %v1448 = vadd.f32 %v1422, %v1440
    %s1449 = sld [smem:[#allocation3 + $0x38]]
    %v1450 = vld [vmem:[%s1279 + $0x1] sm:$0xff]
    %v1451 = vld [vmem:[%s1279 + $0x9] sm:$0xff]
    %v1452 = vld [vmem:[%s1279 + $0x31] sm:$0xff]
    %v1453 = vld [vmem:[%s1279 + $0x39] sm:$0xff]
    %v1454 = vstv %s1449
    %v1455 = vmul.f32 %v1454, %v1450
    %v1456 = vmul.f32 %v1454, %v1451
    %v1457 = vmul.f32 %v1454, %v1452
    %v1458 = vmul.f32 %v1454, %v1453
    %v1459 = vadd.f32 %v1445, %v1455
    %v1460 = vadd.f32 %v1446, %v1456
    %v1461 = vadd.f32 %v1447, %v1457
    %v1462 = vadd.f32 %v1448, %v1458
    %s1463 = sld [smem:[#allocation3 + $0x39]]
    %v1464 = vstv %s1463
    %v1465 = vmul.f32 %v1464, %v1450
    %v1466 = vmul.f32 %v1464, %v1451
    %v1467 = vmul.f32 %v1464, %v1452
    %v1468 = vmul.f32 %v1464, %v1453
    %1473 = vrot.lane.b32.xlu0 %v1465, 127
    %v1474 = vpop.permute.xlu0 %1473
    %1475 = vrot.lane.b32.xlu0 %v1466, 127
    %v1476 = vpop.permute.xlu0 %1475
    %1477 = vrot.lane.b32.xlu0 %v1467, 127
    %v1478 = vpop.permute.xlu0 %1477
    %1479 = vrot.lane.b32.xlu0 %v1468, 127
    %v1480 = vpop.permute.xlu0 %1479
    %v1485 = vadd.f32 %v1459, %v1474
    %v1486 = vadd.f32 %v1460, %v1476
    %v1487 = vadd.f32 %v1461, %v1478
    %v1488 = vadd.f32 %v1462, %v1480
    %s1489 = sld [smem:[#allocation3 + $0x3a]]
    %v1490 = vstv %s1489
    %v1491 = vmul.f32 %v1490, %v1450
    %v1492 = vmul.f32 %v1490, %v1451
    %v1493 = vmul.f32 %v1490, %v1452
    %v1494 = vmul.f32 %v1490, %v1453
    %1499 = vrot.lane.b32.xlu0 %v1491, 126
    %v1500 = vpop.permute.xlu0 %1499
    %1501 = vrot.lane.b32.xlu0 %v1492, 126
    %v1502 = vpop.permute.xlu0 %1501
    %1503 = vrot.lane.b32.xlu0 %v1493, 126
    %v1504 = vpop.permute.xlu0 %1503
    %1505 = vrot.lane.b32.xlu0 %v1494, 126
    %v1506 = vpop.permute.xlu0 %1505
    %v1511 = vadd.f32 %v1485, %v1500
    %v1512 = vadd.f32 %v1486, %v1502
    %v1513 = vadd.f32 %v1487, %v1504
    %v1514 = vadd.f32 %v1488, %v1506
    %s1515 = sld [smem:[#allocation3 + $0x3b]]
    %v1516 = vstv %s1515
    %v1517 = vmul.f32 %v1516, %v1450
    %v1518 = vmul.f32 %v1516, %v1451
    %v1519 = vmul.f32 %v1516, %v1452
    %v1520 = vmul.f32 %v1516, %v1453
    %1525 = vrot.lane.b32.xlu0 %v1517, 125
    %v1526 = vpop.permute.xlu0 %1525
    %1527 = vrot.lane.b32.xlu0 %v1518, 125
    %v1528 = vpop.permute.xlu0 %1527
    %1529 = vrot.lane.b32.xlu0 %v1519, 125
    %v1530 = vpop.permute.xlu0 %1529
    %1531 = vrot.lane.b32.xlu0 %v1520, 125
    %v1532 = vpop.permute.xlu0 %1531
    %v1537 = vadd.f32 %v1511, %v1526
    %v1538 = vadd.f32 %v1512, %v1528
    %v1539 = vadd.f32 %v1513, %v1530
    %v1540 = vadd.f32 %v1514, %v1532
    %s1541 = sld [smem:[#allocation3 + $0x3c]]
    %v1542 = vstv %s1541
    %v1543 = vmul.f32 %v1542, %v1450
    %v1544 = vmul.f32 %v1542, %v1451
    %v1545 = vmul.f32 %v1542, %v1452
    %v1546 = vmul.f32 %v1542, %v1453
    %1551 = vrot.lane.b32.xlu0 %v1543, 124
    %v1552 = vpop.permute.xlu0 %1551
    %1553 = vrot.lane.b32.xlu0 %v1544, 124
    %v1554 = vpop.permute.xlu0 %1553
    %1555 = vrot.lane.b32.xlu0 %v1545, 124
    %v1556 = vpop.permute.xlu0 %1555
    %1557 = vrot.lane.b32.xlu0 %v1546, 124
    %v1558 = vpop.permute.xlu0 %1557
    %v1563 = vadd.f32 %v1537, %v1552
    %v1564 = vadd.f32 %v1538, %v1554
    %v1565 = vadd.f32 %v1539, %v1556
    %v1566 = vadd.f32 %v1540, %v1558
    %s1567 = sld [smem:[#allocation3 + $0x3d]]
    %v1568 = vstv %s1567
    %v1569 = vmul.f32 %v1568, %v1450
    %v1570 = vmul.f32 %v1568, %v1451
    %v1571 = vmul.f32 %v1568, %v1452
    %v1572 = vmul.f32 %v1568, %v1453
    %1577 = vrot.lane.b32.xlu0 %v1569, 123
    %v1578 = vpop.permute.xlu0 %1577
    %1579 = vrot.lane.b32.xlu0 %v1570, 123
    %v1580 = vpop.permute.xlu0 %1579
    %1581 = vrot.lane.b32.xlu0 %v1571, 123
    %v1582 = vpop.permute.xlu0 %1581
    %1583 = vrot.lane.b32.xlu0 %v1572, 123
    %v1584 = vpop.permute.xlu0 %1583
    %v1589 = vadd.f32 %v1563, %v1578
    %v1590 = vadd.f32 %v1564, %v1580
    %v1591 = vadd.f32 %v1565, %v1582
    %v1592 = vadd.f32 %v1566, %v1584
    %s1593 = sld [smem:[#allocation3 + $0x3e]]
    %v1594 = vstv %s1593
    %v1595 = vmul.f32 %v1594, %v1450
    %v1596 = vmul.f32 %v1594, %v1451
    %v1597 = vmul.f32 %v1594, %v1452
    %v1598 = vmul.f32 %v1594, %v1453
    %1603 = vrot.lane.b32.xlu0 %v1595, 122
    %v1604 = vpop.permute.xlu0 %1603
    %1605 = vrot.lane.b32.xlu0 %v1596, 122
    %v1606 = vpop.permute.xlu0 %1605
    %1607 = vrot.lane.b32.xlu0 %v1597, 122
    %v1608 = vpop.permute.xlu0 %1607
    %1609 = vrot.lane.b32.xlu0 %v1598, 122
    %v1610 = vpop.permute.xlu0 %1609
    %v1615 = vadd.f32 %v1589, %v1604
    %v1616 = vadd.f32 %v1590, %v1606
    %v1617 = vadd.f32 %v1591, %v1608
    %v1618 = vadd.f32 %v1592, %v1610
    %s1619 = sld [smem:[#allocation3 + $0x3f]]
    %v1620 = vld [vmem:[%s1279 + $0x2] sm:$0xff]
    %v1621 = vld [vmem:[%s1279 + $0xa] sm:$0xff]
    %v1622 = vld [vmem:[%s1279 + $0x32] sm:$0xff]
    %v1623 = vld [vmem:[%s1279 + $0x3a] sm:$0xff]
    %v1624 = vstv %s1619
    %v1625 = vmul.f32 %v1624, %v1620
    %v1626 = vmul.f32 %v1624, %v1621
    %v1627 = vmul.f32 %v1624, %v1622
    %v1628 = vmul.f32 %v1624, %v1623
    %v1629 = vadd.f32 %v1615, %v1625
    %v1630 = vadd.f32 %v1616, %v1626
    %v1631 = vadd.f32 %v1617, %v1627
    %v1632 = vadd.f32 %v1618, %v1628
    %s1633 = sld [smem:[#allocation3 + $0x40]]
    %v1634 = vstv %s1633
    %v1635 = vmul.f32 %v1634, %v1620
    %v1636 = vmul.f32 %v1634, %v1621
    %v1637 = vmul.f32 %v1634, %v1622
    %v1638 = vmul.f32 %v1634, %v1623
    %1643 = vrot.lane.b32.xlu0 %v1635, 127
    %v1644 = vpop.permute.xlu0 %1643
    %1645 = vrot.lane.b32.xlu0 %v1636, 127
    %v1646 = vpop.permute.xlu0 %1645
    %1647 = vrot.lane.b32.xlu0 %v1637, 127
    %v1648 = vpop.permute.xlu0 %1647
    %1649 = vrot.lane.b32.xlu0 %v1638, 127
    %v1650 = vpop.permute.xlu0 %1649
    %v1655 = vadd.f32 %v1629, %v1644
    %v1656 = vadd.f32 %v1630, %v1646
    %v1657 = vadd.f32 %v1631, %v1648
    %v1658 = vadd.f32 %v1632, %v1650
    %s1659 = sld [smem:[#allocation3 + $0x41]]
    %v1660 = vstv %s1659
    %v1661 = vmul.f32 %v1660, %v1620
    %v1662 = vmul.f32 %v1660, %v1621
    %v1663 = vmul.f32 %v1660, %v1622
    %v1664 = vmul.f32 %v1660, %v1623
    %1669 = vrot.lane.b32.xlu0 %v1661, 126
    %v1670 = vpop.permute.xlu0 %1669
    %1671 = vrot.lane.b32.xlu0 %v1662, 126
    %v1672 = vpop.permute.xlu0 %1671
    %1673 = vrot.lane.b32.xlu0 %v1663, 126
    %v1674 = vpop.permute.xlu0 %1673
    %1675 = vrot.lane.b32.xlu0 %v1664, 126
    %v1676 = vpop.permute.xlu0 %1675
    %v1681 = vadd.f32 %v1655, %v1670
    %v1682 = vadd.f32 %v1656, %v1672
    %v1683 = vadd.f32 %v1657, %v1674
    %v1684 = vadd.f32 %v1658, %v1676
    %s1685 = sld [smem:[#allocation3 + $0x42]]
    %v1686 = vstv %s1685
    %v1687 = vmul.f32 %v1686, %v1620
    %v1688 = vmul.f32 %v1686, %v1621
    %v1689 = vmul.f32 %v1686, %v1622
    %v1690 = vmul.f32 %v1686, %v1623
    %1695 = vrot.lane.b32.xlu0 %v1687, 125
    %v1696 = vpop.permute.xlu0 %1695
    %1697 = vrot.lane.b32.xlu0 %v1688, 125
    %v1698 = vpop.permute.xlu0 %1697
    %1699 = vrot.lane.b32.xlu0 %v1689, 125
    %v1700 = vpop.permute.xlu0 %1699
    %1701 = vrot.lane.b32.xlu0 %v1690, 125
    %v1702 = vpop.permute.xlu0 %1701
    %v1707 = vadd.f32 %v1681, %v1696
    %v1708 = vadd.f32 %v1682, %v1698
    %v1709 = vadd.f32 %v1683, %v1700
    %v1710 = vadd.f32 %v1684, %v1702
    %s1711 = sld [smem:[#allocation3 + $0x43]]
    %v1712 = vstv %s1711
    %v1713 = vmul.f32 %v1712, %v1620
    %v1714 = vmul.f32 %v1712, %v1621
    %v1715 = vmul.f32 %v1712, %v1622
    %v1716 = vmul.f32 %v1712, %v1623
    %1721 = vrot.lane.b32.xlu0 %v1713, 124
    %v1722 = vpop.permute.xlu0 %1721
    %1723 = vrot.lane.b32.xlu0 %v1714, 124
    %v1724 = vpop.permute.xlu0 %1723
    %1725 = vrot.lane.b32.xlu0 %v1715, 124
    %v1726 = vpop.permute.xlu0 %1725
    %1727 = vrot.lane.b32.xlu0 %v1716, 124
    %v1728 = vpop.permute.xlu0 %1727
    %v1733 = vadd.f32 %v1707, %v1722
    %v1734 = vadd.f32 %v1708, %v1724
    %v1735 = vadd.f32 %v1709, %v1726
    %v1736 = vadd.f32 %v1710, %v1728
    %s1737 = sld [smem:[#allocation3 + $0x44]]
    %v1738 = vstv %s1737
    %v1739 = vmul.f32 %v1738, %v1620
    %v1740 = vmul.f32 %v1738, %v1621
    %v1741 = vmul.f32 %v1738, %v1622
    %v1742 = vmul.f32 %v1738, %v1623
    %1747 = vrot.lane.b32.xlu0 %v1739, 123
    %v1748 = vpop.permute.xlu0 %1747
    %1749 = vrot.lane.b32.xlu0 %v1740, 123
    %v1750 = vpop.permute.xlu0 %1749
    %1751 = vrot.lane.b32.xlu0 %v1741, 123
    %v1752 = vpop.permute.xlu0 %1751
    %1753 = vrot.lane.b32.xlu0 %v1742, 123
    %v1754 = vpop.permute.xlu0 %1753
    %v1759 = vadd.f32 %v1733, %v1748
    %v1760 = vadd.f32 %v1734, %v1750
    %v1761 = vadd.f32 %v1735, %v1752
    %v1762 = vadd.f32 %v1736, %v1754
    %s1763 = sld [smem:[#allocation3 + $0x45]]
    %v1764 = vstv %s1763
    %v1765 = vmul.f32 %v1764, %v1620
    %v1766 = vmul.f32 %v1764, %v1621
    %v1767 = vmul.f32 %v1764, %v1622
    %v1768 = vmul.f32 %v1764, %v1623
    %1773 = vrot.lane.b32.xlu0 %v1765, 122
    %v1774 = vpop.permute.xlu0 %1773
    %1775 = vrot.lane.b32.xlu0 %v1766, 122
    %v1776 = vpop.permute.xlu0 %1775
    %1777 = vrot.lane.b32.xlu0 %v1767, 122
    %v1778 = vpop.permute.xlu0 %1777
    %1779 = vrot.lane.b32.xlu0 %v1768, 122
    %v1780 = vpop.permute.xlu0 %1779
    %v1785 = vadd.f32 %v1759, %v1774
    %v1786 = vadd.f32 %v1760, %v1776
    %v1787 = vadd.f32 %v1761, %v1778
    %v1788 = vadd.f32 %v1762, %v1780
    %s1789 = sld [smem:[#allocation3 + $0x46]]
    %v1790 = vld [vmem:[%s1279 + $0x3] sm:$0xff]
    %v1791 = vld [vmem:[%s1279 + $0xb] sm:$0xff]
    %v1792 = vld [vmem:[%s1279 + $0x33] sm:$0xff]
    %v1793 = vld [vmem:[%s1279 + $0x3b] sm:$0xff]
    %v1794 = vstv %s1789
    %v1795 = vmul.f32 %v1794, %v1790
    %v1796 = vmul.f32 %v1794, %v1791
    %v1797 = vmul.f32 %v1794, %v1792
    %v1798 = vmul.f32 %v1794, %v1793
    %v1799 = vadd.f32 %v1785, %v1795
    %v1800 = vadd.f32 %v1786, %v1796
    %v1801 = vadd.f32 %v1787, %v1797
    %v1802 = vadd.f32 %v1788, %v1798
    %s1803 = sld [smem:[#allocation3 + $0x47]]
    %v1804 = vstv %s1803
    %v1805 = vmul.f32 %v1804, %v1790
    %v1806 = vmul.f32 %v1804, %v1791
    %v1807 = vmul.f32 %v1804, %v1792
    %v1808 = vmul.f32 %v1804, %v1793
    %1813 = vrot.lane.b32.xlu0 %v1805, 127
    %v1814 = vpop.permute.xlu0 %1813
    %1815 = vrot.lane.b32.xlu0 %v1806, 127
    %v1816 = vpop.permute.xlu0 %1815
    %1817 = vrot.lane.b32.xlu0 %v1807, 127
    %v1818 = vpop.permute.xlu0 %1817
    %1819 = vrot.lane.b32.xlu0 %v1808, 127
    %v1820 = vpop.permute.xlu0 %1819
    %v1825 = vadd.f32 %v1799, %v1814
    %v1826 = vadd.f32 %v1800, %v1816
    %v1827 = vadd.f32 %v1801, %v1818
    %v1828 = vadd.f32 %v1802, %v1820
    %s1829 = sld [smem:[#allocation3 + $0x48]]
    %v1830 = vstv %s1829
    %v1831 = vmul.f32 %v1830, %v1790
    %v1832 = vmul.f32 %v1830, %v1791
    %v1833 = vmul.f32 %v1830, %v1792
    %v1834 = vmul.f32 %v1830, %v1793
    %1839 = vrot.lane.b32.xlu0 %v1831, 126
    %v1840 = vpop.permute.xlu0 %1839
    %1841 = vrot.lane.b32.xlu0 %v1832, 126
    %v1842 = vpop.permute.xlu0 %1841
    %1843 = vrot.lane.b32.xlu0 %v1833, 126
    %v1844 = vpop.permute.xlu0 %1843
    %1845 = vrot.lane.b32.xlu0 %v1834, 126
    %v1846 = vpop.permute.xlu0 %1845
    %v1851 = vadd.f32 %v1825, %v1840
    %v1852 = vadd.f32 %v1826, %v1842
    %v1853 = vadd.f32 %v1827, %v1844
    %v1854 = vadd.f32 %v1828, %v1846
    %s1855 = sld [smem:[#allocation3 + $0x49]]
    %v1856 = vstv %s1855
    %v1857 = vmul.f32 %v1856, %v1790
    %v1858 = vmul.f32 %v1856, %v1791
    %v1859 = vmul.f32 %v1856, %v1792
    %v1860 = vmul.f32 %v1856, %v1793
    %1865 = vrot.lane.b32.xlu0 %v1857, 125
    %v1866 = vpop.permute.xlu0 %1865
    %1867 = vrot.lane.b32.xlu0 %v1858, 125
    %v1868 = vpop.permute.xlu0 %1867
    %1869 = vrot.lane.b32.xlu0 %v1859, 125
    %v1870 = vpop.permute.xlu0 %1869
    %1871 = vrot.lane.b32.xlu0 %v1860, 125
    %v1872 = vpop.permute.xlu0 %1871
    %v1877 = vadd.f32 %v1851, %v1866
    %v1878 = vadd.f32 %v1852, %v1868
    %v1879 = vadd.f32 %v1853, %v1870
    %v1880 = vadd.f32 %v1854, %v1872
    %s1881 = sld [smem:[#allocation3 + $0x4a]]
    %v1882 = vstv %s1881
    %v1883 = vmul.f32 %v1882, %v1790
    %v1884 = vmul.f32 %v1882, %v1791
    %v1885 = vmul.f32 %v1882, %v1792
    %v1886 = vmul.f32 %v1882, %v1793
    %1891 = vrot.lane.b32.xlu0 %v1883, 124
    %v1892 = vpop.permute.xlu0 %1891
    %1893 = vrot.lane.b32.xlu0 %v1884, 124
    %v1894 = vpop.permute.xlu0 %1893
    %1895 = vrot.lane.b32.xlu0 %v1885, 124
    %v1896 = vpop.permute.xlu0 %1895
    %1897 = vrot.lane.b32.xlu0 %v1886, 124
    %v1898 = vpop.permute.xlu0 %1897
    %v1903 = vadd.f32 %v1877, %v1892
    %v1904 = vadd.f32 %v1878, %v1894
    %v1905 = vadd.f32 %v1879, %v1896
    %v1906 = vadd.f32 %v1880, %v1898
    %s1907 = sld [smem:[#allocation3 + $0x4b]]
    %v1908 = vstv %s1907
    %v1909 = vmul.f32 %v1908, %v1790
    %v1910 = vmul.f32 %v1908, %v1791
    %v1911 = vmul.f32 %v1908, %v1792
    %v1912 = vmul.f32 %v1908, %v1793
    %1917 = vrot.lane.b32.xlu0 %v1909, 123
    %v1918 = vpop.permute.xlu0 %1917
    %1919 = vrot.lane.b32.xlu0 %v1910, 123
    %v1920 = vpop.permute.xlu0 %1919
    %1921 = vrot.lane.b32.xlu0 %v1911, 123
    %v1922 = vpop.permute.xlu0 %1921
    %1923 = vrot.lane.b32.xlu0 %v1912, 123
    %v1924 = vpop.permute.xlu0 %1923
    %v1929 = vadd.f32 %v1903, %v1918
    %v1930 = vadd.f32 %v1904, %v1920
    %v1931 = vadd.f32 %v1905, %v1922
    %v1932 = vadd.f32 %v1906, %v1924
    %s1933 = sld [smem:[#allocation3 + $0x4c]]
    %v1934 = vstv %s1933
    %v1935 = vmul.f32 %v1934, %v1790
    %v1936 = vmul.f32 %v1934, %v1791
    %v1937 = vmul.f32 %v1934, %v1792
    %v1938 = vmul.f32 %v1934, %v1793
    %1943 = vrot.lane.b32.xlu0 %v1935, 122
    %v1944 = vpop.permute.xlu0 %1943
    %1945 = vrot.lane.b32.xlu0 %v1936, 122
    %v1946 = vpop.permute.xlu0 %1945
    %1947 = vrot.lane.b32.xlu0 %v1937, 122
    %v1948 = vpop.permute.xlu0 %1947
    %1949 = vrot.lane.b32.xlu0 %v1938, 122
    %v1950 = vpop.permute.xlu0 %1949
    %v1955 = vadd.f32 %v1929, %v1944
    %v1956 = vadd.f32 %v1930, %v1946
    %v1957 = vadd.f32 %v1931, %v1948
    %v1958 = vadd.f32 %v1932, %v1950
    %s1959 = sld [smem:[#allocation3 + $0x4d]]
    %v1960 = vld [vmem:[%s1279 + $0x4] sm:$0xff]
    %v1961 = vld [vmem:[%s1279 + $0xc] sm:$0xff]
    %v1962 = vld [vmem:[%s1279 + $0x34] sm:$0xff]
    %v1963 = vld [vmem:[%s1279 + $0x3c] sm:$0xff]
    %v1964 = vstv %s1959
    %v1965 = vmul.f32 %v1964, %v1960
    %v1966 = vmul.f32 %v1964, %v1961
    %v1967 = vmul.f32 %v1964, %v1962
    %v1968 = vmul.f32 %v1964, %v1963
    %v1969 = vadd.f32 %v1955, %v1965
    %v1970 = vadd.f32 %v1956, %v1966
    %v1971 = vadd.f32 %v1957, %v1967
    %v1972 = vadd.f32 %v1958, %v1968
    %s1973 = sld [smem:[#allocation3 + $0x4e]]
    %v1974 = vstv %s1973
    %v1975 = vmul.f32 %v1974, %v1960
    %v1976 = vmul.f32 %v1974, %v1961
    %v1977 = vmul.f32 %v1974, %v1962
    %v1978 = vmul.f32 %v1974, %v1963
    %1983 = vrot.lane.b32.xlu0 %v1975, 127
    %v1984 = vpop.permute.xlu0 %1983
    %1985 = vrot.lane.b32.xlu0 %v1976, 127
    %v1986 = vpop.permute.xlu0 %1985
    %1987 = vrot.lane.b32.xlu0 %v1977, 127
    %v1988 = vpop.permute.xlu0 %1987
    %1989 = vrot.lane.b32.xlu0 %v1978, 127
    %v1990 = vpop.permute.xlu0 %1989
    %v1995 = vadd.f32 %v1969, %v1984
    %v1996 = vadd.f32 %v1970, %v1986
    %v1997 = vadd.f32 %v1971, %v1988
    %v1998 = vadd.f32 %v1972, %v1990
    %s1999 = sld [smem:[#allocation3 + $0x4f]]
    %v2000 = vstv %s1999
    %v2001 = vmul.f32 %v2000, %v1960
    %v2002 = vmul.f32 %v2000, %v1961
    %v2003 = vmul.f32 %v2000, %v1962
    %v2004 = vmul.f32 %v2000, %v1963
    %2009 = vrot.lane.b32.xlu0 %v2001, 126
    %v2010 = vpop.permute.xlu0 %2009
    %2011 = vrot.lane.b32.xlu0 %v2002, 126
    %v2012 = vpop.permute.xlu0 %2011
    %2013 = vrot.lane.b32.xlu0 %v2003, 126
    %v2014 = vpop.permute.xlu0 %2013
    %2015 = vrot.lane.b32.xlu0 %v2004, 126
    %v2016 = vpop.permute.xlu0 %2015
    %v2021 = vadd.f32 %v1995, %v2010
    %v2022 = vadd.f32 %v1996, %v2012
    %v2023 = vadd.f32 %v1997, %v2014
    %v2024 = vadd.f32 %v1998, %v2016
    %s2025 = sld [smem:[#allocation3 + $0x50]]
    %v2026 = vstv %s2025
    %v2027 = vmul.f32 %v2026, %v1960
    %v2028 = vmul.f32 %v2026, %v1961
    %v2029 = vmul.f32 %v2026, %v1962
    %v2030 = vmul.f32 %v2026, %v1963
    %2035 = vrot.lane.b32.xlu0 %v2027, 125
    %v2036 = vpop.permute.xlu0 %2035
    %2037 = vrot.lane.b32.xlu0 %v2028, 125
    %v2038 = vpop.permute.xlu0 %2037
    %2039 = vrot.lane.b32.xlu0 %v2029, 125
    %v2040 = vpop.permute.xlu0 %2039
    %2041 = vrot.lane.b32.xlu0 %v2030, 125
    %v2042 = vpop.permute.xlu0 %2041
    %v2047 = vadd.f32 %v2021, %v2036
    %v2048 = vadd.f32 %v2022, %v2038
    %v2049 = vadd.f32 %v2023, %v2040
    %v2050 = vadd.f32 %v2024, %v2042
    %s2051 = sld [smem:[#allocation3 + $0x51]]
    %v2052 = vstv %s2051
    %v2053 = vmul.f32 %v2052, %v1960
    %v2054 = vmul.f32 %v2052, %v1961
    %v2055 = vmul.f32 %v2052, %v1962
    %v2056 = vmul.f32 %v2052, %v1963
    %2061 = vrot.lane.b32.xlu0 %v2053, 124
    %v2062 = vpop.permute.xlu0 %2061
    %2063 = vrot.lane.b32.xlu0 %v2054, 124
    %v2064 = vpop.permute.xlu0 %2063
    %2065 = vrot.lane.b32.xlu0 %v2055, 124
    %v2066 = vpop.permute.xlu0 %2065
    %2067 = vrot.lane.b32.xlu0 %v2056, 124
    %v2068 = vpop.permute.xlu0 %2067
    %v2073 = vadd.f32 %v2047, %v2062
    %v2074 = vadd.f32 %v2048, %v2064
    %v2075 = vadd.f32 %v2049, %v2066
    %v2076 = vadd.f32 %v2050, %v2068
    %s2077 = sld [smem:[#allocation3 + $0x52]]
    %v2078 = vstv %s2077
    %v2079 = vmul.f32 %v2078, %v1960
    %v2080 = vmul.f32 %v2078, %v1961
    %v2081 = vmul.f32 %v2078, %v1962
    %v2082 = vmul.f32 %v2078, %v1963
    %2087 = vrot.lane.b32.xlu0 %v2079, 123
    %v2088 = vpop.permute.xlu0 %2087
    %2089 = vrot.lane.b32.xlu0 %v2080, 123
    %v2090 = vpop.permute.xlu0 %2089
    %2091 = vrot.lane.b32.xlu0 %v2081, 123
    %v2092 = vpop.permute.xlu0 %2091
    %2093 = vrot.lane.b32.xlu0 %v2082, 123
    %v2094 = vpop.permute.xlu0 %2093
    %v2099 = vadd.f32 %v2073, %v2088
    %v2100 = vadd.f32 %v2074, %v2090
    %v2101 = vadd.f32 %v2075, %v2092
    %v2102 = vadd.f32 %v2076, %v2094
    %s2103 = sld [smem:[#allocation3 + $0x53]]
    %v2104 = vstv %s2103
    %v2105 = vmul.f32 %v2104, %v1960
    %v2106 = vmul.f32 %v2104, %v1961
    %v2107 = vmul.f32 %v2104, %v1962
    %v2108 = vmul.f32 %v2104, %v1963
    %2113 = vrot.lane.b32.xlu0 %v2105, 122
    %v2114 = vpop.permute.xlu0 %2113
    %2115 = vrot.lane.b32.xlu0 %v2106, 122
    %v2116 = vpop.permute.xlu0 %2115
    %2117 = vrot.lane.b32.xlu0 %v2107, 122
    %v2118 = vpop.permute.xlu0 %2117
    %2119 = vrot.lane.b32.xlu0 %v2108, 122
    %v2120 = vpop.permute.xlu0 %2119
    %v2125 = vadd.f32 %v2099, %v2114
    %v2126 = vadd.f32 %v2100, %v2116
    %v2127 = vadd.f32 %v2101, %v2118
    %v2128 = vadd.f32 %v2102, %v2120
    %s2129 = sld [smem:[#allocation3 + $0x54]]
    %v2130 = vld [vmem:[%s1279 + $0x5] sm:$0xff]
    %v2131 = vld [vmem:[%s1279 + $0xd] sm:$0xff]
    %v2132 = vld [vmem:[%s1279 + $0x35] sm:$0xff]
    %v2133 = vld [vmem:[%s1279 + $0x3d] sm:$0xff]
    %v2134 = vstv %s2129
    %v2135 = vmul.f32 %v2134, %v2130
    %v2136 = vmul.f32 %v2134, %v2131
    %v2137 = vmul.f32 %v2134, %v2132
    %v2138 = vmul.f32 %v2134, %v2133
    %v2139 = vadd.f32 %v2125, %v2135
    %v2140 = vadd.f32 %v2126, %v2136
    %v2141 = vadd.f32 %v2127, %v2137
    %v2142 = vadd.f32 %v2128, %v2138
    %s2143 = sld [smem:[#allocation3 + $0x55]]
    %v2144 = vstv %s2143
    %v2145 = vmul.f32 %v2144, %v2130
    %v2146 = vmul.f32 %v2144, %v2131
    %v2147 = vmul.f32 %v2144, %v2132
    %v2148 = vmul.f32 %v2144, %v2133
    %2153 = vrot.lane.b32.xlu0 %v2145, 127
    %v2154 = vpop.permute.xlu0 %2153
    %2155 = vrot.lane.b32.xlu0 %v2146, 127
    %v2156 = vpop.permute.xlu0 %2155
    %2157 = vrot.lane.b32.xlu0 %v2147, 127
    %v2158 = vpop.permute.xlu0 %2157
    %2159 = vrot.lane.b32.xlu0 %v2148, 127
    %v2160 = vpop.permute.xlu0 %2159
    %v2165 = vadd.f32 %v2139, %v2154
    %v2166 = vadd.f32 %v2140, %v2156
    %v2167 = vadd.f32 %v2141, %v2158
    %v2168 = vadd.f32 %v2142, %v2160
    %s2169 = sld [smem:[#allocation3 + $0x56]]
    %v2170 = vstv %s2169
    %v2171 = vmul.f32 %v2170, %v2130
    %v2172 = vmul.f32 %v2170, %v2131
    %v2173 = vmul.f32 %v2170, %v2132
    %v2174 = vmul.f32 %v2170, %v2133
    %2179 = vrot.lane.b32.xlu0 %v2171, 126
    %v2180 = vpop.permute.xlu0 %2179
    %2181 = vrot.lane.b32.xlu0 %v2172, 126
    %v2182 = vpop.permute.xlu0 %2181
    %2183 = vrot.lane.b32.xlu0 %v2173, 126
    %v2184 = vpop.permute.xlu0 %2183
    %2185 = vrot.lane.b32.xlu0 %v2174, 126
    %v2186 = vpop.permute.xlu0 %2185
    %v2191 = vadd.f32 %v2165, %v2180
    %v2192 = vadd.f32 %v2166, %v2182
    %v2193 = vadd.f32 %v2167, %v2184
    %v2194 = vadd.f32 %v2168, %v2186
    %s2195 = sld [smem:[#allocation3 + $0x57]]
    %v2196 = vstv %s2195
    %v2197 = vmul.f32 %v2196, %v2130
    %v2198 = vmul.f32 %v2196, %v2131
    %v2199 = vmul.f32 %v2196, %v2132
    %v2200 = vmul.f32 %v2196, %v2133
    %2205 = vrot.lane.b32.xlu0 %v2197, 125
    %v2206 = vpop.permute.xlu0 %2205
    %2207 = vrot.lane.b32.xlu0 %v2198, 125
    %v2208 = vpop.permute.xlu0 %2207
    %2209 = vrot.lane.b32.xlu0 %v2199, 125
    %v2210 = vpop.permute.xlu0 %2209
    %2211 = vrot.lane.b32.xlu0 %v2200, 125
    %v2212 = vpop.permute.xlu0 %2211
    %v2217 = vadd.f32 %v2191, %v2206
    %v2218 = vadd.f32 %v2192, %v2208
    %v2219 = vadd.f32 %v2193, %v2210
    %v2220 = vadd.f32 %v2194, %v2212
    %s2221 = sld [smem:[#allocation3 + $0x58]]
    %v2222 = vstv %s2221
    %v2223 = vmul.f32 %v2222, %v2130
    %v2224 = vmul.f32 %v2222, %v2131
    %v2225 = vmul.f32 %v2222, %v2132
    %v2226 = vmul.f32 %v2222, %v2133
    %2231 = vrot.lane.b32.xlu0 %v2223, 124
    %v2232 = vpop.permute.xlu0 %2231
    %2233 = vrot.lane.b32.xlu0 %v2224, 124
    %v2234 = vpop.permute.xlu0 %2233
    %2235 = vrot.lane.b32.xlu0 %v2225, 124
    %v2236 = vpop.permute.xlu0 %2235
    %2237 = vrot.lane.b32.xlu0 %v2226, 124
    %v2238 = vpop.permute.xlu0 %2237
    %v2243 = vadd.f32 %v2217, %v2232
    %v2244 = vadd.f32 %v2218, %v2234
    %v2245 = vadd.f32 %v2219, %v2236
    %v2246 = vadd.f32 %v2220, %v2238
    %s2247 = sld [smem:[#allocation3 + $0x59]]
    %v2248 = vstv %s2247
    %v2249 = vmul.f32 %v2248, %v2130
    %v2250 = vmul.f32 %v2248, %v2131
    %v2251 = vmul.f32 %v2248, %v2132
    %v2252 = vmul.f32 %v2248, %v2133
    %2257 = vrot.lane.b32.xlu0 %v2249, 123
    %v2258 = vpop.permute.xlu0 %2257
    %2259 = vrot.lane.b32.xlu0 %v2250, 123
    %v2260 = vpop.permute.xlu0 %2259
    %2261 = vrot.lane.b32.xlu0 %v2251, 123
    %v2262 = vpop.permute.xlu0 %2261
    %2263 = vrot.lane.b32.xlu0 %v2252, 123
    %v2264 = vpop.permute.xlu0 %2263
    %v2269 = vadd.f32 %v2243, %v2258
    %v2270 = vadd.f32 %v2244, %v2260
    %v2271 = vadd.f32 %v2245, %v2262
    %v2272 = vadd.f32 %v2246, %v2264
    %s2273 = sld [smem:[#allocation3 + $0x5a]]
    %v2274 = vstv %s2273
    %v2275 = vmul.f32 %v2274, %v2130
    %v2276 = vmul.f32 %v2274, %v2131
    %v2277 = vmul.f32 %v2274, %v2132
    %v2278 = vmul.f32 %v2274, %v2133
    %2283 = vrot.lane.b32.xlu0 %v2275, 122
    %v2284 = vpop.permute.xlu0 %2283
    %2285 = vrot.lane.b32.xlu0 %v2276, 122
    %v2286 = vpop.permute.xlu0 %2285
    %2287 = vrot.lane.b32.xlu0 %v2277, 122
    %v2288 = vpop.permute.xlu0 %2287
    %2289 = vrot.lane.b32.xlu0 %v2278, 122
    %v2290 = vpop.permute.xlu0 %2289
    %v2295 = vadd.f32 %v2269, %v2284
    %v2296 = vadd.f32 %v2270, %v2286
    %v2297 = vadd.f32 %v2271, %v2288
    %v2298 = vadd.f32 %v2272, %v2290
    %s2299 = sld [smem:[#allocation3 + $0x5b]]
    %v2300 = vld [vmem:[%s1279 + $0x6] sm:$0xff]
    %v2301 = vld [vmem:[%s1279 + $0xe] sm:$0xff]
    %v2302 = vld [vmem:[%s1279 + $0x36] sm:$0xff]
    %v2303 = vld [vmem:[%s1279 + $0x3e] sm:$0xff]
    %v2304 = vstv %s2299
    %v2305 = vmul.f32 %v2304, %v2300
    %v2306 = vmul.f32 %v2304, %v2301
    %v2307 = vmul.f32 %v2304, %v2302
    %v2308 = vmul.f32 %v2304, %v2303
    %v2309 = vadd.f32 %v2295, %v2305
    %v2310 = vadd.f32 %v2296, %v2306
    %v2311 = vadd.f32 %v2297, %v2307
    %v2312 = vadd.f32 %v2298, %v2308
    %s2313 = sld [smem:[#allocation3 + $0x5c]]
    %v2314 = vstv %s2313
    %v2315 = vmul.f32 %v2314, %v2300
    %v2316 = vmul.f32 %v2314, %v2301
    %v2317 = vmul.f32 %v2314, %v2302
    %v2318 = vmul.f32 %v2314, %v2303
    %2323 = vrot.lane.b32.xlu0 %v2315, 127
    %v2324 = vpop.permute.xlu0 %2323
    %2325 = vrot.lane.b32.xlu0 %v2316, 127
    %v2326 = vpop.permute.xlu0 %2325
    %2327 = vrot.lane.b32.xlu0 %v2317, 127
    %v2328 = vpop.permute.xlu0 %2327
    %2329 = vrot.lane.b32.xlu0 %v2318, 127
    %v2330 = vpop.permute.xlu0 %2329
    %v2335 = vadd.f32 %v2309, %v2324
    %v2336 = vadd.f32 %v2310, %v2326
    %v2337 = vadd.f32 %v2311, %v2328
    %v2338 = vadd.f32 %v2312, %v2330
    %s2339 = sld [smem:[#allocation3 + $0x5d]]
    %v2340 = vstv %s2339
    %v2341 = vmul.f32 %v2340, %v2300
    %v2342 = vmul.f32 %v2340, %v2301
    %v2343 = vmul.f32 %v2340, %v2302
    %v2344 = vmul.f32 %v2340, %v2303
    %2349 = vrot.lane.b32.xlu0 %v2341, 126
    %v2350 = vpop.permute.xlu0 %2349
    %2351 = vrot.lane.b32.xlu0 %v2342, 126
    %v2352 = vpop.permute.xlu0 %2351
    %2353 = vrot.lane.b32.xlu0 %v2343, 126
    %v2354 = vpop.permute.xlu0 %2353
    %2355 = vrot.lane.b32.xlu0 %v2344, 126
    %v2356 = vpop.permute.xlu0 %2355
    %v2361 = vadd.f32 %v2335, %v2350
    %v2362 = vadd.f32 %v2336, %v2352
    %v2363 = vadd.f32 %v2337, %v2354
    %v2364 = vadd.f32 %v2338, %v2356
    %s2365 = sld [smem:[#allocation3 + $0x5e]]
    %v2366 = vstv %s2365
    %v2367 = vmul.f32 %v2366, %v2300
    %v2368 = vmul.f32 %v2366, %v2301
    %v2369 = vmul.f32 %v2366, %v2302
    %v2370 = vmul.f32 %v2366, %v2303
    %2375 = vrot.lane.b32.xlu0 %v2367, 125
    %v2376 = vpop.permute.xlu0 %2375
    %2377 = vrot.lane.b32.xlu0 %v2368, 125
    %v2378 = vpop.permute.xlu0 %2377
    %2379 = vrot.lane.b32.xlu0 %v2369, 125
    %v2380 = vpop.permute.xlu0 %2379
    %2381 = vrot.lane.b32.xlu0 %v2370, 125
    %v2382 = vpop.permute.xlu0 %2381
    %v2387 = vadd.f32 %v2361, %v2376
    %v2388 = vadd.f32 %v2362, %v2378
    %v2389 = vadd.f32 %v2363, %v2380
    %v2390 = vadd.f32 %v2364, %v2382
    %s2391 = sld [smem:[#allocation3 + $0x5f]]
    %v2392 = vstv %s2391
    %v2393 = vmul.f32 %v2392, %v2300
    %v2394 = vmul.f32 %v2392, %v2301
    %v2395 = vmul.f32 %v2392, %v2302
    %v2396 = vmul.f32 %v2392, %v2303
    %2401 = vrot.lane.b32.xlu0 %v2393, 124
    %v2402 = vpop.permute.xlu0 %2401
    %2403 = vrot.lane.b32.xlu0 %v2394, 124
    %v2404 = vpop.permute.xlu0 %2403
    %2405 = vrot.lane.b32.xlu0 %v2395, 124
    %v2406 = vpop.permute.xlu0 %2405
    %2407 = vrot.lane.b32.xlu0 %v2396, 124
    %v2408 = vpop.permute.xlu0 %2407
    %v2413 = vadd.f32 %v2387, %v2402
    %v2414 = vadd.f32 %v2388, %v2404
    %v2415 = vadd.f32 %v2389, %v2406
    %v2416 = vadd.f32 %v2390, %v2408
    %s2417 = sld [smem:[#allocation3 + $0x60]]
    %v2418 = vstv %s2417
    %v2419 = vmul.f32 %v2418, %v2300
    %v2420 = vmul.f32 %v2418, %v2301
    %v2421 = vmul.f32 %v2418, %v2302
    %v2422 = vmul.f32 %v2418, %v2303
    %2427 = vrot.lane.b32.xlu0 %v2419, 123
    %v2428 = vpop.permute.xlu0 %2427
    %2429 = vrot.lane.b32.xlu0 %v2420, 123
    %v2430 = vpop.permute.xlu0 %2429
    %2431 = vrot.lane.b32.xlu0 %v2421, 123
    %v2432 = vpop.permute.xlu0 %2431
    %2433 = vrot.lane.b32.xlu0 %v2422, 123
    %v2434 = vpop.permute.xlu0 %2433
    %v2439 = vadd.f32 %v2413, %v2428
    %v2440 = vadd.f32 %v2414, %v2430
    %v2441 = vadd.f32 %v2415, %v2432
    %v2442 = vadd.f32 %v2416, %v2434
    %s2443 = sld [smem:[#allocation3 + $0x61]]
    %v2444 = vstv %s2443
    %v2445 = vmul.f32 %v2444, %v2300
    %v2446 = vmul.f32 %v2444, %v2301
    %v2447 = vmul.f32 %v2444, %v2302
    %v2448 = vmul.f32 %v2444, %v2303
    %2453 = vrot.lane.b32.xlu0 %v2445, 122
    %v2454 = vpop.permute.xlu0 %2453
    %2455 = vrot.lane.b32.xlu0 %v2446, 122
    %v2456 = vpop.permute.xlu0 %2455
    %2457 = vrot.lane.b32.xlu0 %v2447, 122
    %v2458 = vpop.permute.xlu0 %2457
    %2459 = vrot.lane.b32.xlu0 %v2448, 122
    %v2460 = vpop.permute.xlu0 %2459
    %v2465 = vadd.f32 %v2439, %v2454
    %v2466 = vadd.f32 %v2440, %v2456
    %v2467 = vadd.f32 %v2441, %v2458
    %v2468 = vadd.f32 %v2442, %v2460
    %v2469 = vxor.u32 %v2465, 2147483648
    %v2470 = vxor.u32 %v2466, 2147483648
    %v2471 = vxor.u32 %v2467, 2147483648
    %v2472 = vxor.u32 %v2468, 2147483648
    %v2473 = vmul.f32 %v2469, 1.442695
    %v2474 = vpow.pop %v2473
    %v2475 = vmul.f32 %v2470, 1.442695
    %v2476 = vpow.pop %v2475
    %v2477 = vmul.f32 %v2471, 1.442695
    %v2478 = vpow.pop %v2477
    %v2479 = vmul.f32 %v2472, 1.442695
    %v2480 = vpow.pop %v2479
    %v2481 = vadd.f32 %v2474, 1.0
    %v2482 = vadd.f32 %v2476, 1.0
    %v2483 = vadd.f32 %v2478, 1.0
    %v2484 = vadd.f32 %v2480, 1.0
    %v2485 = vrcp.pop %v2481
    %v2486 = vmul.f32 1.0, %v2485
    %v2487 = vrcp.pop %v2482
    %v2488 = vmul.f32 1.0, %v2487
    %v2489 = vrcp.pop %v2483
    %v2490 = vmul.f32 1.0, %v2489
    %v2491 = vrcp.pop %v2484
    %v2492 = vmul.f32 1.0, %v2491
    %vm2493 = vcmask 130048
    %2494 = vst.msk [vmem:[#allocation6] sm:$0xff] %vm2493, %v2486
    %2495 = vst.msk [vmem:[#allocation6 + $0x8] sm:$0xff] %vm2493, %v2488
    %2496 = vst.msk [vmem:[#allocation6 + $0x10] sm:$0xff] %vm2493, %v2490
    %2497 = vst.msk [vmem:[#allocation6 + $0x18] sm:$0xff] %vm2493, %v2492
    // Predicated region
    $region14: #{spatial_attention.3} parent=1 // pred_check
      _
    $region15: #{spatial_attention.3} parent=1 // pred_check_branch
      %2499 = sbr.rel (0) target = $region17
    $region16: #{spatial_attention.3} parent=1 // pred_region
      %s2501 = ssub.s32 512, 512
      %2502 = vsyncadd [#allocation4], %s2501
      %s2503 = sshll.u32 [#allocation6], 4
      %s2504 = int_to_ptr.vmem [resolvable:$true] %s2503
      %2509 = dma.vmem_to_hbm [thread:$0]  %s2504, 512, %s2, [#allocation4], 128, 128, 8
    $region17: #{spatial_attention.3} parent=1 // pred_fallthru
      _
    // Predicated region
    $region18: #{spatial_attention.3} parent=1 // pred_check
      _
    $region19: #{spatial_attention.3} parent=1 // pred_check_branch
      %2511 = sbr.rel (0) target = $region21
    $region20: #{spatial_attention.3} parent=1 // pred_region
      %2512 = dma.done [#allocation4], 512
    $region21: #{spatial_attention.3} parent=1 // pred_fallthru
      _
    %2513 = vsyncpa [#allocation4], 1
    %2514 = vsyncpa [#allocation5], 1

</llo_original>
